<compile_context>
chip_gen: v5e
topology: v5e:2x2
jax: 0.10.0
libtpu: 0.0.40
codegen_flags: <defaults>
</compile_context>

<pallas_src>
import functools

import jax
import jax.numpy as jnp
from jax.experimental import pallas as pl
from jax.experimental.pallas import tpu as pltpu

# Model dimensions (from the PyTorch __init__)
C1, C2 = 16, 32          # channels after initial conv / after pointwise conv
K1 = 64                  # initial conv temporal kernel (1, 64)
KH = 16                  # depthwise conv electrode kernel (16, 1)
NUM_CLASSES = 6
BN_EPS = 1e-5


def _elu(v):
    # exp(min(v,0)) keeps the unused branch finite (safe if dtypes shrink later)
    return jnp.where(v > 0, v, jnp.exp(jnp.minimum(v, 0.0)) - 1.0)


# --------------------------------------------------------------------------
# Single fused kernel: one batch element per grid step, everything in VMEM.
# --------------------------------------------------------------------------
def _fused_kernel(x_ref, m1_ref, t1_ref, bigl_ref, t2_ref, wal_ref, ba_ref,
                  wl_ref, bl_ref, o_ref, *, H, Wt):
    # ---- Stage 1: initial (1,64) valid conv as a banded matmul + BN1 + ELU.
    # x: (H, Win);  m1: (Win, C1*Wt) with col = c*Wt + t, BN1 scale folded in.
    x = x_ref[0]
    a1 = jnp.dot(x, m1_ref[...], preferred_element_type=jnp.float32) + t1_ref[...]
    a1 = _elu(a1)                                              # (H, C1*Wt)

    # ---- Relayout (H, C1*Wt) -> (C1*H, Wt): 16 lane-aligned (H, Wt) blocks
    # stacked along sublanes; rows become r = c*H + h.  Aligned slices + concat
    # only (no intra-vreg shuffles).
    a1r = jnp.concatenate(
        [a1[:, c * Wt:(c + 1) * Wt] for c in range(C1)], axis=0)  # (C1*H, Wt)

    # ---- Stage 2: depthwise(16,1,'same') + pointwise(1x1) + BN2 (scale) fused
    # into ONE block-banded matmul built in glue ('same' zero padding is part
    # of the band structure), then shift + ELU.
    z = jnp.dot(bigl_ref[...], a1r,
                preferred_element_type=jnp.float32) + t2_ref[...]
    z = _elu(z)                                                # (C2*H, Wt), row r = o*H + h

    # ---- Spatial attention: 1x1 conv (32 -> 1) + sigmoid, multiplicative.
    logit = jnp.dot(wal_ref[...], z,
                    preferred_element_type=jnp.float32) + ba_ref[...]   # (H, Wt)
    att = 1.0 / (1.0 + jnp.exp(-logit))
    y = z * jnp.concatenate([att] * C2, axis=0)                # (C2*H, Wt)

    # ---- Global average pool over (h, t) fused with the linear classifier:
    # logits[n] = (1/(H*Wt)) * sum_t (WLexp @ y)[n, t] + bl[n]
    t6 = jnp.dot(wl_ref[...], y, preferred_element_type=jnp.float32)    # (6, Wt)
    logits = jnp.sum(t6, axis=1, keepdims=True) * (1.0 / (H * Wt)) + bl_ref[...]
    o_ref[0] = logits                                          # (6, 1)


# --------------------------------------------------------------------------
# Forward wrapper: parameter folding (tiny, done once in glue) + one kernel.
# --------------------------------------------------------------------------
def eegnet_forward(x, p):
    B, _, H, Win = x.shape
    Wt = Win - K1 + 1                 # 'valid' conv along time
    f32 = jnp.float32

    # ---- BatchNorm folding ----
    w1 = p["w1"][:, 0, 0, :]                          # (C1, K1)
    s1 = p["g1"] / jnp.sqrt(p["v1"] + BN_EPS)
    t1 = p["be1"] + (p["b1"] - p["m1"]) * s1
    wd = p["wd"][:, 0, :, 0]                          # (C1, KH)
    wp = p["wp"][:, :, 0, 0]                          # (C2, C1)
    bp_eff = wp @ p["bd"] + p["bp"]                   # depthwise bias through pointwise
    s2 = p["g2"] / jnp.sqrt(p["v2"] + BN_EPS)
    t2 = p["be2"] + (bp_eff - p["m2"]) * s2
    wa = p["wa"][0, :, 0, 0]                          # (C2,)
    ba = p["ba"].reshape(1, 1).astype(f32)
    wl = p["wl"]                                      # (NUM_CLASSES, C2)
    bl = p["bl"].reshape(NUM_CLASSES, 1).astype(f32)

    # ---- Banded matrix for the (1,64) valid conv (BN1 scale folded in) ----
    # m1[w, c*Wt + t] = w1[c, w - t] * s1[c]  for 0 <= w - t < K1, else 0.
    w_i = jnp.arange(Win)[:, None, None]
    c_i = jnp.arange(C1)[None, :, None]
    t_i = jnp.arange(Wt)[None, None, :]
    k = w_i - t_i
    valid = (k >= 0) & (k < K1)
    m1 = jnp.where(valid, w1[c_i, jnp.clip(k, 0, K1 - 1)], 0.0)
    m1 = (m1 * s1[None, :, None]).reshape(Win, C1 * Wt).astype(f32)
    t1row = jnp.repeat(t1, Wt)[None, :].astype(f32)                  # (1, C1*Wt)

    # ---- Fused depthwise + pointwise + BN2-scale block-banded matrix ----
    # bigl[o*H + h, c*H + h'] = s2[o] * wp[o,c] * wd[c, h'-h+PT]
    #                           for 0 <= h'-h+PT < KH, else 0   ('same' padding
    # along electrodes is exactly the band validity mask).
    PT = (KH - 1) // 2                                # 7 (PyTorch 'same', even kernel)
    o_i = jnp.arange(C2)[:, None, None, None]
    h_i = jnp.arange(H)[None, :, None, None]
    c2_i = jnp.arange(C1)[None, None, :, None]
    hp_i = jnp.arange(H)[None, None, None, :]
    kk = hp_i - h_i + PT
    vv = (kk >= 0) & (kk < KH)
    wdg = wd[c2_i, jnp.clip(kk, 0, KH - 1)]
    bigl = jnp.where(vv, wdg, 0.0) * wp[o_i, c2_i] * s2[o_i]         # (C2,H,C1,H)
    bigl = bigl.reshape(C2 * H, C1 * H).astype(f32)
    t2col = jnp.repeat(t2, H)[:, None].astype(f32)                   # (C2*H, 1)

    # ---- Attention / classifier weights expanded to the (o, h) row layout ----
    wal = jnp.kron(wa[None, :], jnp.eye(H, dtype=f32)).astype(f32)   # (H, C2*H)
    wlexp = jnp.repeat(wl, H, axis=1).astype(f32)                    # (6, C2*H)

    x2 = x[:, 0].astype(f32)                                         # (B, H, Win)

    kernel = functools.partial(_fused_kernel, H=H, Wt=Wt)
    out = pl.pallas_call(
        kernel,
        out_shape=jax.ShapeDtypeStruct((B, NUM_CLASSES, 1), f32),
        grid=(B,),
        in_specs=[
            pl.BlockSpec((1, H, Win), lambda b: (b, 0, 0)),          # x
            pl.BlockSpec((Win, C1 * Wt), lambda b: (0, 0)),          # m1
            pl.BlockSpec((1, C1 * Wt), lambda b: (0, 0)),            # t1row
            pl.BlockSpec((C2 * H, C1 * H), lambda b: (0, 0)),        # bigl
            pl.BlockSpec((C2 * H, 1), lambda b: (0, 0)),             # t2col
            pl.BlockSpec((H, C2 * H), lambda b: (0, 0)),             # wal
            pl.BlockSpec((1, 1), lambda b: (0, 0)),                  # ba
            pl.BlockSpec((NUM_CLASSES, C2 * H), lambda b: (0, 0)),   # wlexp
            pl.BlockSpec((NUM_CLASSES, 1), lambda b: (0, 0)),        # bl
        ],
        out_specs=pl.BlockSpec((1, NUM_CLASSES, 1), lambda b: (b, 0, 0)),
        compiler_params=pltpu.CompilerParams(
            dimension_semantics=("parallel",)),      # v7x: 2 TCs split the batch
    )(x2, m1, t1row, bigl, t2col, wal, ba, wlexp, bl)

    # TODO(synk): nn.Dropout(0.5) train-mode RNG has no reproducible Pallas
    # equivalent; implemented as eval-mode identity.
    return out[:, :, 0]                                              # (B, NUM_CLASSES)


# --------------------------------------------------------------------------
# Pure-JAX reference (same eval-mode semantics) for correctness check
# --------------------------------------------------------------------------
def reference_forward(x, p):
    B, _, H, Win = x.shape
    Wt = Win - K1 + 1
    x2 = x[:, 0]
    idx = jnp.arange(Wt)[:, None] + jnp.arange(K1)[None, :]
    patches = x2[:, :, idx]                                        # (B,H,Wt,K1)
    a = (jnp.einsum("bhtk,ck->bcht", patches, p["w1"][:, 0, 0, :])
         + p["b1"][None, :, None, None])
    a = ((a - p["m1"][None, :, None, None])
         / jnp.sqrt(p["v1"][None, :, None, None] + BN_EPS)
         * p["g1"][None, :, None, None] + p["be1"][None, :, None, None])
    a = jnp.where(a > 0, a, jnp.exp(a) - 1.0)
    pt = (KH - 1) // 2
    pb = (KH - 1) - pt
    ap = jnp.pad(a, ((0, 0), (0, 0), (pt, pb), (0, 0)))
    wd = p["wd"][:, 0, :, 0]
    d = sum(wd[None, :, kh, None, None] * ap[:, :, kh:kh + H, :] for kh in range(KH))
    d = d + p["bd"][None, :, None, None]
    z = (jnp.einsum("oc,bcht->boht", p["wp"][:, :, 0, 0], d)
         + p["bp"][None, :, None, None])
    z = ((z - p["m2"][None, :, None, None])
         / jnp.sqrt(p["v2"][None, :, None, None] + BN_EPS)
         * p["g2"][None, :, None, None] + p["be2"][None, :, None, None])
    z = jnp.where(z > 0, z, jnp.exp(z) - 1.0)
    att = jax.nn.sigmoid(jnp.einsum("c,bcht->bht", p["wa"][0, :, 0, 0], z) + p["ba"][0])
    y = z * att[:, None, :, :]
    pooled = y.mean(axis=(2, 3))
    return pooled @ p["wl"].T + p["bl"]


if __name__ == "__main__":
    key = jax.random.PRNGKey(0)
    ks = jax.random.split(key, 20)
    n = jax.random.normal
    params = {
        "w1": 0.1 * n(ks[0], (C1, 1, 1, K1), jnp.float32),
        "b1": 0.1 * n(ks[1], (C1,), jnp.float32),
        "g1": 1.0 + 0.1 * n(ks[2], (C1,), jnp.float32),
        "be1": 0.1 * n(ks[3], (C1,), jnp.float32),
        "m1": 0.1 * n(ks[4], (C1,), jnp.float32),
        "v1": 0.5 + jax.random.uniform(ks[5], (C1,), jnp.float32),
        "wd": 0.1 * n(ks[6], (C1, 1, KH, 1), jnp.float32),
        "bd": 0.1 * n(ks[7], (C1,), jnp.float32),
        "wp": 0.1 * n(ks[8], (C2, C1, 1, 1), jnp.float32),
        "bp": 0.1 * n(ks[9], (C2,), jnp.float32),
        "g2": 1.0 + 0.1 * n(ks[10], (C2,), jnp.float32),
        "be2": 0.1 * n(ks[11], (C2,), jnp.float32),
        "m2": 0.1 * n(ks[12], (C2,), jnp.float32),
        "v2": 0.5 + jax.random.uniform(ks[13], (C2,), jnp.float32),
        "wa": 0.1 * n(ks[14], (1, C2, 1, 1), jnp.float32),
        "ba": 0.1 * n(ks[15], (1,), jnp.float32),
        "wl": 0.1 * n(ks[16], (NUM_CLASSES, C2), jnp.float32),
        "bl": 0.1 * n(ks[17], (NUM_CLASSES,), jnp.float32),
    }

    # Small input: B=2, 1 channel, 16 electrodes, 191 time samples
    # (191 - 64 + 1 = 128 time positions after the initial valid conv).
    B, H, Win = 2, 16, 191
    x = jax.random.normal(ks[18], (B, 1, H, Win), jnp.float32)

    out = jax.jit(eegnet_forward)(x, params)
    out = jax.block_until_ready(out)

    ref = reference_forward(x, params)
    assert out.shape == (B, NUM_CLASSES)
    assert jnp.allclose(out, ref, atol=2e-3, rtol=2e-3), (out, ref)
    print("KERNEL_OK")
</pallas_src>

<mosaic_0001>
module attributes {stable_mosaic.version = 11 : i64} {
  func.func @_fused_kernel(%arg0: i32, %arg1: memref<1x16x191xf32, #tpu.memory_space<vmem>>, %arg2: memref<191x2048xf32, #tpu.memory_space<vmem>>, %arg3: memref<1x2048xf32, #tpu.memory_space<vmem>>, %arg4: memref<512x256xf32, #tpu.memory_space<vmem>>, %arg5: memref<512x1xf32, #tpu.memory_space<vmem>>, %arg6: memref<16x512xf32, #tpu.memory_space<vmem>>, %arg7: memref<1x1xf32, #tpu.memory_space<vmem>>, %arg8: memref<6x512xf32, #tpu.memory_space<vmem>>, %arg9: memref<6x1xf32, #tpu.memory_space<vmem>>, %arg10: memref<1x6x1xf32, #tpu.memory_space<vmem>>) attributes {dimension_semantics = [#tpu.dimension_semantics<parallel>], iteration_bounds = array<i64: 2>, scalar_prefetch = 0 : i64, scratch_operands = 0 : i64, tpu.core_type = #tpu.core_type<tc>, window_params = [{transform_indices = @transform_0, window_bounds = array<i64: 1, 16, 191>}, {pipeline_mode = #tpu.pipeline_mode<synchronous>, transform_indices = @transform_1, window_bounds = array<i64: 191, 2048>}, {pipeline_mode = #tpu.pipeline_mode<synchronous>, transform_indices = @transform_2, window_bounds = array<i64: 1, 2048>}, {pipeline_mode = #tpu.pipeline_mode<synchronous>, transform_indices = @transform_3, window_bounds = array<i64: 512, 256>}, {pipeline_mode = #tpu.pipeline_mode<synchronous>, transform_indices = @transform_4, window_bounds = array<i64: 512, 1>}, {pipeline_mode = #tpu.pipeline_mode<synchronous>, transform_indices = @transform_5, window_bounds = array<i64: 16, 512>}, {pipeline_mode = #tpu.pipeline_mode<synchronous>, transform_indices = @transform_6, window_bounds = array<i64: 1, 1>}, {pipeline_mode = #tpu.pipeline_mode<synchronous>, transform_indices = @transform_7, window_bounds = array<i64: 6, 512>}, {pipeline_mode = #tpu.pipeline_mode<synchronous>, transform_indices = @transform_8, window_bounds = array<i64: 6, 1>}, {transform_indices = @transform_9, window_bounds = array<i64: 1, 6, 1>}]} {
    %c0 = arith.constant 0 : index
    %c0_0 = arith.constant 0 : index
    %c0_1 = arith.constant 0 : index
    %0 = vector.load %arg1[%c0, %c0_0, %c0_1] : memref<1x16x191xf32, #tpu.memory_space<vmem>>, vector<1x16x191xf32>
    %1 = vector.shape_cast %0 : vector<1x16x191xf32> to vector<16x191xf32>
    %c0_2 = arith.constant 0 : index
    %c0_3 = arith.constant 0 : index
    %2 = vector.load %arg2[%c0_2, %c0_3] : memref<191x2048xf32, #tpu.memory_space<vmem>>, vector<191x2048xf32>
    %cst = arith.constant dense<0.000000e+00> : vector<16x2048xf32>
    %3 = tpu.matmul %1, %2, %cst {dimension_numbers = #tpu.dot_dimension_numbers<[1], [0], [0], [1], [0, 0, 1, 1], [], []>} : vector<16x191xf32>, vector<191x2048xf32>, vector<16x2048xf32> -> vector<16x2048xf32>
    %c0_4 = arith.constant 0 : index
    %c0_5 = arith.constant 0 : index
    %4 = vector.load %arg3[%c0_4, %c0_5] : memref<1x2048xf32, #tpu.memory_space<vmem>>, vector<1x2048xf32>
    %5 = vector.broadcast %4 : vector<1x2048xf32> to vector<16x2048xf32>
    %6 = arith.addf %3, %5 : vector<16x2048xf32>
    %cst_6 = arith.constant 0.000000e+00 : f32
    %7 = vector.broadcast %cst_6 : f32 to vector<16x2048xf32>
    %8 = arith.cmpf ogt, %6, %7 : vector<16x2048xf32>
    %cst_7 = arith.constant 0.000000e+00 : f32
    %9 = vector.broadcast %cst_7 : f32 to vector<16x2048xf32>
    %10 = arith.minimumf %6, %9 : vector<16x2048xf32>
    %11 = math.exp %10 : vector<16x2048xf32>
    %cst_8 = arith.constant 1.000000e+00 : f32
    %12 = vector.broadcast %cst_8 : f32 to vector<16x2048xf32>
    %13 = arith.subf %11, %12 : vector<16x2048xf32>
    %14 = arith.select %8, %6, %13 : vector<16x2048xi1>, vector<16x2048xf32>
    %15 = vector.extract_strided_slice %14 {offsets = [0, 0], sizes = [16, 128], strides = [1, 1]} : vector<16x2048xf32> to vector<16x128xf32>
    %16 = vector.extract_strided_slice %14 {offsets = [0, 128], sizes = [16, 128], strides = [1, 1]} : vector<16x2048xf32> to vector<16x128xf32>
    %17 = vector.extract_strided_slice %14 {offsets = [0, 256], sizes = [16, 128], strides = [1, 1]} : vector<16x2048xf32> to vector<16x128xf32>
    %18 = vector.extract_strided_slice %14 {offsets = [0, 384], sizes = [16, 128], strides = [1, 1]} : vector<16x2048xf32> to vector<16x128xf32>
    %19 = vector.extract_strided_slice %14 {offsets = [0, 512], sizes = [16, 128], strides = [1, 1]} : vector<16x2048xf32> to vector<16x128xf32>
    %20 = vector.extract_strided_slice %14 {offsets = [0, 640], sizes = [16, 128], strides = [1, 1]} : vector<16x2048xf32> to vector<16x128xf32>
    %21 = vector.extract_strided_slice %14 {offsets = [0, 768], sizes = [16, 128], strides = [1, 1]} : vector<16x2048xf32> to vector<16x128xf32>
    %22 = vector.extract_strided_slice %14 {offsets = [0, 896], sizes = [16, 128], strides = [1, 1]} : vector<16x2048xf32> to vector<16x128xf32>
    %23 = vector.extract_strided_slice %14 {offsets = [0, 1024], sizes = [16, 128], strides = [1, 1]} : vector<16x2048xf32> to vector<16x128xf32>
    %24 = vector.extract_strided_slice %14 {offsets = [0, 1152], sizes = [16, 128], strides = [1, 1]} : vector<16x2048xf32> to vector<16x128xf32>
    %25 = vector.extract_strided_slice %14 {offsets = [0, 1280], sizes = [16, 128], strides = [1, 1]} : vector<16x2048xf32> to vector<16x128xf32>
    %26 = vector.extract_strided_slice %14 {offsets = [0, 1408], sizes = [16, 128], strides = [1, 1]} : vector<16x2048xf32> to vector<16x128xf32>
    %27 = vector.extract_strided_slice %14 {offsets = [0, 1536], sizes = [16, 128], strides = [1, 1]} : vector<16x2048xf32> to vector<16x128xf32>
    %28 = vector.extract_strided_slice %14 {offsets = [0, 1664], sizes = [16, 128], strides = [1, 1]} : vector<16x2048xf32> to vector<16x128xf32>
    %29 = vector.extract_strided_slice %14 {offsets = [0, 1792], sizes = [16, 128], strides = [1, 1]} : vector<16x2048xf32> to vector<16x128xf32>
    %30 = vector.extract_strided_slice %14 {offsets = [0, 1920], sizes = [16, 128], strides = [1, 1]} : vector<16x2048xf32> to vector<16x128xf32>
    %31 = tpu.concatenate %15, %16, %17, %18, %19, %20, %21, %22, %23, %24, %25, %26, %27, %28, %29, %30 in 0 : vector<16x128xf32>, vector<16x128xf32>, vector<16x128xf32>, vector<16x128xf32>, vector<16x128xf32>, vector<16x128xf32>, vector<16x128xf32>, vector<16x128xf32>, vector<16x128xf32>, vector<16x128xf32>, vector<16x128xf32>, vector<16x128xf32>, vector<16x128xf32>, vector<16x128xf32>, vector<16x128xf32>, vector<16x128xf32> -> vector<256x128xf32>
    %c0_9 = arith.constant 0 : index
    %c0_10 = arith.constant 0 : index
    %32 = vector.load %arg4[%c0_9, %c0_10] : memref<512x256xf32, #tpu.memory_space<vmem>>, vector<512x256xf32>
    %cst_11 = arith.constant dense<0.000000e+00> : vector<512x128xf32>
    %33 = tpu.matmul %32, %31, %cst_11 {dimension_numbers = #tpu.dot_dimension_numbers<[1], [0], [0], [1], [0, 0, 1, 1], [], []>} : vector<512x256xf32>, vector<256x128xf32>, vector<512x128xf32> -> vector<512x128xf32>
    %c0_12 = arith.constant 0 : index
    %c0_13 = arith.constant 0 : index
    %34 = vector.load %arg5[%c0_12, %c0_13] : memref<512x1xf32, #tpu.memory_space<vmem>>, vector<512x1xf32>
    %35 = vector.broadcast %34 : vector<512x1xf32> to vector<512x128xf32>
    %36 = arith.addf %33, %35 : vector<512x128xf32>
    %cst_14 = arith.constant 0.000000e+00 : f32
    %37 = vector.broadcast %cst_14 : f32 to vector<512x128xf32>
    %38 = arith.cmpf ogt, %36, %37 : vector<512x128xf32>
    %cst_15 = arith.constant 0.000000e+00 : f32
    %39 = vector.broadcast %cst_15 : f32 to vector<512x128xf32>
    %40 = arith.minimumf %36, %39 : vector<512x128xf32>
    %41 = math.exp %40 : vector<512x128xf32>
    %cst_16 = arith.constant 1.000000e+00 : f32
    %42 = vector.broadcast %cst_16 : f32 to vector<512x128xf32>
    %43 = arith.subf %41, %42 : vector<512x128xf32>
    %44 = arith.select %38, %36, %43 : vector<512x128xi1>, vector<512x128xf32>
    %c0_17 = arith.constant 0 : index
    %c0_18 = arith.constant 0 : index
    %45 = vector.load %arg6[%c0_17, %c0_18] : memref<16x512xf32, #tpu.memory_space<vmem>>, vector<16x512xf32>
    %cst_19 = arith.constant dense<0.000000e+00> : vector<16x128xf32>
    %46 = tpu.matmul %45, %44, %cst_19 {dimension_numbers = #tpu.dot_dimension_numbers<[1], [0], [0], [1], [0, 0, 1, 1], [], []>} : vector<16x512xf32>, vector<512x128xf32>, vector<16x128xf32> -> vector<16x128xf32>
    %c0_20 = arith.constant 0 : index
    %c0_21 = arith.constant 0 : index
    %47 = vector.load %arg7[%c0_20, %c0_21] : memref<1x1xf32, #tpu.memory_space<vmem>>, vector<1x1xf32>
    %48 = vector.broadcast %47 : vector<1x1xf32> to vector<16x128xf32>
    %49 = arith.addf %46, %48 : vector<16x128xf32>
    %cst_22 = arith.constant 0.000000e+00 : f32
    %50 = vector.broadcast %cst_22 : f32 to vector<16x128xf32>
    %51 = arith.subf %50, %49 : vector<16x128xf32>
    %52 = math.exp %51 : vector<16x128xf32>
    %cst_23 = arith.constant 1.000000e+00 : f32
    %53 = vector.broadcast %cst_23 : f32 to vector<16x128xf32>
    %54 = arith.addf %53, %52 : vector<16x128xf32>
    %cst_24 = arith.constant 1.000000e+00 : f32
    %55 = vector.broadcast %cst_24 : f32 to vector<16x128xf32>
    %56 = arith.divf %55, %54 : vector<16x128xf32>
    %57 = tpu.concatenate %56, %56, %56, %56, %56, %56, %56, %56, %56, %56, %56, %56, %56, %56, %56, %56 in 0 : vector<16x128xf32>, vector<16x128xf32>, vector<16x128xf32>, vector<16x128xf32>, vector<16x128xf32>, vector<16x128xf32>, vector<16x128xf32>, vector<16x128xf32>, vector<16x128xf32>, vector<16x128xf32>, vector<16x128xf32>, vector<16x128xf32>, vector<16x128xf32>, vector<16x128xf32>, vector<16x128xf32>, vector<16x128xf32> -> vector<256x128xf32>
    %58 = tpu.concatenate %56, %56, %56, %56, %56, %56, %56, %56, %56, %56, %56, %56, %56, %56, %56, %56 in 0 : vector<16x128xf32>, vector<16x128xf32>, vector<16x128xf32>, vector<16x128xf32>, vector<16x128xf32>, vector<16x128xf32>, vector<16x128xf32>, vector<16x128xf32>, vector<16x128xf32>, vector<16x128xf32>, vector<16x128xf32>, vector<16x128xf32>, vector<16x128xf32>, vector<16x128xf32>, vector<16x128xf32>, vector<16x128xf32> -> vector<256x128xf32>
    %59 = tpu.concatenate %57, %58 in 0 : vector<256x128xf32>, vector<256x128xf32> -> vector<512x128xf32>
    %60 = arith.mulf %44, %59 : vector<512x128xf32>
    %c0_25 = arith.constant 0 : index
    %c0_26 = arith.constant 0 : index
    %61 = vector.load %arg8[%c0_25, %c0_26] : memref<6x512xf32, #tpu.memory_space<vmem>>, vector<6x512xf32>
    %cst_27 = arith.constant dense<0.000000e+00> : vector<6x128xf32>
    %62 = tpu.matmul %61, %60, %cst_27 {dimension_numbers = #tpu.dot_dimension_numbers<[1], [0], [0], [1], [0, 0, 1, 1], [], []>} : vector<6x512xf32>, vector<512x128xf32>, vector<6x128xf32> -> vector<6x128xf32>
    %cst_28 = arith.constant dense<0.000000e+00> : vector<6xf32>
    %63 = vector.multi_reduction <add>, %62, %cst_28 [1] : vector<6x128xf32> to vector<6xf32>
    %64 = vector.shape_cast %63 : vector<6xf32> to vector<6x1xf32>
    %cst_29 = arith.constant 4.8828125E-4 : f32
    %65 = vector.broadcast %cst_29 : f32 to vector<6x1xf32>
    %66 = arith.mulf %64, %65 : vector<6x1xf32>
    %c0_30 = arith.constant 0 : index
    %c0_31 = arith.constant 0 : index
    %67 = vector.load %arg9[%c0_30, %c0_31] : memref<6x1xf32, #tpu.memory_space<vmem>>, vector<6x1xf32>
    %68 = arith.addf %66, %67 : vector<6x1xf32>
    %c0_32 = arith.constant 0 : index
    %c0_33 = arith.constant 0 : index
    %c0_34 = arith.constant 0 : index
    %69 = vector.load %arg10[%c0_32, %c0_33, %c0_34] : memref<1x6x1xf32, #tpu.memory_space<vmem>>, vector<1x6x1xf32>
    %70 = vector.shape_cast %69 : vector<1x6x1xf32> to vector<6x1xf32>
    %71 = vector.shape_cast %68 : vector<6x1xf32> to vector<1x6x1xf32>
    tpu.vector_store %arg10[%c0_32, %c0_33, %c0_34], %71 {strides = array<i32>} : memref<1x6x1xf32, #tpu.memory_space<vmem>>, vector<1x6x1xf32>,
    return
  }
  func.func @transform_0(%arg0: i32) -> (i32, i32, i32) {
    %c0_i32 = arith.constant 0 : i32
    %c0_i32_0 = arith.constant 0 : i32
    %c0_i32_1 = arith.constant 0 : i32
    return %arg0, %c0_i32, %c0_i32_0 : i32, i32, i32
  }
  func.func @transform_1(%arg0: i32) -> (i32, i32) {
    %c0_i32 = arith.constant 0 : i32
    %c0_i32_0 = arith.constant 0 : i32
    %c0_i32_1 = arith.constant 0 : i32
    return %c0_i32, %c0_i32_0 : i32, i32
  }
  func.func @transform_2(%arg0: i32) -> (i32, i32) {
    %c0_i32 = arith.constant 0 : i32
    %c0_i32_0 = arith.constant 0 : i32
    %c0_i32_1 = arith.constant 0 : i32
    return %c0_i32, %c0_i32_0 : i32, i32
  }
  func.func @transform_3(%arg0: i32) -> (i32, i32) {
    %c0_i32 = arith.constant 0 : i32
    %c0_i32_0 = arith.constant 0 : i32
    %c0_i32_1 = arith.constant 0 : i32
    return %c0_i32, %c0_i32_0 : i32, i32
  }
  func.func @transform_4(%arg0: i32) -> (i32, i32) {
    %c0_i32 = arith.constant 0 : i32
    %c0_i32_0 = arith.constant 0 : i32
    %c0_i32_1 = arith.constant 0 : i32
    return %c0_i32, %c0_i32_0 : i32, i32
  }
  func.func @transform_5(%arg0: i32) -> (i32, i32) {
    %c0_i32 = arith.constant 0 : i32
    %c0_i32_0 = arith.constant 0 : i32
    %c0_i32_1 = arith.constant 0 : i32
    return %c0_i32, %c0_i32_0 : i32, i32
  }
  func.func @transform_6(%arg0: i32) -> (i32, i32) {
    %c0_i32 = arith.constant 0 : i32
    %c0_i32_0 = arith.constant 0 : i32
    %c0_i32_1 = arith.constant 0 : i32
    return %c0_i32, %c0_i32_0 : i32, i32
  }
  func.func @transform_7(%arg0: i32) -> (i32, i32) {
    %c0_i32 = arith.constant 0 : i32
    %c0_i32_0 = arith.constant 0 : i32
    %c0_i32_1 = arith.constant 0 : i32
    return %c0_i32, %c0_i32_0 : i32, i32
  }
  func.func @transform_8(%arg0: i32) -> (i32, i32) {
    %c0_i32 = arith.constant 0 : i32
    %c0_i32_0 = arith.constant 0 : i32
    %c0_i32_1 = arith.constant 0 : i32
    return %c0_i32, %c0_i32_0 : i32, i32
  }
  func.func @transform_9(%arg0: i32) -> (i32, i32, i32) {
    %c0_i32 = arith.constant 0 : i32
    %c0_i32_0 = arith.constant 0 : i32
    %c0_i32_1 = arith.constant 0 : i32
    return %arg0, %c0_i32, %c0_i32_0 : i32, i32, i32
  }
}

</mosaic_0001>

<llo_original>
// kernel: mul.41
$region0: #{mul.41}
  %s0 = inlined_call_operand.vmem [shape: f32[512], index: 0, kind: input, shape index: {}]
  %s1 = inlined_call_operand.vmem [shape: f32[32,16], index: 1, kind: output, shape index: {}]
  $region1: #{mul.41} parent=0
    #allocation0 [shape = 'u8[4096]{0}', space=vmem, size = 0x1000, scoped, tag = 'scoped mem for input reshape']
    %s3 = ssub.s32 16, 1
    %v4 = vld [vmem:[%s0] sm:%s3]
    %5 = vst [vmem:[#allocation0] sm:%s3] %v4
    %v6 = vld [vmem:[#allocation0] sm:$0xf]
    %vm7 = vcmask 130048
    %8 = vst.msk [vmem:[%s1] ss:$8 sm:$0xf] %vm7, %v6
    %v9 = vld [vmem:[#allocation0] sm:$0xf]
    %10 = vrot.lane.b32.xlu0 %v9, 112
    %v11 = vpop.permute.xlu0 %10
    %vm12 = vcmask 130048
    %s13 = scalar_lea.vmem %s1, 1
    %14 = vst.msk [vmem:[%s13] ss:$8 sm:$0xf] %vm12, %v11
    %v15 = vld [vmem:[#allocation0] sm:$0xf]
    %16 = vrot.lane.b32.xlu0 %v15, 96
    %v17 = vpop.permute.xlu0 %16
    %vm18 = vcmask 130048
    %s19 = scalar_lea.vmem %s1, 2
    %20 = vst.msk [vmem:[%s19] ss:$8 sm:$0xf] %vm18, %v17
    %v21 = vld [vmem:[#allocation0] sm:$0xf]
    %22 = vrot.lane.b32.xlu0 %v21, 80
    %v23 = vpop.permute.xlu0 %22
    %vm24 = vcmask 130048
    %s25 = scalar_lea.vmem %s1, 3
    %26 = vst.msk [vmem:[%s25] ss:$8 sm:$0xf] %vm24, %v23
    %v27 = vld [vmem:[#allocation0] sm:$0xf]
    %28 = vrot.lane.b32.xlu0 %v27, 64
    %v29 = vpop.permute.xlu0 %28
    %vm30 = vcmask 130048
    %s31 = scalar_lea.vmem %s1, 4
    %32 = vst.msk [vmem:[%s31] ss:$8 sm:$0xf] %vm30, %v29
    %v33 = vld [vmem:[#allocation0] sm:$0xf]
    %34 = vrot.lane.b32.xlu0 %v33, 48
    %v35 = vpop.permute.xlu0 %34
    %vm36 = vcmask 130048
    %s37 = scalar_lea.vmem %s1, 5
    %38 = vst.msk [vmem:[%s37] ss:$8 sm:$0xf] %vm36, %v35
    %v39 = vld [vmem:[#allocation0] sm:$0xf]
    %40 = vrot.lane.b32.xlu0 %v39, 32
    %v41 = vpop.permute.xlu0 %40
    %vm42 = vcmask 130048
    %s43 = scalar_lea.vmem %s1, 6
    %44 = vst.msk [vmem:[%s43] ss:$8 sm:$0xf] %vm42, %v41
    %v45 = vld [vmem:[#allocation0] sm:$0xf]
    %46 = vrot.lane.b32.xlu0 %v45, 16
    %v47 = vpop.permute.xlu0 %46
    %vm48 = vcmask 130048
    %s49 = scalar_lea.vmem %s1, 7
    %50 = vst.msk [vmem:[%s49] ss:$8 sm:$0xf] %vm48, %v47

// kernel: eegnet_forward.1
$region0: #{eegnet_forward.1}
  #allocation0 [shape = 'u32[]', space=smem, size = 0x4, offset = 0x4, fixed_abs, tag = 'smem constant byte address 0x4 - core index']
  #allocation1 [shape = 'u32[72,128]{1,0:T(1,128)}', space=vmem, size = 0x9000, scoped, tag = 'internal scratch']
  #allocation2 [shape = 'f32[1,1]{1,0:T(1,128)S(1)}', space=vmem, size = 0x200, scoped, tag = 'scoped memory for eegnet_forward.1']
  %s0 = inlined_call_operand.vmem [shape: f32[2,16,191], index: 0, kind: input, shape index: {}]
  %s1 = inlined_call_operand.vmem [shape: f32[191,2048], index: 1, kind: input, shape index: {}]
  %s2 = inlined_call_operand.vmem [shape: f32[1,2048], index: 2, kind: input, shape index: {}]
  %s3 = inlined_call_operand.vmem [shape: f32[512,256], index: 3, kind: input, shape index: {}]
  %s4 = inlined_call_operand.vmem [shape: f32[512,1], index: 4, kind: input, shape index: {}]
  %s5 = inlined_call_operand.vmem [shape: f32[16,512], index: 5, kind: input, shape index: {}]
  %s6 = inlined_call_operand.<no memory space> [shape: f32[1,1], index: 6, kind: input, shape index: {}]
  %s7 = inlined_call_operand.vmem [shape: f32[6,512], index: 7, kind: input, shape index: {}]
  %s8 = inlined_call_operand.vmem [shape: f32[6,1], index: 8, kind: input, shape index: {}]
  %s9 = inlined_call_operand.vmem [shape: f32[2,6,1], index: 9, kind: output, shape index: {}]
  %s10 = sld [smem:[#allocation0]]
  $region69: #{eegnet_forward.1} parent=0
    _
  %s12 = ssub.s32 1, %s10
  %s13 = scalar_select 0, %s12, %s10
  %v14 = vstv %s6
  %15 = vst [vmem:[#allocation2] sm:$0x1] %v14
  loop: start=0, step=1, limit=4
  $region2: #{eegnet_forward.1} parent=0 // loop_pre_header
    _
  $region3: #{eegnet_forward.1} parent=0 // loop_header
    %s17 = sphi 0, %s21
    %p18 = scmp.ge.s32.totalorder %s17, 4
    %s27 = sphi 0, %s29
    %s30 = sphi 0, %s27
    %s31 = sphi 0, %s30
    %s47 = sphi 0, %s31
    %s51 = sphi 0, %s51
    %s53 = sphi 0, %s51
    %s54 = sphi 0, %s53
    %s68 = sphi 0, %s54
    %s72 = sphi 0, %s72
    %s74 = sphi 0, %s72
    %s75 = sphi 0, %s74
    %s89 = sphi 0, %s75
    %s93 = sphi 0, %s93
    %s95 = sphi 0, %s93
    %s96 = sphi 0, %s95
    %s110 = sphi 0, %s96
    %s114 = sphi 0, %s114
    %s116 = sphi 0, %s114
    %s117 = sphi 0, %s116
    %s131 = sphi 0, %s117
    %s135 = sphi 0, %s135
    %s137 = sphi 0, %s135
    %s138 = sphi 0, %s137
    %s152 = sphi 0, %s138
    %s156 = sphi 0, %s156
    %s158 = sphi 0, %s156
    %s159 = sphi 0, %s158
    %s173 = sphi 0, %s159
    %s177 = sphi 0, %s177
    %s179 = sphi 0, %s177
    %s180 = sphi 0, %s179
    %s194 = sphi 0, %s180
    %s198 = sphi 0, %s198
    %s200 = sphi 0, %s198
    %s201 = sphi 0, %s200
    %s215 = sphi 0, %s201
    %s221 = sphi 0, %s223
    %s224 = sphi 0, %s221
    %s225 = sphi 0, %s224
    %s241 = sphi 0, %s225
  $region4: #{eegnet_forward.1} parent=0 // loop_header_branch
    %20 = sbr.rel (%p18) target = $region8
  $region5: #{eegnet_forward.1} parent=0 // loop_body
    %s22 = ssub.s32 %s17, 1
    %s23 = ssub.s32 %s17, 2
    %s24 = sadd.s32 %s17, 1
    %s25 = ssub.s32 %s17, %s24
    %p26 = scmp.eq.s32.totalorder %s25, 0
    %s28 = sadd.s32 %s27, 1
    %s29 = scalar_select %p26, %s27, %s28
    %p32 = pneg %p26
    %p33 = scmp.eq.s32.totalorder %s17, 1
    %p34 = por %p32, %p33
    %p35 = scmp.ne.s32.totalorder %s27, %s30
    %p36 = scmp.eq.s32.totalorder %s17, 0
    %p37 = por %p35, %p36
    %p38 = scmp.ne.s32.totalorder %s27, %s30
    %p39 = scmp.eq.s32.totalorder %s22, 1
    %p40 = por %p38, %p39
    %p41 = scmp.ne.s32.totalorder %s30, %s31
    %p42 = scmp.eq.s32.totalorder %s22, 0
    %p43 = por %p41, %p42
    %p44 = scmp.ne.s32.totalorder %s30, %s31
    %p45 = scmp.eq.s32.totalorder %s23, 1
    %p46 = por %p44, %p45
    %p48 = scmp.ne.s32.totalorder %s31, %s47
    %p49 = scmp.eq.s32.totalorder %s23, 0
    %p50 = por %p48, %p49
    %s52 = sadd.s32 %s51, 1
    %p55 = scmp.eq.s32.totalorder %s17, 1
    %p56 = scmp.ne.s32.totalorder %s51, %s53
    %p57 = scmp.eq.s32.totalorder %s17, 0
    %p58 = por %p56, %p57
    %p59 = scmp.ne.s32.totalorder %s51, %s53
    %p60 = scmp.eq.s32.totalorder %s22, 1
    %p61 = por %p59, %p60
    %p62 = scmp.ne.s32.totalorder %s53, %s54
    %p63 = scmp.eq.s32.totalorder %s22, 0
    %p64 = por %p62, %p63
    %p65 = scmp.ne.s32.totalorder %s53, %s54
    %p66 = scmp.eq.s32.totalorder %s23, 1
    %p67 = por %p65, %p66
    %p69 = scmp.ne.s32.totalorder %s54, %s68
    %p70 = scmp.eq.s32.totalorder %s23, 0
    %p71 = por %p69, %p70
    %s73 = sadd.s32 %s72, 1
    %p76 = scmp.eq.s32.totalorder %s17, 1
    %p77 = scmp.ne.s32.totalorder %s72, %s74
    %p78 = scmp.eq.s32.totalorder %s17, 0
    %p79 = por %p77, %p78
    %p80 = scmp.ne.s32.totalorder %s72, %s74
    %p81 = scmp.eq.s32.totalorder %s22, 1
    %p82 = por %p80, %p81
    %p83 = scmp.ne.s32.totalorder %s74, %s75
    %p84 = scmp.eq.s32.totalorder %s22, 0
    %p85 = por %p83, %p84
    %p86 = scmp.ne.s32.totalorder %s74, %s75
    %p87 = scmp.eq.s32.totalorder %s23, 1
    %p88 = por %p86, %p87
    %p90 = scmp.ne.s32.totalorder %s75, %s89
    %p91 = scmp.eq.s32.totalorder %s23, 0
    %p92 = por %p90, %p91
    %s94 = sadd.s32 %s93, 1
    %p97 = scmp.eq.s32.totalorder %s17, 1
    %p98 = scmp.ne.s32.totalorder %s93, %s95
    %p99 = scmp.eq.s32.totalorder %s17, 0
    %p100 = por %p98, %p99
    %p101 = scmp.ne.s32.totalorder %s93, %s95
    %p102 = scmp.eq.s32.totalorder %s22, 1
    %p103 = por %p101, %p102
    %p104 = scmp.ne.s32.totalorder %s95, %s96
    %p105 = scmp.eq.s32.totalorder %s22, 0
    %p106 = por %p104, %p105
    %p107 = scmp.ne.s32.totalorder %s95, %s96
    %p108 = scmp.eq.s32.totalorder %s23, 1
    %p109 = por %p107, %p108
    %p111 = scmp.ne.s32.totalorder %s96, %s110
    %p112 = scmp.eq.s32.totalorder %s23, 0
    %p113 = por %p111, %p112
    %s115 = sadd.s32 %s114, 1
    %p118 = scmp.eq.s32.totalorder %s17, 1
    %p119 = scmp.ne.s32.totalorder %s114, %s116
    %p120 = scmp.eq.s32.totalorder %s17, 0
    %p121 = por %p119, %p120
    %p122 = scmp.ne.s32.totalorder %s114, %s116
    %p123 = scmp.eq.s32.totalorder %s22, 1
    %p124 = por %p122, %p123
    %p125 = scmp.ne.s32.totalorder %s116, %s117
    %p126 = scmp.eq.s32.totalorder %s22, 0
    %p127 = por %p125, %p126
    %p128 = scmp.ne.s32.totalorder %s116, %s117
    %p129 = scmp.eq.s32.totalorder %s23, 1
    %p130 = por %p128, %p129
    %p132 = scmp.ne.s32.totalorder %s117, %s131
    %p133 = scmp.eq.s32.totalorder %s23, 0
    %p134 = por %p132, %p133
    %s136 = sadd.s32 %s135, 1
    %p139 = scmp.eq.s32.totalorder %s17, 1
    %p140 = scmp.ne.s32.totalorder %s135, %s137
    %p141 = scmp.eq.s32.totalorder %s17, 0
    %p142 = por %p140, %p141
    %p143 = scmp.ne.s32.totalorder %s135, %s137
    %p144 = scmp.eq.s32.totalorder %s22, 1
    %p145 = por %p143, %p144
    %p146 = scmp.ne.s32.totalorder %s137, %s138
    %p147 = scmp.eq.s32.totalorder %s22, 0
    %p148 = por %p146, %p147
    %p149 = scmp.ne.s32.totalorder %s137, %s138
    %p150 = scmp.eq.s32.totalorder %s23, 1
    %p151 = por %p149, %p150
    %p153 = scmp.ne.s32.totalorder %s138, %s152
    %p154 = scmp.eq.s32.totalorder %s23, 0
    %p155 = por %p153, %p154
    %s157 = sadd.s32 %s156, 1
    %p160 = scmp.eq.s32.totalorder %s17, 1
    %p161 = scmp.ne.s32.totalorder %s156, %s158
    %p162 = scmp.eq.s32.totalorder %s17, 0
    %p163 = por %p161, %p162
    %p164 = scmp.ne.s32.totalorder %s156, %s158
    %p165 = scmp.eq.s32.totalorder %s22, 1
    %p166 = por %p164, %p165
    %p167 = scmp.ne.s32.totalorder %s158, %s159
    %p168 = scmp.eq.s32.totalorder %s22, 0
    %p169 = por %p167, %p168
    %p170 = scmp.ne.s32.totalorder %s158, %s159
    %p171 = scmp.eq.s32.totalorder %s23, 1
    %p172 = por %p170, %p171
    %p174 = scmp.ne.s32.totalorder %s159, %s173
    %p175 = scmp.eq.s32.totalorder %s23, 0
    %p176 = por %p174, %p175
    %s178 = sadd.s32 %s177, 1
    %p181 = scmp.eq.s32.totalorder %s17, 1
    %p182 = scmp.ne.s32.totalorder %s177, %s179
    %p183 = scmp.eq.s32.totalorder %s17, 0
    %p184 = por %p182, %p183
    %p185 = scmp.ne.s32.totalorder %s177, %s179
    %p186 = scmp.eq.s32.totalorder %s22, 1
    %p187 = por %p185, %p186
    %p188 = scmp.ne.s32.totalorder %s179, %s180
    %p189 = scmp.eq.s32.totalorder %s22, 0
    %p190 = por %p188, %p189
    %p191 = scmp.ne.s32.totalorder %s179, %s180
    %p192 = scmp.eq.s32.totalorder %s23, 1
    %p193 = por %p191, %p192
    %p195 = scmp.ne.s32.totalorder %s180, %s194
    %p196 = scmp.eq.s32.totalorder %s23, 0
    %p197 = por %p195, %p196
    %s199 = sadd.s32 %s198, 1
    %p202 = scmp.eq.s32.totalorder %s17, 1
    %p203 = scmp.ne.s32.totalorder %s198, %s200
    %p204 = scmp.eq.s32.totalorder %s17, 0
    %p205 = por %p203, %p204
    %p206 = scmp.ne.s32.totalorder %s198, %s200
    %p207 = scmp.eq.s32.totalorder %s22, 1
    %p208 = por %p206, %p207
    %p209 = scmp.ne.s32.totalorder %s200, %s201
    %p210 = scmp.eq.s32.totalorder %s22, 0
    %p211 = por %p209, %p210
    %p212 = scmp.ne.s32.totalorder %s200, %s201
    %p213 = scmp.eq.s32.totalorder %s23, 1
    %p214 = por %p212, %p213
    %p216 = scmp.ne.s32.totalorder %s201, %s215
    %p217 = scmp.eq.s32.totalorder %s23, 0
    %p218 = por %p216, %p217
    %s219 = ssub.s32 %s17, %s24
    %p220 = scmp.eq.s32.totalorder %s219, 0
    %s222 = sadd.s32 %s221, 1
    %s223 = scalar_select %p220, %s221, %s222
    %p226 = pneg %p220
    %p227 = scmp.eq.s32.totalorder %s17, 1
    %p228 = por %p226, %p227
    %p229 = scmp.ne.s32.totalorder %s221, %s224
    %p230 = scmp.eq.s32.totalorder %s17, 0
    %p231 = por %p229, %p230
    %p232 = scmp.ne.s32.totalorder %s221, %s224
    %p233 = scmp.eq.s32.totalorder %s22, 1
    %p234 = por %p232, %p233
    %p235 = scmp.ne.s32.totalorder %s224, %s225
    %p236 = scmp.eq.s32.totalorder %s22, 0
    %p237 = por %p235, %p236
    %p238 = scmp.ne.s32.totalorder %s224, %s225
    %p239 = scmp.eq.s32.totalorder %s23, 1
    %p240 = por %p238, %p239
    %p242 = scmp.ne.s32.totalorder %s225, %s241
    %p243 = scmp.eq.s32.totalorder %s23, 0
    %p244 = por %p242, %p243
    %p245 = scmp.le.s32.totalorder 1, %s17
    %p246 = scmp.lt.s32.totalorder %s17, 3
    %p247 = pnand %p245, %p246
    %p248 = pneg %p247
    // Predicated region
    $region9: #{eegnet_forward.1} parent=5 // pred_check
      _
    $region10: #{eegnet_forward.1} parent=5 // pred_check_branch
      %250 = sbr.rel (%p247) target = $region12
    $region11: #{eegnet_forward.1} parent=5 // pred_region
      %s251 = ssub.s32 %s17, 1
      // Predicated region
      $region13: #{eegnet_forward.1} parent=11 // pred_check
        %p252 = pneg %p64
      $region14: #{eegnet_forward.1} parent=11 // pred_check_branch
        %254 = sbr.rel (%p252) target = $region16
      $region15: #{eegnet_forward.1} parent=11 // pred_region
        _
      $region16: #{eegnet_forward.1} parent=11 // pred_fallthru
        _
      // Predicated region
      $region17: #{eegnet_forward.1} parent=11 // pred_check
        %p255 = pneg %p85
      $region18: #{eegnet_forward.1} parent=11 // pred_check_branch
        %257 = sbr.rel (%p255) target = $region20
      $region19: #{eegnet_forward.1} parent=11 // pred_region
        _
      $region20: #{eegnet_forward.1} parent=11 // pred_fallthru
        _
      // Predicated region
      $region21: #{eegnet_forward.1} parent=11 // pred_check
        %p258 = pneg %p106
      $region22: #{eegnet_forward.1} parent=11 // pred_check_branch
        %260 = sbr.rel (%p258) target = $region24
      $region23: #{eegnet_forward.1} parent=11 // pred_region
        _
      $region24: #{eegnet_forward.1} parent=11 // pred_fallthru
        _
      // Predicated region
      $region25: #{eegnet_forward.1} parent=11 // pred_check
        %p261 = pneg %p127
      $region26: #{eegnet_forward.1} parent=11 // pred_check_branch
        %263 = sbr.rel (%p261) target = $region28
      $region27: #{eegnet_forward.1} parent=11 // pred_region
        _
      $region28: #{eegnet_forward.1} parent=11 // pred_fallthru
        _
      // Predicated region
      $region29: #{eegnet_forward.1} parent=11 // pred_check
        %p264 = pneg %p148
      $region30: #{eegnet_forward.1} parent=11 // pred_check_branch
        %266 = sbr.rel (%p264) target = $region32
      $region31: #{eegnet_forward.1} parent=11 // pred_region
        _
      $region32: #{eegnet_forward.1} parent=11 // pred_fallthru
        _
      // Predicated region
      $region33: #{eegnet_forward.1} parent=11 // pred_check
        %p267 = pneg %p169
      $region34: #{eegnet_forward.1} parent=11 // pred_check_branch
        %269 = sbr.rel (%p267) target = $region36
      $region35: #{eegnet_forward.1} parent=11 // pred_region
        _
      $region36: #{eegnet_forward.1} parent=11 // pred_fallthru
        _
      // Predicated region
      $region37: #{eegnet_forward.1} parent=11 // pred_check
        %p270 = pneg %p190
      $region38: #{eegnet_forward.1} parent=11 // pred_check_branch
        %272 = sbr.rel (%p270) target = $region40
      $region39: #{eegnet_forward.1} parent=11 // pred_region
        _
      $region40: #{eegnet_forward.1} parent=11 // pred_fallthru
        _
      // Predicated region
      $region41: #{eegnet_forward.1} parent=11 // pred_check
        %p273 = pneg %p211
      $region42: #{eegnet_forward.1} parent=11 // pred_check_branch
        %275 = sbr.rel (%p273) target = $region44
      $region43: #{eegnet_forward.1} parent=11 // pred_region
        _
      $region44: #{eegnet_forward.1} parent=11 // pred_fallthru
        _
    $region12: #{eegnet_forward.1} parent=5 // pred_fallthru
      _
    %p276 = scmp.lt.s32.totalorder %s17, 2
    // Predicated region
    $region45: #{eegnet_forward.1} parent=5 // pred_check
      %p277 = pneg %p276
    $region46: #{eegnet_forward.1} parent=5 // pred_check_branch
      %279 = sbr.rel (%p277) target = $region48
    $region47: #{eegnet_forward.1} parent=5 // pred_region
      // Predicated region
      $region49: #{eegnet_forward.1} parent=47 // pred_check
        %p280 = pneg %p37
      $region50: #{eegnet_forward.1} parent=47 // pred_check_branch
        %282 = sbr.rel (%p280) target = $region52
      $region51: #{eegnet_forward.1} parent=47 // pred_region
        %p283 = scmp.lt.s32.totalorder %s17, 1
        %s284 = scalar_select %p283, %s17, 1
        %s285 = smul.addr %s284, 4
        %s286 = smul.addr %s285, 8
        %s287 = scalar_lea.vmem %s0, %s286
      $region52: #{eegnet_forward.1} parent=47 // pred_fallthru
        _
    $region48: #{eegnet_forward.1} parent=5 // pred_fallthru
      _
    %p288 = scmp.le.s32.totalorder 1, %s17
    %p289 = scmp.lt.s32.totalorder %s17, 3
    %p290 = pnand %p288, %p289
    %p291 = pneg %p290
    // Predicated region
    $region53: #{eegnet_forward.1} parent=5 // pred_check
      _
    $region54: #{eegnet_forward.1} parent=5 // pred_check_branch
      %293 = sbr.rel (%p290) target = $region56
    $region55: #{eegnet_forward.1} parent=5 // pred_region
      %s294 = ssub.s32 %s17, 1
      %p295 = scmp.lt.s32.totalorder %s22, 1
      %s296 = scalar_select %p295, %s22, 1
      %s297 = smul.addr %s296, 4
      %s298 = smul.addr %s297, 8
      %s299 = scalar_lea.vmem %s0, %s298
      %p300 = pneg %p43
      %p301 = pneg %p40
      %p302 = pneg %p64
      %p303 = pneg %p61
      %p304 = pneg %p85
      %p305 = pneg %p82
      %p306 = pneg %p106
      %p307 = pneg %p103
      %p308 = pneg %p127
      %p309 = pneg %p124
      %p310 = pneg %p148
      %p311 = pneg %p145
      %p312 = pneg %p169
      %p313 = pneg %p166
      %p314 = pneg %p190
      %p315 = pneg %p187
      %p316 = pneg %p211
      %p317 = pneg %p208
      %p318 = pneg %p237
      %p319 = pneg %p234
      %p320 = scmp.lt.s32.totalorder %s22, 1
      %s321 = scalar_select %p320, %s22, 1
      %s322 = smul.addr %s321, 8
      %s323 = scalar_lea.vmem %s9, %s322
      %p324 = scmp.lt.s32.totalorder %s22, 1
      %s325 = scalar_select %p324, %s22, 1
      %s326 = smul.addr %s325, 4
      %s327 = smul.addr %s326, 8
      %s328 = scalar_lea.vmem %s0, %s327
      %p329 = scmp.lt.s32.totalorder %s22, 1
      %s330 = scalar_select %p329, %s22, 1
      %s331 = smul.addr %s330, 8
      %s332 = scalar_lea.vmem %s9, %s331
      %v333 = vld [vmem:[%s328] sm:$0xff]
      %v334 = vld [vmem:[%s328 + $0x8] sm:$0xff]
      %v335 = vld [vmem:[%s328 + $0x10] sm:$0xff]
      %v336 = vld [vmem:[%s328 + $0x18] sm:$0xff]
      %v337 = vld [vmem:[%s1] sm:$0xff]
      %v338 = vld [vmem:[%s1 + $0x8] sm:$0xff]
      %v339 = vld [vmem:[%s1 + $0x10] sm:$0xff]
      %v340 = vld [vmem:[%s1 + $0x18] sm:$0xff]
      %v341 = vld [vmem:[%s1 + $0x20] sm:$0xff]
      %v342 = vld [vmem:[%s1 + $0x28] sm:$0xff]
      %v343 = vld [vmem:[%s1 + $0x30] sm:$0xff]
      %v344 = vld [vmem:[%s1 + $0x38] sm:$0xff]
      %v345 = vld [vmem:[%s1 + $0x40] sm:$0xff]
      %v346 = vld [vmem:[%s1 + $0x48] sm:$0xff]
      %v347 = vld [vmem:[%s1 + $0x50] sm:$0xff]
      %v348 = vld [vmem:[%s1 + $0x58] sm:$0xff]
      %v349 = vld [vmem:[%s1 + $0x60] sm:$0xff]
      %v350 = vld [vmem:[%s1 + $0x68] sm:$0xff]
      %v351 = vld [vmem:[%s1 + $0x70] sm:$0xff]
      %v352 = vld [vmem:[%s1 + $0x78] sm:$0xff]
      %v353 = vld [vmem:[%s1 + $0x80] sm:$0xff]
      %v354 = vld [vmem:[%s1 + $0x88] sm:$0xff]
      %v355 = vld [vmem:[%s1 + $0x90] sm:$0xff]
      %v356 = vld [vmem:[%s1 + $0x98] sm:$0xff]
      %v357 = vld [vmem:[%s1 + $0xa0] sm:$0xff]
      %v358 = vld [vmem:[%s1 + $0xa8] sm:$0xff]
      %v359 = vld [vmem:[%s1 + $0xb0] sm:$0xff]
      %v360 = vld [vmem:[%s1 + $0xb8] sm:$0xff]
      %v361 = vld [vmem:[%s1 + $0xc0] sm:$0xff]
      %v362 = vld [vmem:[%s1 + $0xc8] sm:$0xff]
      %v363 = vld [vmem:[%s1 + $0xd0] sm:$0xff]
      %v364 = vld [vmem:[%s1 + $0xd8] sm:$0xff]
      %v365 = vld [vmem:[%s1 + $0xe0] sm:$0xff]
      %v366 = vld [vmem:[%s1 + $0xe8] sm:$0xff]
      %v367 = vld [vmem:[%s1 + $0xf0] sm:$0xff]
      %v368 = vld [vmem:[%s1 + $0xf8] sm:$0xff]
      %v369 = vld [vmem:[%s1 + $0x100] sm:$0xff]
      %v370 = vld [vmem:[%s1 + $0x108] sm:$0xff]
      %v371 = vld [vmem:[%s1 + $0x110] sm:$0xff]
      %v372 = vld [vmem:[%s1 + $0x118] sm:$0xff]
      %v373 = vld [vmem:[%s1 + $0x120] sm:$0xff]
      %v374 = vld [vmem:[%s1 + $0x128] sm:$0xff]
      %v375 = vld [vmem:[%s1 + $0x130] sm:$0xff]
      %v376 = vld [vmem:[%s1 + $0x138] sm:$0xff]
      %v377 = vld [vmem:[%s1 + $0x140] sm:$0xff]
      %v378 = vld [vmem:[%s1 + $0x148] sm:$0xff]
      %v379 = vld [vmem:[%s1 + $0x150] sm:$0xff]
      %v380 = vld [vmem:[%s1 + $0x158] sm:$0xff]
      %v381 = vld [vmem:[%s1 + $0x160] sm:$0xff]
      %v382 = vld [vmem:[%s1 + $0x168] sm:$0xff]
      %v383 = vld [vmem:[%s1 + $0x170] sm:$0xff]
      %v384 = vld [vmem:[%s1 + $0x178] sm:$0xff]
      %v385 = vld [vmem:[%s1 + $0x180] sm:$0xff]
      %v386 = vld [vmem:[%s1 + $0x188] sm:$0xff]
      %v387 = vld [vmem:[%s1 + $0x190] sm:$0xff]
      %v388 = vld [vmem:[%s1 + $0x198] sm:$0xff]
      %v389 = vld [vmem:[%s1 + $0x1a0] sm:$0xff]
      %v390 = vld [vmem:[%s1 + $0x1a8] sm:$0xff]
      %v391 = vld [vmem:[%s1 + $0x1b0] sm:$0xff]
      %v392 = vld [vmem:[%s1 + $0x1b8] sm:$0xff]
      %v393 = vld [vmem:[%s1 + $0x1c0] sm:$0xff]
      %v394 = vld [vmem:[%s1 + $0x1c8] sm:$0xff]
      %v395 = vld [vmem:[%s1 + $0x1d0] sm:$0xff]
      %v396 = vld [vmem:[%s1 + $0x1d8] sm:$0xff]
      %v397 = vld [vmem:[%s1 + $0x1e0] sm:$0xff]
      %v398 = vld [vmem:[%s1 + $0x1e8] sm:$0xff]
      %v399 = vld [vmem:[%s1 + $0x1f0] sm:$0xff]
      %v400 = vld [vmem:[%s1 + $0x1f8] sm:$0xff]
      %v401 = vld [vmem:[%s1 + $0x200] sm:$0xff]
      %v402 = vld [vmem:[%s1 + $0x208] sm:$0xff]
      %v403 = vld [vmem:[%s1 + $0x210] sm:$0xff]
      %v404 = vld [vmem:[%s1 + $0x218] sm:$0xff]
      %v405 = vld [vmem:[%s1 + $0x220] sm:$0xff]
      %v406 = vld [vmem:[%s1 + $0x228] sm:$0xff]
      %v407 = vld [vmem:[%s1 + $0x230] sm:$0xff]
      %v408 = vld [vmem:[%s1 + $0x238] sm:$0xff]
      %v409 = vld [vmem:[%s1 + $0x240] sm:$0xff]
      %v410 = vld [vmem:[%s1 + $0x248] sm:$0xff]
      %v411 = vld [vmem:[%s1 + $0x250] sm:$0xff]
      %v412 = vld [vmem:[%s1 + $0x258] sm:$0xff]
      %v413 = vld [vmem:[%s1 + $0x260] sm:$0xff]
      %v414 = vld [vmem:[%s1 + $0x268] sm:$0xff]
      %v415 = vld [vmem:[%s1 + $0x270] sm:$0xff]
      %v416 = vld [vmem:[%s1 + $0x278] sm:$0xff]
      %v417 = vld [vmem:[%s1 + $0x280] sm:$0xff]
      %v418 = vld [vmem:[%s1 + $0x288] sm:$0xff]
      %v419 = vld [vmem:[%s1 + $0x290] sm:$0xff]
      %v420 = vld [vmem:[%s1 + $0x298] sm:$0xff]
      %v421 = vld [vmem:[%s1 + $0x2a0] sm:$0xff]
      %v422 = vld [vmem:[%s1 + $0x2a8] sm:$0xff]
      %v423 = vld [vmem:[%s1 + $0x2b0] sm:$0xff]
      %v424 = vld [vmem:[%s1 + $0x2b8] sm:$0xff]
      %v425 = vld [vmem:[%s1 + $0x2c0] sm:$0xff]
      %v426 = vld [vmem:[%s1 + $0x2c8] sm:$0xff]
      %v427 = vld [vmem:[%s1 + $0x2d0] sm:$0xff]
      %v428 = vld [vmem:[%s1 + $0x2d8] sm:$0xff]
      %v429 = vld [vmem:[%s1 + $0x2e0] sm:$0xff]
      %v430 = vld [vmem:[%s1 + $0x2e8] sm:$0xff]
      %v431 = vld [vmem:[%s1 + $0x2f0] sm:$0xff]
      %v432 = vld [vmem:[%s1 + $0x2f8] sm:$0xff]
      %v433 = vld [vmem:[%s1 + $0x300] sm:$0xff]
      %v434 = vld [vmem:[%s1 + $0x308] sm:$0xff]
      %v435 = vld [vmem:[%s1 + $0x310] sm:$0xff]
      %v436 = vld [vmem:[%s1 + $0x318] sm:$0xff]
      %v437 = vld [vmem:[%s1 + $0x320] sm:$0xff]
      %v438 = vld [vmem:[%s1 + $0x328] sm:$0xff]
      %v439 = vld [vmem:[%s1 + $0x330] sm:$0xff]
      %v440 = vld [vmem:[%s1 + $0x338] sm:$0xff]
      %v441 = vld [vmem:[%s1 + $0x340] sm:$0xff]
      %v442 = vld [vmem:[%s1 + $0x348] sm:$0xff]
      %v443 = vld [vmem:[%s1 + $0x350] sm:$0xff]
      %v444 = vld [vmem:[%s1 + $0x358] sm:$0xff]
      %v445 = vld [vmem:[%s1 + $0x360] sm:$0xff]
      %v446 = vld [vmem:[%s1 + $0x368] sm:$0xff]
      %v447 = vld [vmem:[%s1 + $0x370] sm:$0xff]
      %v448 = vld [vmem:[%s1 + $0x378] sm:$0xff]
      %v449 = vld [vmem:[%s1 + $0x380] sm:$0xff]
      %v450 = vld [vmem:[%s1 + $0x388] sm:$0xff]
      %v451 = vld [vmem:[%s1 + $0x390] sm:$0xff]
      %v452 = vld [vmem:[%s1 + $0x398] sm:$0xff]
      %v453 = vld [vmem:[%s1 + $0x3a0] sm:$0xff]
      %v454 = vld [vmem:[%s1 + $0x3a8] sm:$0xff]
      %v455 = vld [vmem:[%s1 + $0x3b0] sm:$0xff]
      %v456 = vld [vmem:[%s1 + $0x3b8] sm:$0xff]
      %v457 = vld [vmem:[%s1 + $0x3c0] sm:$0xff]
      %v458 = vld [vmem:[%s1 + $0x3c8] sm:$0xff]
      %v459 = vld [vmem:[%s1 + $0x3d0] sm:$0xff]
      %v460 = vld [vmem:[%s1 + $0x3d8] sm:$0xff]
      %v461 = vld [vmem:[%s1 + $0x3e0] sm:$0xff]
      %v462 = vld [vmem:[%s1 + $0x3e8] sm:$0xff]
      %v463 = vld [vmem:[%s1 + $0x3f0] sm:$0xff]
      %v464 = vld [vmem:[%s1 + $0x3f8] sm:$0xff]
      %v465 = vld [vmem:[%s1 + $0x400] sm:$0xff]
      %v466 = vld [vmem:[%s1 + $0x408] sm:$0xff]
      %v467 = vld [vmem:[%s1 + $0x410] sm:$0xff]
      %v468 = vld [vmem:[%s1 + $0x418] sm:$0xff]
      %v469 = vld [vmem:[%s1 + $0x420] sm:$0xff]
      %v470 = vld [vmem:[%s1 + $0x428] sm:$0xff]
      %v471 = vld [vmem:[%s1 + $0x430] sm:$0xff]
      %v472 = vld [vmem:[%s1 + $0x438] sm:$0xff]
      %v473 = vld [vmem:[%s1 + $0x440] sm:$0xff]
      %v474 = vld [vmem:[%s1 + $0x448] sm:$0xff]
      %v475 = vld [vmem:[%s1 + $0x450] sm:$0xff]
      %v476 = vld [vmem:[%s1 + $0x458] sm:$0xff]
      %v477 = vld [vmem:[%s1 + $0x460] sm:$0xff]
      %v478 = vld [vmem:[%s1 + $0x468] sm:$0xff]
      %v479 = vld [vmem:[%s1 + $0x470] sm:$0xff]
      %v480 = vld [vmem:[%s1 + $0x478] sm:$0xff]
      %v481 = vld [vmem:[%s1 + $0x480] sm:$0xff]
      %v482 = vld [vmem:[%s1 + $0x488] sm:$0xff]
      %v483 = vld [vmem:[%s1 + $0x490] sm:$0xff]
      %v484 = vld [vmem:[%s1 + $0x498] sm:$0xff]
      %v485 = vld [vmem:[%s1 + $0x4a0] sm:$0xff]
      %v486 = vld [vmem:[%s1 + $0x4a8] sm:$0xff]
      %v487 = vld [vmem:[%s1 + $0x4b0] sm:$0xff]
      %v488 = vld [vmem:[%s1 + $0x4b8] sm:$0xff]
      %v489 = vld [vmem:[%s1 + $0x4c0] sm:$0xff]
      %v490 = vld [vmem:[%s1 + $0x4c8] sm:$0xff]
      %v491 = vld [vmem:[%s1 + $0x4d0] sm:$0xff]
      %v492 = vld [vmem:[%s1 + $0x4d8] sm:$0xff]
      %v493 = vld [vmem:[%s1 + $0x4e0] sm:$0xff]
      %v494 = vld [vmem:[%s1 + $0x4e8] sm:$0xff]
      %v495 = vld [vmem:[%s1 + $0x4f0] sm:$0xff]
      %v496 = vld [vmem:[%s1 + $0x4f8] sm:$0xff]
      %v497 = vld [vmem:[%s1 + $0x500] sm:$0xff]
      %v498 = vld [vmem:[%s1 + $0x508] sm:$0xff]
      %v499 = vld [vmem:[%s1 + $0x510] sm:$0xff]
      %v500 = vld [vmem:[%s1 + $0x518] sm:$0xff]
      %v501 = vld [vmem:[%s1 + $0x520] sm:$0xff]
      %v502 = vld [vmem:[%s1 + $0x528] sm:$0xff]
      %v503 = vld [vmem:[%s1 + $0x530] sm:$0xff]
      %v504 = vld [vmem:[%s1 + $0x538] sm:$0xff]
      %v505 = vld [vmem:[%s1 + $0x540] sm:$0xff]
      %v506 = vld [vmem:[%s1 + $0x548] sm:$0xff]
      %v507 = vld [vmem:[%s1 + $0x550] sm:$0xff]
      %v508 = vld [vmem:[%s1 + $0x558] sm:$0xff]
      %v509 = vld [vmem:[%s1 + $0x560] sm:$0xff]
      %v510 = vld [vmem:[%s1 + $0x568] sm:$0xff]
      %v511 = vld [vmem:[%s1 + $0x570] sm:$0xff]
      %v512 = vld [vmem:[%s1 + $0x578] sm:$0xff]
      %v513 = vld [vmem:[%s1 + $0x580] sm:$0xff]
      %v514 = vld [vmem:[%s1 + $0x588] sm:$0xff]
      %v515 = vld [vmem:[%s1 + $0x590] sm:$0xff]
      %v516 = vld [vmem:[%s1 + $0x598] sm:$0xff]
      %v517 = vld [vmem:[%s1 + $0x5a0] sm:$0xff]
      %v518 = vld [vmem:[%s1 + $0x5a8] sm:$0xff]
      %v519 = vld [vmem:[%s1 + $0x5b0] sm:$0xff]
      %v520 = vld [vmem:[%s1 + $0x5b8] sm:$0xff]
      %v521 = vld [vmem:[%s1 + $0x5c0] sm:$0xff]
      %v522 = vld [vmem:[%s1 + $0x5c8] sm:$0xff]
      %v523 = vld [vmem:[%s1 + $0x5d0] sm:$0xff]
      %v524 = vld [vmem:[%s1 + $0x5d8] sm:$0xff]
      %v525 = vld [vmem:[%s1 + $0x5e0] sm:$0xff]
      %v526 = vld [vmem:[%s1 + $0x5e8] sm:$0xff]
      %v527 = vld [vmem:[%s1 + $0x5f0] sm:$0xff]
      %v528 = vld [vmem:[%s1 + $0x5f8] sm:$0xff]
      %v529 = vld [vmem:[%s1 + $0x600] sm:$0xff]
      %v530 = vld [vmem:[%s1 + $0x608] sm:$0xff]
      %v531 = vld [vmem:[%s1 + $0x610] sm:$0xff]
      %v532 = vld [vmem:[%s1 + $0x618] sm:$0xff]
      %v533 = vld [vmem:[%s1 + $0x620] sm:$0xff]
      %v534 = vld [vmem:[%s1 + $0x628] sm:$0xff]
      %v535 = vld [vmem:[%s1 + $0x630] sm:$0xff]
      %v536 = vld [vmem:[%s1 + $0x638] sm:$0xff]
      %v537 = vld [vmem:[%s1 + $0x640] sm:$0xff]
      %v538 = vld [vmem:[%s1 + $0x648] sm:$0xff]
      %v539 = vld [vmem:[%s1 + $0x650] sm:$0xff]
      %v540 = vld [vmem:[%s1 + $0x658] sm:$0xff]
      %v541 = vld [vmem:[%s1 + $0x660] sm:$0xff]
      %v542 = vld [vmem:[%s1 + $0x668] sm:$0xff]
      %v543 = vld [vmem:[%s1 + $0x670] sm:$0xff]
      %v544 = vld [vmem:[%s1 + $0x678] sm:$0xff]
      %v545 = vld [vmem:[%s1 + $0x680] sm:$0xff]
      %v546 = vld [vmem:[%s1 + $0x688] sm:$0xff]
      %v547 = vld [vmem:[%s1 + $0x690] sm:$0xff]
      %v548 = vld [vmem:[%s1 + $0x698] sm:$0xff]
      %v549 = vld [vmem:[%s1 + $0x6a0] sm:$0xff]
      %v550 = vld [vmem:[%s1 + $0x6a8] sm:$0xff]
      %v551 = vld [vmem:[%s1 + $0x6b0] sm:$0xff]
      %v552 = vld [vmem:[%s1 + $0x6b8] sm:$0xff]
      %v553 = vld [vmem:[%s1 + $0x6c0] sm:$0xff]
      %v554 = vld [vmem:[%s1 + $0x6c8] sm:$0xff]
      %v555 = vld [vmem:[%s1 + $0x6d0] sm:$0xff]
      %v556 = vld [vmem:[%s1 + $0x6d8] sm:$0xff]
      %v557 = vld [vmem:[%s1 + $0x6e0] sm:$0xff]
      %v558 = vld [vmem:[%s1 + $0x6e8] sm:$0xff]
      %v559 = vld [vmem:[%s1 + $0x6f0] sm:$0xff]
      %v560 = vld [vmem:[%s1 + $0x6f8] sm:$0xff]
      %v561 = vld [vmem:[%s1 + $0x700] sm:$0xff]
      %v562 = vld [vmem:[%s1 + $0x708] sm:$0xff]
      %v563 = vld [vmem:[%s1 + $0x710] sm:$0xff]
      %v564 = vld [vmem:[%s1 + $0x718] sm:$0xff]
      %v565 = vld [vmem:[%s1 + $0x720] sm:$0xff]
      %v566 = vld [vmem:[%s1 + $0x728] sm:$0xff]
      %v567 = vld [vmem:[%s1 + $0x730] sm:$0xff]
      %v568 = vld [vmem:[%s1 + $0x738] sm:$0xff]
      %v569 = vld [vmem:[%s1 + $0x740] sm:$0xff]
      %v570 = vld [vmem:[%s1 + $0x748] sm:$0xff]
      %v571 = vld [vmem:[%s1 + $0x750] sm:$0xff]
      %v572 = vld [vmem:[%s1 + $0x758] sm:$0xff]
      %v573 = vld [vmem:[%s1 + $0x760] sm:$0xff]
      %v574 = vld [vmem:[%s1 + $0x768] sm:$0xff]
      %v575 = vld [vmem:[%s1 + $0x770] sm:$0xff]
      %v576 = vld [vmem:[%s1 + $0x778] sm:$0xff]
      %v577 = vld [vmem:[%s1 + $0x780] sm:$0xff]
      %v578 = vld [vmem:[%s1 + $0x788] sm:$0xff]
      %v579 = vld [vmem:[%s1 + $0x790] sm:$0xff]
      %v580 = vld [vmem:[%s1 + $0x798] sm:$0xff]
      %v581 = vld [vmem:[%s1 + $0x7a0] sm:$0xff]
      %v582 = vld [vmem:[%s1 + $0x7a8] sm:$0xff]
      %v583 = vld [vmem:[%s1 + $0x7b0] sm:$0xff]
      %v584 = vld [vmem:[%s1 + $0x7b8] sm:$0xff]
      %v585 = vld [vmem:[%s1 + $0x7c0] sm:$0xff]
      %v586 = vld [vmem:[%s1 + $0x7c8] sm:$0xff]
      %v587 = vld [vmem:[%s1 + $0x7d0] sm:$0xff]
      %v588 = vld [vmem:[%s1 + $0x7d8] sm:$0xff]
      %v589 = vld [vmem:[%s1 + $0x7e0] sm:$0xff]
      %v590 = vld [vmem:[%s1 + $0x7e8] sm:$0xff]
      %v591 = vld [vmem:[%s1 + $0x7f0] sm:$0xff]
      %v592 = vld [vmem:[%s1 + $0x7f8] sm:$0xff]
      %v593 = vld [vmem:[%s1 + $0x800] sm:$0xff]
      %v594 = vld [vmem:[%s1 + $0x808] sm:$0xff]
      %v595 = vld [vmem:[%s1 + $0x810] sm:$0xff]
      %v596 = vld [vmem:[%s1 + $0x818] sm:$0xff]
      %v597 = vld [vmem:[%s1 + $0x820] sm:$0xff]
      %v598 = vld [vmem:[%s1 + $0x828] sm:$0xff]
      %v599 = vld [vmem:[%s1 + $0x830] sm:$0xff]
      %v600 = vld [vmem:[%s1 + $0x838] sm:$0xff]
      %v601 = vld [vmem:[%s1 + $0x840] sm:$0xff]
      %v602 = vld [vmem:[%s1 + $0x848] sm:$0xff]
      %v603 = vld [vmem:[%s1 + $0x850] sm:$0xff]
      %v604 = vld [vmem:[%s1 + $0x858] sm:$0xff]
      %v605 = vld [vmem:[%s1 + $0x860] sm:$0xff]
      %v606 = vld [vmem:[%s1 + $0x868] sm:$0xff]
      %v607 = vld [vmem:[%s1 + $0x870] sm:$0xff]
      %v608 = vld [vmem:[%s1 + $0x878] sm:$0xff]
      %v609 = vld [vmem:[%s1 + $0x880] sm:$0xff]
      %v610 = vld [vmem:[%s1 + $0x888] sm:$0xff]
      %v611 = vld [vmem:[%s1 + $0x890] sm:$0xff]
      %v612 = vld [vmem:[%s1 + $0x898] sm:$0xff]
      %v613 = vld [vmem:[%s1 + $0x8a0] sm:$0xff]
      %v614 = vld [vmem:[%s1 + $0x8a8] sm:$0xff]
      %v615 = vld [vmem:[%s1 + $0x8b0] sm:$0xff]
      %v616 = vld [vmem:[%s1 + $0x8b8] sm:$0xff]
      %v617 = vld [vmem:[%s1 + $0x8c0] sm:$0xff]
      %v618 = vld [vmem:[%s1 + $0x8c8] sm:$0xff]
      %v619 = vld [vmem:[%s1 + $0x8d0] sm:$0xff]
      %v620 = vld [vmem:[%s1 + $0x8d8] sm:$0xff]
      %v621 = vld [vmem:[%s1 + $0x8e0] sm:$0xff]
      %v622 = vld [vmem:[%s1 + $0x8e8] sm:$0xff]
      %v623 = vld [vmem:[%s1 + $0x8f0] sm:$0xff]
      %v624 = vld [vmem:[%s1 + $0x8f8] sm:$0xff]
      %v625 = vld [vmem:[%s1 + $0x900] sm:$0xff]
      %v626 = vld [vmem:[%s1 + $0x908] sm:$0xff]
      %v627 = vld [vmem:[%s1 + $0x910] sm:$0xff]
      %v628 = vld [vmem:[%s1 + $0x918] sm:$0xff]
      %v629 = vld [vmem:[%s1 + $0x920] sm:$0xff]
      %v630 = vld [vmem:[%s1 + $0x928] sm:$0xff]
      %v631 = vld [vmem:[%s1 + $0x930] sm:$0xff]
      %v632 = vld [vmem:[%s1 + $0x938] sm:$0xff]
      %v633 = vld [vmem:[%s1 + $0x940] sm:$0xff]
      %v634 = vld [vmem:[%s1 + $0x948] sm:$0xff]
      %v635 = vld [vmem:[%s1 + $0x950] sm:$0xff]
      %v636 = vld [vmem:[%s1 + $0x958] sm:$0xff]
      %v637 = vld [vmem:[%s1 + $0x960] sm:$0xff]
      %v638 = vld [vmem:[%s1 + $0x968] sm:$0xff]
      %v639 = vld [vmem:[%s1 + $0x970] sm:$0xff]
      %v640 = vld [vmem:[%s1 + $0x978] sm:$0xff]
      %v641 = vld [vmem:[%s1 + $0x980] sm:$0xff]
      %v642 = vld [vmem:[%s1 + $0x988] sm:$0xff]
      %v643 = vld [vmem:[%s1 + $0x990] sm:$0xff]
      %v644 = vld [vmem:[%s1 + $0x998] sm:$0xff]
      %v645 = vld [vmem:[%s1 + $0x9a0] sm:$0xff]
      %v646 = vld [vmem:[%s1 + $0x9a8] sm:$0xff]
      %v647 = vld [vmem:[%s1 + $0x9b0] sm:$0xff]
      %v648 = vld [vmem:[%s1 + $0x9b8] sm:$0xff]
      %v649 = vld [vmem:[%s1 + $0x9c0] sm:$0xff]
      %v650 = vld [vmem:[%s1 + $0x9c8] sm:$0xff]
      %v651 = vld [vmem:[%s1 + $0x9d0] sm:$0xff]
      %v652 = vld [vmem:[%s1 + $0x9d8] sm:$0xff]
      %v653 = vld [vmem:[%s1 + $0x9e0] sm:$0xff]
      %v654 = vld [vmem:[%s1 + $0x9e8] sm:$0xff]
      %v655 = vld [vmem:[%s1 + $0x9f0] sm:$0xff]
      %v656 = vld [vmem:[%s1 + $0x9f8] sm:$0xff]
      %v657 = vld [vmem:[%s1 + $0xa00] sm:$0xff]
      %v658 = vld [vmem:[%s1 + $0xa08] sm:$0xff]
      %v659 = vld [vmem:[%s1 + $0xa10] sm:$0xff]
      %v660 = vld [vmem:[%s1 + $0xa18] sm:$0xff]
      %v661 = vld [vmem:[%s1 + $0xa20] sm:$0xff]
      %v662 = vld [vmem:[%s1 + $0xa28] sm:$0xff]
      %v663 = vld [vmem:[%s1 + $0xa30] sm:$0xff]
      %v664 = vld [vmem:[%s1 + $0xa38] sm:$0xff]
      %v665 = vld [vmem:[%s1 + $0xa40] sm:$0xff]
      %v666 = vld [vmem:[%s1 + $0xa48] sm:$0xff]
      %v667 = vld [vmem:[%s1 + $0xa50] sm:$0xff]
      %v668 = vld [vmem:[%s1 + $0xa58] sm:$0xff]
      %v669 = vld [vmem:[%s1 + $0xa60] sm:$0xff]
      %v670 = vld [vmem:[%s1 + $0xa68] sm:$0xff]
      %v671 = vld [vmem:[%s1 + $0xa70] sm:$0xff]
      %v672 = vld [vmem:[%s1 + $0xa78] sm:$0xff]
      %v673 = vld [vmem:[%s1 + $0xa80] sm:$0xff]
      %v674 = vld [vmem:[%s1 + $0xa88] sm:$0xff]
      %v675 = vld [vmem:[%s1 + $0xa90] sm:$0xff]
      %v676 = vld [vmem:[%s1 + $0xa98] sm:$0xff]
      %v677 = vld [vmem:[%s1 + $0xaa0] sm:$0xff]
      %v678 = vld [vmem:[%s1 + $0xaa8] sm:$0xff]
      %v679 = vld [vmem:[%s1 + $0xab0] sm:$0xff]
      %v680 = vld [vmem:[%s1 + $0xab8] sm:$0xff]
      %v681 = vld [vmem:[%s1 + $0xac0] sm:$0xff]
      %v682 = vld [vmem:[%s1 + $0xac8] sm:$0xff]
      %v683 = vld [vmem:[%s1 + $0xad0] sm:$0xff]
      %v684 = vld [vmem:[%s1 + $0xad8] sm:$0xff]
      %v685 = vld [vmem:[%s1 + $0xae0] sm:$0xff]
      %v686 = vld [vmem:[%s1 + $0xae8] sm:$0xff]
      %v687 = vld [vmem:[%s1 + $0xaf0] sm:$0xff]
      %v688 = vld [vmem:[%s1 + $0xaf8] sm:$0xff]
      %v689 = vld [vmem:[%s1 + $0xb00] sm:$0xff]
      %v690 = vld [vmem:[%s1 + $0xb08] sm:$0xff]
      %v691 = vld [vmem:[%s1 + $0xb10] sm:$0xff]
      %v692 = vld [vmem:[%s1 + $0xb18] sm:$0xff]
      %v693 = vld [vmem:[%s1 + $0xb20] sm:$0xff]
      %v694 = vld [vmem:[%s1 + $0xb28] sm:$0xff]
      %v695 = vld [vmem:[%s1 + $0xb30] sm:$0xff]
      %v696 = vld [vmem:[%s1 + $0xb38] sm:$0xff]
      %v697 = vld [vmem:[%s1 + $0xb40] sm:$0xff]
      %v698 = vld [vmem:[%s1 + $0xb48] sm:$0xff]
      %v699 = vld [vmem:[%s1 + $0xb50] sm:$0xff]
      %v700 = vld [vmem:[%s1 + $0xb58] sm:$0xff]
      %v701 = vld [vmem:[%s1 + $0xb60] sm:$0xff]
      %v702 = vld [vmem:[%s1 + $0xb68] sm:$0xff]
      %v703 = vld [vmem:[%s1 + $0xb70] sm:$0xff]
      %v704 = vld [vmem:[%s1 + $0xb78] sm:$0xff]
      %v705 = vld [vmem:[%s1 + $0xb80] sm:$0x7f]
      %v706 = vld [vmem:[%s1 + $0xb88] sm:$0x7f]
      %v707 = vld [vmem:[%s1 + $0xb90] sm:$0x7f]
      %v708 = vld [vmem:[%s1 + $0xb98] sm:$0x7f]
      %v709 = vld [vmem:[%s1 + $0xba0] sm:$0x7f]
      %v710 = vld [vmem:[%s1 + $0xba8] sm:$0x7f]
      %v711 = vld [vmem:[%s1 + $0xbb0] sm:$0x7f]
      %v712 = vld [vmem:[%s1 + $0xbb8] sm:$0x7f]
      %v713 = vld [vmem:[%s1 + $0xbc0] sm:$0x7f]
      %v714 = vld [vmem:[%s1 + $0xbc8] sm:$0x7f]
      %v715 = vld [vmem:[%s1 + $0xbd0] sm:$0x7f]
      %v716 = vld [vmem:[%s1 + $0xbd8] sm:$0x7f]
      %v717 = vld [vmem:[%s1 + $0xbe0] sm:$0x7f]
      %v718 = vld [vmem:[%s1 + $0xbe8] sm:$0x7f]
      %v719 = vld [vmem:[%s1 + $0xbf0] sm:$0x7f]
      %v720 = vld [vmem:[%s1 + $0xbf8] sm:$0x7f]
      %v721 = vld [vmem:[%s2] sm:$0xff]
      %v722 = vld [vmem:[%s2 + $0x8] sm:$0xff]
      %v725 = vperm.slane %v721, 0
      %v726 = vperm.slane %v721, 1
      %v727 = vperm.slane %v721, 2
      %v728 = vperm.slane %v721, 3
      %v729 = vperm.slane %v721, 4
      %v730 = vperm.slane %v721, 5
      %v731 = vperm.slane %v721, 6
      %v732 = vperm.slane %v721, 7
      %v733 = vperm.slane %v722, 0
      %v734 = vperm.slane %v722, 1
      %v735 = vperm.slane %v722, 2
      %v736 = vperm.slane %v722, 3
      %v737 = vperm.slane %v722, 4
      %v738 = vperm.slane %v722, 5
      %v739 = vperm.slane %v722, 6
      %v740 = vperm.slane %v722, 7
      %vm757 = vcmask 515072
      %v759 = vsel %vm757, %v334, 0
      %v762 = vsel %vm757, %v336, 0
      %vm764 = vcmask 1046528
      %v766 = vsel %vm764, %v705, 0
      %v769 = vsel %vm764, %v706, 0
      %v772 = vsel %vm764, %v707, 0
      %v775 = vsel %vm764, %v708, 0
      %v778 = vsel %vm764, %v709, 0
      %v781 = vsel %vm764, %v710, 0
      %v784 = vsel %vm764, %v711, 0
      %v787 = vsel %vm764, %v712, 0
      %v790 = vsel %vm764, %v713, 0
      %v793 = vsel %vm764, %v714, 0
      %v796 = vsel %vm764, %v715, 0
      %v799 = vsel %vm764, %v716, 0
      %v802 = vsel %vm764, %v717, 0
      %v805 = vsel %vm764, %v718, 0
      %v808 = vsel %vm764, %v719, 0
      %v811 = vsel %vm764, %v720, 0
      %813 = vmatpush.msra.mxu0 %v577
      %814 = vmatpush.msra.mxu0 %v561
      %815 = vmatpush.msra.mxu0 %v545
      %816 = vmatpush.msra.mxu0 %v529
      %817 = vmatpush.msra.mxu0 %v513
      %818 = vmatpush.msra.mxu0 %v497
      %819 = vmatpush.msra.mxu0 %v481
      %820 = vmatpush.msra.mxu0 %v465
      %821 = vmatpush.msra.mxu0 %v449
      %822 = vmatpush.msra.mxu0 %v433
      %823 = vmatpush.msra.mxu0 %v417
      %824 = vmatpush.msra.mxu0 %v401
      %825 = vmatpush.msra.mxu0 %v385
      %826 = vmatpush.msra.mxu0 %v369
      %827 = vmatpush.msra.mxu0 %v353
      %828 = vmatpush.msra.mxu0 %v337
      %829 = vmatmul.f32.gmra.mxu0 %v333
      %v830 = vpop.f32.mrf.mxu0
      %v831 = vadd.f32 %v725, %v830
      %832 = vmatmul.f32.gmra.mxu0 %v335
      %v833 = vpop.f32.mrf.mxu0
      %v834 = vadd.f32 %v725, %v833
      %835 = vdwg.mxu0
      %836 = vmatpush.msra.mxu0 0.0
      %837 = vmatpush.msra.mxu0 0.0
      %838 = vmatpush.msra.mxu0 0.0
      %839 = vmatpush.msra.mxu0 0.0
      %840 = vmatpush.msra.mxu0 0.0
      %841 = vmatpush.msra.mxu0 0.0
      %842 = vmatpush.msra.mxu0 0.0
      %843 = vmatpush.msra.mxu0 0.0
      %844 = vmatpush.msra.mxu0 %v766
      %845 = vmatpush.msra.mxu0 %v689
      %846 = vmatpush.msra.mxu0 %v673
      %847 = vmatpush.msra.mxu0 %v657
      %848 = vmatpush.msra.mxu0 %v641
      %849 = vmatpush.msra.mxu0 %v625
      %850 = vmatpush.msra.mxu0 %v609
      %851 = vmatpush.msra.mxu0 %v593
      %852 = vmatmul.f32.gmra.mxu0 %v759
      %v853 = vpop.f32.mrf.mxu0
      %v854 = vadd.f32 %v831, %v853
      %855 = vmatmul.f32.gmra.mxu0 %v762
      %v856 = vpop.f32.mrf.mxu0
      %v857 = vadd.f32 %v834, %v856
      %858 = vdwg.mxu0
      %859 = vmatpush.msra.mxu0 %v578
      %860 = vmatpush.msra.mxu0 %v562
      %861 = vmatpush.msra.mxu0 %v546
      %862 = vmatpush.msra.mxu0 %v530
      %863 = vmatpush.msra.mxu0 %v514
      %864 = vmatpush.msra.mxu0 %v498
      %865 = vmatpush.msra.mxu0 %v482
      %866 = vmatpush.msra.mxu0 %v466
      %867 = vmatpush.msra.mxu0 %v450
      %868 = vmatpush.msra.mxu0 %v434
      %869 = vmatpush.msra.mxu0 %v418
      %870 = vmatpush.msra.mxu0 %v402
      %871 = vmatpush.msra.mxu0 %v386
      %872 = vmatpush.msra.mxu0 %v370
      %873 = vmatpush.msra.mxu0 %v354
      %874 = vmatpush.msra.mxu0 %v338
      %875 = vmatmul.f32.gmra.mxu0 %v333
      %v876 = vpop.f32.mrf.mxu0
      %v877 = vadd.f32 %v726, %v876
      %878 = vmatmul.f32.gmra.mxu0 %v335
      %v879 = vpop.f32.mrf.mxu0
      %v880 = vadd.f32 %v726, %v879
      %881 = vdwg.mxu0
      %882 = vmatpush.msra.mxu0 0.0
      %883 = vmatpush.msra.mxu0 0.0
      %884 = vmatpush.msra.mxu0 0.0
      %885 = vmatpush.msra.mxu0 0.0
      %886 = vmatpush.msra.mxu0 0.0
      %887 = vmatpush.msra.mxu0 0.0
      %888 = vmatpush.msra.mxu0 0.0
      %889 = vmatpush.msra.mxu0 0.0
      %890 = vmatpush.msra.mxu0 %v769
      %891 = vmatpush.msra.mxu0 %v690
      %892 = vmatpush.msra.mxu0 %v674
      %893 = vmatpush.msra.mxu0 %v658
      %894 = vmatpush.msra.mxu0 %v642
      %895 = vmatpush.msra.mxu0 %v626
      %896 = vmatpush.msra.mxu0 %v610
      %897 = vmatpush.msra.mxu0 %v594
      %898 = vmatmul.f32.gmra.mxu0 %v759
      %v899 = vpop.f32.mrf.mxu0
      %v900 = vadd.f32 %v877, %v899
      %901 = vmatmul.f32.gmra.mxu0 %v762
      %v902 = vpop.f32.mrf.mxu0
      %v903 = vadd.f32 %v880, %v902
      %904 = vdwg.mxu0
      %905 = vmatpush.msra.mxu0 %v579
      %906 = vmatpush.msra.mxu0 %v563
      %907 = vmatpush.msra.mxu0 %v547
      %908 = vmatpush.msra.mxu0 %v531
      %909 = vmatpush.msra.mxu0 %v515
      %910 = vmatpush.msra.mxu0 %v499
      %911 = vmatpush.msra.mxu0 %v483
      %912 = vmatpush.msra.mxu0 %v467
      %913 = vmatpush.msra.mxu0 %v451
      %914 = vmatpush.msra.mxu0 %v435
      %915 = vmatpush.msra.mxu0 %v419
      %916 = vmatpush.msra.mxu0 %v403
      %917 = vmatpush.msra.mxu0 %v387
      %918 = vmatpush.msra.mxu0 %v371
      %919 = vmatpush.msra.mxu0 %v355
      %920 = vmatpush.msra.mxu0 %v339
      %921 = vmatmul.f32.gmra.mxu0 %v333
      %v922 = vpop.f32.mrf.mxu0
      %v923 = vadd.f32 %v727, %v922
      %924 = vmatmul.f32.gmra.mxu0 %v335
      %v925 = vpop.f32.mrf.mxu0
      %v926 = vadd.f32 %v727, %v925
      %927 = vdwg.mxu0
      %928 = vmatpush.msra.mxu0 0.0
      %929 = vmatpush.msra.mxu0 0.0
      %930 = vmatpush.msra.mxu0 0.0
      %931 = vmatpush.msra.mxu0 0.0
      %932 = vmatpush.msra.mxu0 0.0
      %933 = vmatpush.msra.mxu0 0.0
      %934 = vmatpush.msra.mxu0 0.0
      %935 = vmatpush.msra.mxu0 0.0
      %936 = vmatpush.msra.mxu0 %v772
      %937 = vmatpush.msra.mxu0 %v691
      %938 = vmatpush.msra.mxu0 %v675
      %939 = vmatpush.msra.mxu0 %v659
      %940 = vmatpush.msra.mxu0 %v643
      %941 = vmatpush.msra.mxu0 %v627
      %942 = vmatpush.msra.mxu0 %v611
      %943 = vmatpush.msra.mxu0 %v595
      %944 = vmatmul.f32.gmra.mxu0 %v759
      %v945 = vpop.f32.mrf.mxu0
      %v946 = vadd.f32 %v923, %v945
      %947 = vmatmul.f32.gmra.mxu0 %v762
      %v948 = vpop.f32.mrf.mxu0
      %v949 = vadd.f32 %v926, %v948
      %950 = vdwg.mxu0
      %951 = vmatpush.msra.mxu0 %v580
      %952 = vmatpush.msra.mxu0 %v564
      %953 = vmatpush.msra.mxu0 %v548
      %954 = vmatpush.msra.mxu0 %v532
      %955 = vmatpush.msra.mxu0 %v516
      %956 = vmatpush.msra.mxu0 %v500
      %957 = vmatpush.msra.mxu0 %v484
      %958 = vmatpush.msra.mxu0 %v468
      %959 = vmatpush.msra.mxu0 %v452
      %960 = vmatpush.msra.mxu0 %v436
      %961 = vmatpush.msra.mxu0 %v420
      %962 = vmatpush.msra.mxu0 %v404
      %963 = vmatpush.msra.mxu0 %v388
      %964 = vmatpush.msra.mxu0 %v372
      %965 = vmatpush.msra.mxu0 %v356
      %966 = vmatpush.msra.mxu0 %v340
      %967 = vmatmul.f32.gmra.mxu0 %v333
      %v968 = vpop.f32.mrf.mxu0
      %v969 = vadd.f32 %v728, %v968
      %970 = vmatmul.f32.gmra.mxu0 %v335
      %v971 = vpop.f32.mrf.mxu0
      %v972 = vadd.f32 %v728, %v971
      %973 = vdwg.mxu0
      %974 = vmatpush.msra.mxu0 0.0
      %975 = vmatpush.msra.mxu0 0.0
      %976 = vmatpush.msra.mxu0 0.0
      %977 = vmatpush.msra.mxu0 0.0
      %978 = vmatpush.msra.mxu0 0.0
      %979 = vmatpush.msra.mxu0 0.0
      %980 = vmatpush.msra.mxu0 0.0
      %981 = vmatpush.msra.mxu0 0.0
      %982 = vmatpush.msra.mxu0 %v775
      %983 = vmatpush.msra.mxu0 %v692
      %984 = vmatpush.msra.mxu0 %v676
      %985 = vmatpush.msra.mxu0 %v660
      %986 = vmatpush.msra.mxu0 %v644
      %987 = vmatpush.msra.mxu0 %v628
      %988 = vmatpush.msra.mxu0 %v612
      %989 = vmatpush.msra.mxu0 %v596
      %990 = vmatmul.f32.gmra.mxu0 %v759
      %v991 = vpop.f32.mrf.mxu0
      %v992 = vadd.f32 %v969, %v991
      %993 = vmatmul.f32.gmra.mxu0 %v762
      %v994 = vpop.f32.mrf.mxu0
      %v995 = vadd.f32 %v972, %v994
      %996 = vdwg.mxu0
      %997 = vmatpush.msra.mxu0 %v581
      %998 = vmatpush.msra.mxu0 %v565
      %999 = vmatpush.msra.mxu0 %v549
      %1000 = vmatpush.msra.mxu0 %v533
      %1001 = vmatpush.msra.mxu0 %v517
      %1002 = vmatpush.msra.mxu0 %v501
      %1003 = vmatpush.msra.mxu0 %v485
      %1004 = vmatpush.msra.mxu0 %v469
      %1005 = vmatpush.msra.mxu0 %v453
      %1006 = vmatpush.msra.mxu0 %v437
      %1007 = vmatpush.msra.mxu0 %v421
      %1008 = vmatpush.msra.mxu0 %v405
      %1009 = vmatpush.msra.mxu0 %v389
      %1010 = vmatpush.msra.mxu0 %v373
      %1011 = vmatpush.msra.mxu0 %v357
      %1012 = vmatpush.msra.mxu0 %v341
      %1013 = vmatmul.f32.gmra.mxu0 %v333
      %v1014 = vpop.f32.mrf.mxu0
      %v1015 = vadd.f32 %v729, %v1014
      %1016 = vmatmul.f32.gmra.mxu0 %v335
      %v1017 = vpop.f32.mrf.mxu0
      %v1018 = vadd.f32 %v729, %v1017
      %1019 = vdwg.mxu0
      %1020 = vmatpush.msra.mxu0 0.0
      %1021 = vmatpush.msra.mxu0 0.0
      %1022 = vmatpush.msra.mxu0 0.0
      %1023 = vmatpush.msra.mxu0 0.0
      %1024 = vmatpush.msra.mxu0 0.0
      %1025 = vmatpush.msra.mxu0 0.0
      %1026 = vmatpush.msra.mxu0 0.0
      %1027 = vmatpush.msra.mxu0 0.0
      %1028 = vmatpush.msra.mxu0 %v778
      %1029 = vmatpush.msra.mxu0 %v693
      %1030 = vmatpush.msra.mxu0 %v677
      %1031 = vmatpush.msra.mxu0 %v661
      %1032 = vmatpush.msra.mxu0 %v645
      %1033 = vmatpush.msra.mxu0 %v629
      %1034 = vmatpush.msra.mxu0 %v613
      %1035 = vmatpush.msra.mxu0 %v597
      %1036 = vmatmul.f32.gmra.mxu0 %v759
      %v1037 = vpop.f32.mrf.mxu0
      %v1038 = vadd.f32 %v1015, %v1037
      %1039 = vmatmul.f32.gmra.mxu0 %v762
      %v1040 = vpop.f32.mrf.mxu0
      %v1041 = vadd.f32 %v1018, %v1040
      %1042 = vdwg.mxu0
      %1043 = vmatpush.msra.mxu0 %v582
      %1044 = vmatpush.msra.mxu0 %v566
      %1045 = vmatpush.msra.mxu0 %v550
      %1046 = vmatpush.msra.mxu0 %v534
      %1047 = vmatpush.msra.mxu0 %v518
      %1048 = vmatpush.msra.mxu0 %v502
      %1049 = vmatpush.msra.mxu0 %v486
      %1050 = vmatpush.msra.mxu0 %v470
      %1051 = vmatpush.msra.mxu0 %v454
      %1052 = vmatpush.msra.mxu0 %v438
      %1053 = vmatpush.msra.mxu0 %v422
      %1054 = vmatpush.msra.mxu0 %v406
      %1055 = vmatpush.msra.mxu0 %v390
      %1056 = vmatpush.msra.mxu0 %v374
      %1057 = vmatpush.msra.mxu0 %v358
      %1058 = vmatpush.msra.mxu0 %v342
      %1059 = vmatmul.f32.gmra.mxu0 %v333
      %v1060 = vpop.f32.mrf.mxu0
      %v1061 = vadd.f32 %v730, %v1060
      %1062 = vmatmul.f32.gmra.mxu0 %v335
      %v1063 = vpop.f32.mrf.mxu0
      %v1064 = vadd.f32 %v730, %v1063
      %1065 = vdwg.mxu0
      %1066 = vmatpush.msra.mxu0 0.0
      %1067 = vmatpush.msra.mxu0 0.0
      %1068 = vmatpush.msra.mxu0 0.0
      %1069 = vmatpush.msra.mxu0 0.0
      %1070 = vmatpush.msra.mxu0 0.0
      %1071 = vmatpush.msra.mxu0 0.0
      %1072 = vmatpush.msra.mxu0 0.0
      %1073 = vmatpush.msra.mxu0 0.0
      %1074 = vmatpush.msra.mxu0 %v781
      %1075 = vmatpush.msra.mxu0 %v694
      %1076 = vmatpush.msra.mxu0 %v678
      %1077 = vmatpush.msra.mxu0 %v662
      %1078 = vmatpush.msra.mxu0 %v646
      %1079 = vmatpush.msra.mxu0 %v630
      %1080 = vmatpush.msra.mxu0 %v614
      %1081 = vmatpush.msra.mxu0 %v598
      %1082 = vmatmul.f32.gmra.mxu0 %v759
      %v1083 = vpop.f32.mrf.mxu0
      %v1084 = vadd.f32 %v1061, %v1083
      %1085 = vmatmul.f32.gmra.mxu0 %v762
      %v1086 = vpop.f32.mrf.mxu0
      %v1087 = vadd.f32 %v1064, %v1086
      %1088 = vdwg.mxu0
      %1089 = vmatpush.msra.mxu0 %v583
      %1090 = vmatpush.msra.mxu0 %v567
      %1091 = vmatpush.msra.mxu0 %v551
      %1092 = vmatpush.msra.mxu0 %v535
      %1093 = vmatpush.msra.mxu0 %v519
      %1094 = vmatpush.msra.mxu0 %v503
      %1095 = vmatpush.msra.mxu0 %v487
      %1096 = vmatpush.msra.mxu0 %v471
      %1097 = vmatpush.msra.mxu0 %v455
      %1098 = vmatpush.msra.mxu0 %v439
      %1099 = vmatpush.msra.mxu0 %v423
      %1100 = vmatpush.msra.mxu0 %v407
      %1101 = vmatpush.msra.mxu0 %v391
      %1102 = vmatpush.msra.mxu0 %v375
      %1103 = vmatpush.msra.mxu0 %v359
      %1104 = vmatpush.msra.mxu0 %v343
      %1105 = vmatmul.f32.gmra.mxu0 %v333
      %v1106 = vpop.f32.mrf.mxu0
      %v1107 = vadd.f32 %v731, %v1106
      %1108 = vmatmul.f32.gmra.mxu0 %v335
      %v1109 = vpop.f32.mrf.mxu0
      %v1110 = vadd.f32 %v731, %v1109
      %1111 = vdwg.mxu0
      %1112 = vmatpush.msra.mxu0 0.0
      %1113 = vmatpush.msra.mxu0 0.0
      %1114 = vmatpush.msra.mxu0 0.0
      %1115 = vmatpush.msra.mxu0 0.0
      %1116 = vmatpush.msra.mxu0 0.0
      %1117 = vmatpush.msra.mxu0 0.0
      %1118 = vmatpush.msra.mxu0 0.0
      %1119 = vmatpush.msra.mxu0 0.0
      %1120 = vmatpush.msra.mxu0 %v784
      %1121 = vmatpush.msra.mxu0 %v695
      %1122 = vmatpush.msra.mxu0 %v679
      %1123 = vmatpush.msra.mxu0 %v663
      %1124 = vmatpush.msra.mxu0 %v647
      %1125 = vmatpush.msra.mxu0 %v631
      %1126 = vmatpush.msra.mxu0 %v615
      %1127 = vmatpush.msra.mxu0 %v599
      %1128 = vmatmul.f32.gmra.mxu0 %v759
      %v1129 = vpop.f32.mrf.mxu0
      %v1130 = vadd.f32 %v1107, %v1129
      %1131 = vmatmul.f32.gmra.mxu0 %v762
      %v1132 = vpop.f32.mrf.mxu0
      %v1133 = vadd.f32 %v1110, %v1132
      %1134 = vdwg.mxu0
      %1135 = vmatpush.msra.mxu0 %v584
      %1136 = vmatpush.msra.mxu0 %v568
      %1137 = vmatpush.msra.mxu0 %v552
      %1138 = vmatpush.msra.mxu0 %v536
      %1139 = vmatpush.msra.mxu0 %v520
      %1140 = vmatpush.msra.mxu0 %v504
      %1141 = vmatpush.msra.mxu0 %v488
      %1142 = vmatpush.msra.mxu0 %v472
      %1143 = vmatpush.msra.mxu0 %v456
      %1144 = vmatpush.msra.mxu0 %v440
      %1145 = vmatpush.msra.mxu0 %v424
      %1146 = vmatpush.msra.mxu0 %v408
      %1147 = vmatpush.msra.mxu0 %v392
      %1148 = vmatpush.msra.mxu0 %v376
      %1149 = vmatpush.msra.mxu0 %v360
      %1150 = vmatpush.msra.mxu0 %v344
      %1151 = vmatmul.f32.gmra.mxu0 %v333
      %v1152 = vpop.f32.mrf.mxu0
      %v1153 = vadd.f32 %v732, %v1152
      %1154 = vmatmul.f32.gmra.mxu0 %v335
      %v1155 = vpop.f32.mrf.mxu0
      %v1156 = vadd.f32 %v732, %v1155
      %1157 = vdwg.mxu0
      %1158 = vmatpush.msra.mxu0 0.0
      %1159 = vmatpush.msra.mxu0 0.0
      %1160 = vmatpush.msra.mxu0 0.0
      %1161 = vmatpush.msra.mxu0 0.0
      %1162 = vmatpush.msra.mxu0 0.0
      %1163 = vmatpush.msra.mxu0 0.0
      %1164 = vmatpush.msra.mxu0 0.0
      %1165 = vmatpush.msra.mxu0 0.0
      %1166 = vmatpush.msra.mxu0 %v787
      %1167 = vmatpush.msra.mxu0 %v696
      %1168 = vmatpush.msra.mxu0 %v680
      %1169 = vmatpush.msra.mxu0 %v664
      %1170 = vmatpush.msra.mxu0 %v648
      %1171 = vmatpush.msra.mxu0 %v632
      %1172 = vmatpush.msra.mxu0 %v616
      %1173 = vmatpush.msra.mxu0 %v600
      %1174 = vmatmul.f32.gmra.mxu0 %v759
      %v1175 = vpop.f32.mrf.mxu0
      %v1176 = vadd.f32 %v1153, %v1175
      %1177 = vmatmul.f32.gmra.mxu0 %v762
      %v1178 = vpop.f32.mrf.mxu0
      %v1179 = vadd.f32 %v1156, %v1178
      %1180 = vdwg.mxu0
      %1181 = vmatpush.msra.mxu0 %v585
      %1182 = vmatpush.msra.mxu0 %v569
      %1183 = vmatpush.msra.mxu0 %v553
      %1184 = vmatpush.msra.mxu0 %v537
      %1185 = vmatpush.msra.mxu0 %v521
      %1186 = vmatpush.msra.mxu0 %v505
      %1187 = vmatpush.msra.mxu0 %v489
      %1188 = vmatpush.msra.mxu0 %v473
      %1189 = vmatpush.msra.mxu0 %v457
      %1190 = vmatpush.msra.mxu0 %v441
      %1191 = vmatpush.msra.mxu0 %v425
      %1192 = vmatpush.msra.mxu0 %v409
      %1193 = vmatpush.msra.mxu0 %v393
      %1194 = vmatpush.msra.mxu0 %v377
      %1195 = vmatpush.msra.mxu0 %v361
      %1196 = vmatpush.msra.mxu0 %v345
      %1197 = vmatmul.f32.gmra.mxu0 %v333
      %v1198 = vpop.f32.mrf.mxu0
      %v1199 = vadd.f32 %v733, %v1198
      %1200 = vmatmul.f32.gmra.mxu0 %v335
      %v1201 = vpop.f32.mrf.mxu0
      %v1202 = vadd.f32 %v733, %v1201
      %1203 = vdwg.mxu0
      %1204 = vmatpush.msra.mxu0 0.0
      %1205 = vmatpush.msra.mxu0 0.0
      %1206 = vmatpush.msra.mxu0 0.0
      %1207 = vmatpush.msra.mxu0 0.0
      %1208 = vmatpush.msra.mxu0 0.0
      %1209 = vmatpush.msra.mxu0 0.0
      %1210 = vmatpush.msra.mxu0 0.0
      %1211 = vmatpush.msra.mxu0 0.0
      %1212 = vmatpush.msra.mxu0 %v790
      %1213 = vmatpush.msra.mxu0 %v697
      %1214 = vmatpush.msra.mxu0 %v681
      %1215 = vmatpush.msra.mxu0 %v665
      %1216 = vmatpush.msra.mxu0 %v649
      %1217 = vmatpush.msra.mxu0 %v633
      %1218 = vmatpush.msra.mxu0 %v617
      %1219 = vmatpush.msra.mxu0 %v601
      %1220 = vmatmul.f32.gmra.mxu0 %v759
      %v1221 = vpop.f32.mrf.mxu0
      %v1222 = vadd.f32 %v1199, %v1221
      %1223 = vmatmul.f32.gmra.mxu0 %v762
      %v1224 = vpop.f32.mrf.mxu0
      %v1225 = vadd.f32 %v1202, %v1224
      %1226 = vdwg.mxu0
      %1227 = vmatpush.msra.mxu0 %v586
      %1228 = vmatpush.msra.mxu0 %v570
      %1229 = vmatpush.msra.mxu0 %v554
      %1230 = vmatpush.msra.mxu0 %v538
      %1231 = vmatpush.msra.mxu0 %v522
      %1232 = vmatpush.msra.mxu0 %v506
      %1233 = vmatpush.msra.mxu0 %v490
      %1234 = vmatpush.msra.mxu0 %v474
      %1235 = vmatpush.msra.mxu0 %v458
      %1236 = vmatpush.msra.mxu0 %v442
      %1237 = vmatpush.msra.mxu0 %v426
      %1238 = vmatpush.msra.mxu0 %v410
      %1239 = vmatpush.msra.mxu0 %v394
      %1240 = vmatpush.msra.mxu0 %v378
      %1241 = vmatpush.msra.mxu0 %v362
      %1242 = vmatpush.msra.mxu0 %v346
      %1243 = vmatmul.f32.gmra.mxu0 %v333
      %v1244 = vpop.f32.mrf.mxu0
      %v1245 = vadd.f32 %v734, %v1244
      %1246 = vmatmul.f32.gmra.mxu0 %v335
      %v1247 = vpop.f32.mrf.mxu0
      %v1248 = vadd.f32 %v734, %v1247
      %1249 = vdwg.mxu0
      %1250 = vmatpush.msra.mxu0 0.0
      %1251 = vmatpush.msra.mxu0 0.0
      %1252 = vmatpush.msra.mxu0 0.0
      %1253 = vmatpush.msra.mxu0 0.0
      %1254 = vmatpush.msra.mxu0 0.0
      %1255 = vmatpush.msra.mxu0 0.0
      %1256 = vmatpush.msra.mxu0 0.0
      %1257 = vmatpush.msra.mxu0 0.0
      %1258 = vmatpush.msra.mxu0 %v793
      %1259 = vmatpush.msra.mxu0 %v698
      %1260 = vmatpush.msra.mxu0 %v682
      %1261 = vmatpush.msra.mxu0 %v666
      %1262 = vmatpush.msra.mxu0 %v650
      %1263 = vmatpush.msra.mxu0 %v634
      %1264 = vmatpush.msra.mxu0 %v618
      %1265 = vmatpush.msra.mxu0 %v602
      %1266 = vmatmul.f32.gmra.mxu0 %v759
      %v1267 = vpop.f32.mrf.mxu0
      %v1268 = vadd.f32 %v1245, %v1267
      %1269 = vmatmul.f32.gmra.mxu0 %v762
      %v1270 = vpop.f32.mrf.mxu0
      %v1271 = vadd.f32 %v1248, %v1270
      %1272 = vdwg.mxu0
      %1273 = vmatpush.msra.mxu0 %v587
      %1274 = vmatpush.msra.mxu0 %v571
      %1275 = vmatpush.msra.mxu0 %v555
      %1276 = vmatpush.msra.mxu0 %v539
      %1277 = vmatpush.msra.mxu0 %v523
      %1278 = vmatpush.msra.mxu0 %v507
      %1279 = vmatpush.msra.mxu0 %v491
      %1280 = vmatpush.msra.mxu0 %v475
      %1281 = vmatpush.msra.mxu0 %v459
      %1282 = vmatpush.msra.mxu0 %v443
      %1283 = vmatpush.msra.mxu0 %v427
      %1284 = vmatpush.msra.mxu0 %v411
      %1285 = vmatpush.msra.mxu0 %v395
      %1286 = vmatpush.msra.mxu0 %v379
      %1287 = vmatpush.msra.mxu0 %v363
      %1288 = vmatpush.msra.mxu0 %v347
      %1289 = vmatmul.f32.gmra.mxu0 %v333
      %v1290 = vpop.f32.mrf.mxu0
      %v1291 = vadd.f32 %v735, %v1290
      %1292 = vmatmul.f32.gmra.mxu0 %v335
      %v1293 = vpop.f32.mrf.mxu0
      %v1294 = vadd.f32 %v735, %v1293
      %1295 = vdwg.mxu0
      %1296 = vmatpush.msra.mxu0 0.0
      %1297 = vmatpush.msra.mxu0 0.0
      %1298 = vmatpush.msra.mxu0 0.0
      %1299 = vmatpush.msra.mxu0 0.0
      %1300 = vmatpush.msra.mxu0 0.0
      %1301 = vmatpush.msra.mxu0 0.0
      %1302 = vmatpush.msra.mxu0 0.0
      %1303 = vmatpush.msra.mxu0 0.0
      %1304 = vmatpush.msra.mxu0 %v796
      %1305 = vmatpush.msra.mxu0 %v699
      %1306 = vmatpush.msra.mxu0 %v683
      %1307 = vmatpush.msra.mxu0 %v667
      %1308 = vmatpush.msra.mxu0 %v651
      %1309 = vmatpush.msra.mxu0 %v635
      %1310 = vmatpush.msra.mxu0 %v619
      %1311 = vmatpush.msra.mxu0 %v603
      %1312 = vmatmul.f32.gmra.mxu0 %v759
      %v1313 = vpop.f32.mrf.mxu0
      %v1314 = vadd.f32 %v1291, %v1313
      %1315 = vmatmul.f32.gmra.mxu0 %v762
      %v1316 = vpop.f32.mrf.mxu0
      %v1317 = vadd.f32 %v1294, %v1316
      %1318 = vdwg.mxu0
      %1319 = vmatpush.msra.mxu0 %v588
      %1320 = vmatpush.msra.mxu0 %v572
      %1321 = vmatpush.msra.mxu0 %v556
      %1322 = vmatpush.msra.mxu0 %v540
      %1323 = vmatpush.msra.mxu0 %v524
      %1324 = vmatpush.msra.mxu0 %v508
      %1325 = vmatpush.msra.mxu0 %v492
      %1326 = vmatpush.msra.mxu0 %v476
      %1327 = vmatpush.msra.mxu0 %v460
      %1328 = vmatpush.msra.mxu0 %v444
      %1329 = vmatpush.msra.mxu0 %v428
      %1330 = vmatpush.msra.mxu0 %v412
      %1331 = vmatpush.msra.mxu0 %v396
      %1332 = vmatpush.msra.mxu0 %v380
      %1333 = vmatpush.msra.mxu0 %v364
      %1334 = vmatpush.msra.mxu0 %v348
      %1335 = vmatmul.f32.gmra.mxu0 %v333
      %v1336 = vpop.f32.mrf.mxu0
      %v1337 = vadd.f32 %v736, %v1336
      %1338 = vmatmul.f32.gmra.mxu0 %v335
      %v1339 = vpop.f32.mrf.mxu0
      %v1340 = vadd.f32 %v736, %v1339
      %1341 = vdwg.mxu0
      %1342 = vmatpush.msra.mxu0 0.0
      %1343 = vmatpush.msra.mxu0 0.0
      %1344 = vmatpush.msra.mxu0 0.0
      %1345 = vmatpush.msra.mxu0 0.0
      %1346 = vmatpush.msra.mxu0 0.0
      %1347 = vmatpush.msra.mxu0 0.0
      %1348 = vmatpush.msra.mxu0 0.0
      %1349 = vmatpush.msra.mxu0 0.0
      %1350 = vmatpush.msra.mxu0 %v799
      %1351 = vmatpush.msra.mxu0 %v700
      %1352 = vmatpush.msra.mxu0 %v684
      %1353 = vmatpush.msra.mxu0 %v668
      %1354 = vmatpush.msra.mxu0 %v652
      %1355 = vmatpush.msra.mxu0 %v636
      %1356 = vmatpush.msra.mxu0 %v620
      %1357 = vmatpush.msra.mxu0 %v604
      %1358 = vmatmul.f32.gmra.mxu0 %v759
      %v1359 = vpop.f32.mrf.mxu0
      %v1360 = vadd.f32 %v1337, %v1359
      %1361 = vmatmul.f32.gmra.mxu0 %v762
      %v1362 = vpop.f32.mrf.mxu0
      %v1363 = vadd.f32 %v1340, %v1362
      %1364 = vdwg.mxu0
      %1365 = vmatpush.msra.mxu0 %v589
      %1366 = vmatpush.msra.mxu0 %v573
      %1367 = vmatpush.msra.mxu0 %v557
      %1368 = vmatpush.msra.mxu0 %v541
      %1369 = vmatpush.msra.mxu0 %v525
      %1370 = vmatpush.msra.mxu0 %v509
      %1371 = vmatpush.msra.mxu0 %v493
      %1372 = vmatpush.msra.mxu0 %v477
      %1373 = vmatpush.msra.mxu0 %v461
      %1374 = vmatpush.msra.mxu0 %v445
      %1375 = vmatpush.msra.mxu0 %v429
      %1376 = vmatpush.msra.mxu0 %v413
      %1377 = vmatpush.msra.mxu0 %v397
      %1378 = vmatpush.msra.mxu0 %v381
      %1379 = vmatpush.msra.mxu0 %v365
      %1380 = vmatpush.msra.mxu0 %v349
      %1381 = vmatmul.f32.gmra.mxu0 %v333
      %v1382 = vpop.f32.mrf.mxu0
      %v1383 = vadd.f32 %v737, %v1382
      %1384 = vmatmul.f32.gmra.mxu0 %v335
      %v1385 = vpop.f32.mrf.mxu0
      %v1386 = vadd.f32 %v737, %v1385
      %1387 = vdwg.mxu0
      %1388 = vmatpush.msra.mxu0 0.0
      %1389 = vmatpush.msra.mxu0 0.0
      %1390 = vmatpush.msra.mxu0 0.0
      %1391 = vmatpush.msra.mxu0 0.0
      %1392 = vmatpush.msra.mxu0 0.0
      %1393 = vmatpush.msra.mxu0 0.0
      %1394 = vmatpush.msra.mxu0 0.0
      %1395 = vmatpush.msra.mxu0 0.0
      %1396 = vmatpush.msra.mxu0 %v802
      %1397 = vmatpush.msra.mxu0 %v701
      %1398 = vmatpush.msra.mxu0 %v685
      %1399 = vmatpush.msra.mxu0 %v669
      %1400 = vmatpush.msra.mxu0 %v653
      %1401 = vmatpush.msra.mxu0 %v637
      %1402 = vmatpush.msra.mxu0 %v621
      %1403 = vmatpush.msra.mxu0 %v605
      %1404 = vmatmul.f32.gmra.mxu0 %v759
      %v1405 = vpop.f32.mrf.mxu0
      %v1406 = vadd.f32 %v1383, %v1405
      %1407 = vmatmul.f32.gmra.mxu0 %v762
      %v1408 = vpop.f32.mrf.mxu0
      %v1409 = vadd.f32 %v1386, %v1408
      %1410 = vdwg.mxu0
      %1411 = vmatpush.msra.mxu0 %v590
      %1412 = vmatpush.msra.mxu0 %v574
      %1413 = vmatpush.msra.mxu0 %v558
      %1414 = vmatpush.msra.mxu0 %v542
      %1415 = vmatpush.msra.mxu0 %v526
      %1416 = vmatpush.msra.mxu0 %v510
      %1417 = vmatpush.msra.mxu0 %v494
      %1418 = vmatpush.msra.mxu0 %v478
      %1419 = vmatpush.msra.mxu0 %v462
      %1420 = vmatpush.msra.mxu0 %v446
      %1421 = vmatpush.msra.mxu0 %v430
      %1422 = vmatpush.msra.mxu0 %v414
      %1423 = vmatpush.msra.mxu0 %v398
      %1424 = vmatpush.msra.mxu0 %v382
      %1425 = vmatpush.msra.mxu0 %v366
      %1426 = vmatpush.msra.mxu0 %v350
      %1427 = vmatmul.f32.gmra.mxu0 %v333
      %v1428 = vpop.f32.mrf.mxu0
      %v1429 = vadd.f32 %v738, %v1428
      %1430 = vmatmul.f32.gmra.mxu0 %v335
      %v1431 = vpop.f32.mrf.mxu0
      %v1432 = vadd.f32 %v738, %v1431
      %1433 = vdwg.mxu0
      %1434 = vmatpush.msra.mxu0 0.0
      %1435 = vmatpush.msra.mxu0 0.0
      %1436 = vmatpush.msra.mxu0 0.0
      %1437 = vmatpush.msra.mxu0 0.0
      %1438 = vmatpush.msra.mxu0 0.0
      %1439 = vmatpush.msra.mxu0 0.0
      %1440 = vmatpush.msra.mxu0 0.0
      %1441 = vmatpush.msra.mxu0 0.0
      %1442 = vmatpush.msra.mxu0 %v805
      %1443 = vmatpush.msra.mxu0 %v702
      %1444 = vmatpush.msra.mxu0 %v686
      %1445 = vmatpush.msra.mxu0 %v670
      %1446 = vmatpush.msra.mxu0 %v654
      %1447 = vmatpush.msra.mxu0 %v638
      %1448 = vmatpush.msra.mxu0 %v622
      %1449 = vmatpush.msra.mxu0 %v606
      %1450 = vmatmul.f32.gmra.mxu0 %v759
      %v1451 = vpop.f32.mrf.mxu0
      %v1452 = vadd.f32 %v1429, %v1451
      %1453 = vmatmul.f32.gmra.mxu0 %v762
      %v1454 = vpop.f32.mrf.mxu0
      %v1455 = vadd.f32 %v1432, %v1454
      %1456 = vdwg.mxu0
      %1457 = vmatpush.msra.mxu0 %v591
      %1458 = vmatpush.msra.mxu0 %v575
      %1459 = vmatpush.msra.mxu0 %v559
      %1460 = vmatpush.msra.mxu0 %v543
      %1461 = vmatpush.msra.mxu0 %v527
      %1462 = vmatpush.msra.mxu0 %v511
      %1463 = vmatpush.msra.mxu0 %v495
      %1464 = vmatpush.msra.mxu0 %v479
      %1465 = vmatpush.msra.mxu0 %v463
      %1466 = vmatpush.msra.mxu0 %v447
      %1467 = vmatpush.msra.mxu0 %v431
      %1468 = vmatpush.msra.mxu0 %v415
      %1469 = vmatpush.msra.mxu0 %v399
      %1470 = vmatpush.msra.mxu0 %v383
      %1471 = vmatpush.msra.mxu0 %v367
      %1472 = vmatpush.msra.mxu0 %v351
      %1473 = vmatmul.f32.gmra.mxu0 %v333
      %v1474 = vpop.f32.mrf.mxu0
      %v1475 = vadd.f32 %v739, %v1474
      %1476 = vmatmul.f32.gmra.mxu0 %v335
      %v1477 = vpop.f32.mrf.mxu0
      %v1478 = vadd.f32 %v739, %v1477
      %1479 = vdwg.mxu0
      %1480 = vmatpush.msra.mxu0 0.0
      %1481 = vmatpush.msra.mxu0 0.0
      %1482 = vmatpush.msra.mxu0 0.0
      %1483 = vmatpush.msra.mxu0 0.0
      %1484 = vmatpush.msra.mxu0 0.0
      %1485 = vmatpush.msra.mxu0 0.0
      %1486 = vmatpush.msra.mxu0 0.0
      %1487 = vmatpush.msra.mxu0 0.0
      %1488 = vmatpush.msra.mxu0 %v808
      %1489 = vmatpush.msra.mxu0 %v703
      %1490 = vmatpush.msra.mxu0 %v687
      %1491 = vmatpush.msra.mxu0 %v671
      %1492 = vmatpush.msra.mxu0 %v655
      %1493 = vmatpush.msra.mxu0 %v639
      %1494 = vmatpush.msra.mxu0 %v623
      %1495 = vmatpush.msra.mxu0 %v607
      %1496 = vmatmul.f32.gmra.mxu0 %v759
      %v1497 = vpop.f32.mrf.mxu0
      %v1498 = vadd.f32 %v1475, %v1497
      %1499 = vmatmul.f32.gmra.mxu0 %v762
      %v1500 = vpop.f32.mrf.mxu0
      %v1501 = vadd.f32 %v1478, %v1500
      %1502 = vdwg.mxu0
      %1503 = vmatpush.msra.mxu0 %v592
      %1504 = vmatpush.msra.mxu0 %v576
      %1505 = vmatpush.msra.mxu0 %v560
      %1506 = vmatpush.msra.mxu0 %v544
      %1507 = vmatpush.msra.mxu0 %v528
      %1508 = vmatpush.msra.mxu0 %v512
      %1509 = vmatpush.msra.mxu0 %v496
      %1510 = vmatpush.msra.mxu0 %v480
      %1511 = vmatpush.msra.mxu0 %v464
      %1512 = vmatpush.msra.mxu0 %v448
      %1513 = vmatpush.msra.mxu0 %v432
      %1514 = vmatpush.msra.mxu0 %v416
      %1515 = vmatpush.msra.mxu0 %v400
      %1516 = vmatpush.msra.mxu0 %v384
      %1517 = vmatpush.msra.mxu0 %v368
      %1518 = vmatpush.msra.mxu0 %v352
      %1519 = vmatmul.f32.gmra.mxu0 %v333
      %v1520 = vpop.f32.mrf.mxu0
      %v1521 = vadd.f32 %v740, %v1520
      %1522 = vmatmul.f32.gmra.mxu0 %v335
      %v1523 = vpop.f32.mrf.mxu0
      %v1524 = vadd.f32 %v740, %v1523
      %1525 = vdwg.mxu0
      %1526 = vmatpush.msra.mxu0 0.0
      %1527 = vmatpush.msra.mxu0 0.0
      %1528 = vmatpush.msra.mxu0 0.0
      %1529 = vmatpush.msra.mxu0 0.0
      %1530 = vmatpush.msra.mxu0 0.0
      %1531 = vmatpush.msra.mxu0 0.0
      %1532 = vmatpush.msra.mxu0 0.0
      %1533 = vmatpush.msra.mxu0 0.0
      %1534 = vmatpush.msra.mxu0 %v811
      %1535 = vmatpush.msra.mxu0 %v704
      %1536 = vmatpush.msra.mxu0 %v688
      %1537 = vmatpush.msra.mxu0 %v672
      %1538 = vmatpush.msra.mxu0 %v656
      %1539 = vmatpush.msra.mxu0 %v640
      %1540 = vmatpush.msra.mxu0 %v624
      %1541 = vmatpush.msra.mxu0 %v608
      %1542 = vmatmul.f32.gmra.mxu0 %v759
      %v1543 = vpop.f32.mrf.mxu0
      %v1544 = vadd.f32 %v1521, %v1543
      %1545 = vmatmul.f32.gmra.mxu0 %v762
      %v1546 = vpop.f32.mrf.mxu0
      %v1547 = vadd.f32 %v1524, %v1546
      %1548 = vdwg.mxu0
      %vm1549 = vcmp.gt.f32.partialorder %v854, 0.0
      %vm1550 = vcmp.gt.f32.partialorder %v900, 0.0
      %vm1551 = vcmp.gt.f32.partialorder %v946, 0.0
      %vm1552 = vcmp.gt.f32.partialorder %v992, 0.0
      %vm1553 = vcmp.gt.f32.partialorder %v1038, 0.0
      %vm1554 = vcmp.gt.f32.partialorder %v1084, 0.0
      %vm1555 = vcmp.gt.f32.partialorder %v1130, 0.0
      %vm1556 = vcmp.gt.f32.partialorder %v1176, 0.0
      %vm1557 = vcmp.gt.f32.partialorder %v1222, 0.0
      %vm1558 = vcmp.gt.f32.partialorder %v1268, 0.0
      %vm1559 = vcmp.gt.f32.partialorder %v1314, 0.0
      %vm1560 = vcmp.gt.f32.partialorder %v1360, 0.0
      %vm1561 = vcmp.gt.f32.partialorder %v1406, 0.0
      %vm1562 = vcmp.gt.f32.partialorder %v1452, 0.0
      %vm1563 = vcmp.gt.f32.partialorder %v1498, 0.0
      %vm1564 = vcmp.gt.f32.partialorder %v1544, 0.0
      %vm1565 = vcmp.gt.f32.partialorder %v857, 0.0
      %vm1566 = vcmp.gt.f32.partialorder %v903, 0.0
      %vm1567 = vcmp.gt.f32.partialorder %v949, 0.0
      %vm1568 = vcmp.gt.f32.partialorder %v995, 0.0
      %vm1569 = vcmp.gt.f32.partialorder %v1041, 0.0
      %vm1570 = vcmp.gt.f32.partialorder %v1087, 0.0
      %vm1571 = vcmp.gt.f32.partialorder %v1133, 0.0
      %vm1572 = vcmp.gt.f32.partialorder %v1179, 0.0
      %vm1573 = vcmp.gt.f32.partialorder %v1225, 0.0
      %vm1574 = vcmp.gt.f32.partialorder %v1271, 0.0
      %vm1575 = vcmp.gt.f32.partialorder %v1317, 0.0
      %vm1576 = vcmp.gt.f32.partialorder %v1363, 0.0
      %vm1577 = vcmp.gt.f32.partialorder %v1409, 0.0
      %vm1578 = vcmp.gt.f32.partialorder %v1455, 0.0
      %vm1579 = vcmp.gt.f32.partialorder %v1501, 0.0
      %vm1580 = vcmp.gt.f32.partialorder %v1547, 0.0
      %v1581 = vmin.f32 %v854, 0.0
      %v1582 = vmin.f32 %v900, 0.0
      %v1583 = vmin.f32 %v946, 0.0
      %v1584 = vmin.f32 %v992, 0.0
      %v1585 = vmin.f32 %v1038, 0.0
      %v1586 = vmin.f32 %v1084, 0.0
      %v1587 = vmin.f32 %v1130, 0.0
      %v1588 = vmin.f32 %v1176, 0.0
      %v1589 = vmin.f32 %v1222, 0.0
      %v1590 = vmin.f32 %v1268, 0.0
      %v1591 = vmin.f32 %v1314, 0.0
      %v1592 = vmin.f32 %v1360, 0.0
      %v1593 = vmin.f32 %v1406, 0.0
      %v1594 = vmin.f32 %v1452, 0.0
      %v1595 = vmin.f32 %v1498, 0.0
      %v1596 = vmin.f32 %v1544, 0.0
      %v1597 = vmin.f32 %v857, 0.0
      %v1598 = vmin.f32 %v903, 0.0
      %v1599 = vmin.f32 %v949, 0.0
      %v1600 = vmin.f32 %v995, 0.0
      %v1601 = vmin.f32 %v1041, 0.0
      %v1602 = vmin.f32 %v1087, 0.0
      %v1603 = vmin.f32 %v1133, 0.0
      %v1604 = vmin.f32 %v1179, 0.0
      %v1605 = vmin.f32 %v1225, 0.0
      %v1606 = vmin.f32 %v1271, 0.0
      %v1607 = vmin.f32 %v1317, 0.0
      %v1608 = vmin.f32 %v1363, 0.0
      %v1609 = vmin.f32 %v1409, 0.0
      %v1610 = vmin.f32 %v1455, 0.0
      %v1611 = vmin.f32 %v1501, 0.0
      %v1612 = vmin.f32 %v1547, 0.0
      %v1613 = vmul.f32 %v1581, 1.442695
      %v1614 = vpow.pop %v1613
      %v1615 = vmul.f32 %v1582, 1.442695
      %v1616 = vpow.pop %v1615
      %v1617 = vmul.f32 %v1583, 1.442695
      %v1618 = vpow.pop %v1617
      %v1619 = vmul.f32 %v1584, 1.442695
      %v1620 = vpow.pop %v1619
      %v1621 = vmul.f32 %v1585, 1.442695
      %v1622 = vpow.pop %v1621
      %v1623 = vmul.f32 %v1586, 1.442695
      %v1624 = vpow.pop %v1623
      %v1625 = vmul.f32 %v1587, 1.442695
      %v1626 = vpow.pop %v1625
      %v1627 = vmul.f32 %v1588, 1.442695
      %v1628 = vpow.pop %v1627
      %v1629 = vmul.f32 %v1589, 1.442695
      %v1630 = vpow.pop %v1629
      %v1631 = vmul.f32 %v1590, 1.442695
      %v1632 = vpow.pop %v1631
      %v1633 = vmul.f32 %v1591, 1.442695
      %v1634 = vpow.pop %v1633
      %v1635 = vmul.f32 %v1592, 1.442695
      %v1636 = vpow.pop %v1635
      %v1637 = vmul.f32 %v1593, 1.442695
      %v1638 = vpow.pop %v1637
      %v1639 = vmul.f32 %v1594, 1.442695
      %v1640 = vpow.pop %v1639
      %v1641 = vmul.f32 %v1595, 1.442695
      %v1642 = vpow.pop %v1641
      %v1643 = vmul.f32 %v1596, 1.442695
      %v1644 = vpow.pop %v1643
      %v1645 = vmul.f32 %v1597, 1.442695
      %v1646 = vpow.pop %v1645
      %v1647 = vmul.f32 %v1598, 1.442695
      %v1648 = vpow.pop %v1647
      %v1649 = vmul.f32 %v1599, 1.442695
      %v1650 = vpow.pop %v1649
      %v1651 = vmul.f32 %v1600, 1.442695
      %v1652 = vpow.pop %v1651
      %v1653 = vmul.f32 %v1601, 1.442695
      %v1654 = vpow.pop %v1653
      %v1655 = vmul.f32 %v1602, 1.442695
      %v1656 = vpow.pop %v1655
      %v1657 = vmul.f32 %v1603, 1.442695
      %v1658 = vpow.pop %v1657
      %v1659 = vmul.f32 %v1604, 1.442695
      %v1660 = vpow.pop %v1659
      %v1661 = vmul.f32 %v1605, 1.442695
      %v1662 = vpow.pop %v1661
      %v1663 = vmul.f32 %v1606, 1.442695
      %v1664 = vpow.pop %v1663
      %v1665 = vmul.f32 %v1607, 1.442695
      %v1666 = vpow.pop %v1665
      %v1667 = vmul.f32 %v1608, 1.442695
      %v1668 = vpow.pop %v1667
      %v1669 = vmul.f32 %v1609, 1.442695
      %v1670 = vpow.pop %v1669
      %v1671 = vmul.f32 %v1610, 1.442695
      %v1672 = vpow.pop %v1671
      %v1673 = vmul.f32 %v1611, 1.442695
      %v1674 = vpow.pop %v1673
      %v1675 = vmul.f32 %v1612, 1.442695
      %v1676 = vpow.pop %v1675
      %v1677 = vsub.f32 %v1614, 1.0
      %v1678 = vsub.f32 %v1616, 1.0
      %v1679 = vsub.f32 %v1618, 1.0
      %v1680 = vsub.f32 %v1620, 1.0
      %v1681 = vsub.f32 %v1622, 1.0
      %v1682 = vsub.f32 %v1624, 1.0
      %v1683 = vsub.f32 %v1626, 1.0
      %v1684 = vsub.f32 %v1628, 1.0
      %v1685 = vsub.f32 %v1630, 1.0
      %v1686 = vsub.f32 %v1632, 1.0
      %v1687 = vsub.f32 %v1634, 1.0
      %v1688 = vsub.f32 %v1636, 1.0
      %v1689 = vsub.f32 %v1638, 1.0
      %v1690 = vsub.f32 %v1640, 1.0
      %v1691 = vsub.f32 %v1642, 1.0
      %v1692 = vsub.f32 %v1644, 1.0
      %v1693 = vsub.f32 %v1646, 1.0
      %v1694 = vsub.f32 %v1648, 1.0
      %v1695 = vsub.f32 %v1650, 1.0
      %v1696 = vsub.f32 %v1652, 1.0
      %v1697 = vsub.f32 %v1654, 1.0
      %v1698 = vsub.f32 %v1656, 1.0
      %v1699 = vsub.f32 %v1658, 1.0
      %v1700 = vsub.f32 %v1660, 1.0
      %v1701 = vsub.f32 %v1662, 1.0
      %v1702 = vsub.f32 %v1664, 1.0
      %v1703 = vsub.f32 %v1666, 1.0
      %v1704 = vsub.f32 %v1668, 1.0
      %v1705 = vsub.f32 %v1670, 1.0
      %v1706 = vsub.f32 %v1672, 1.0
      %v1707 = vsub.f32 %v1674, 1.0
      %v1708 = vsub.f32 %v1676, 1.0
      %v1709 = vsel %vm1549, %v854, %v1677
      %v1710 = vsel %vm1550, %v900, %v1678
      %v1711 = vsel %vm1551, %v946, %v1679
      %v1712 = vsel %vm1552, %v992, %v1680
      %v1713 = vsel %vm1553, %v1038, %v1681
      %v1714 = vsel %vm1554, %v1084, %v1682
      %v1715 = vsel %vm1555, %v1130, %v1683
      %v1716 = vsel %vm1556, %v1176, %v1684
      %v1717 = vsel %vm1557, %v1222, %v1685
      %v1718 = vsel %vm1558, %v1268, %v1686
      %v1719 = vsel %vm1559, %v1314, %v1687
      %v1720 = vsel %vm1560, %v1360, %v1688
      %v1721 = vsel %vm1561, %v1406, %v1689
      %v1722 = vsel %vm1562, %v1452, %v1690
      %v1723 = vsel %vm1563, %v1498, %v1691
      %v1724 = vsel %vm1564, %v1544, %v1692
      %v1725 = vsel %vm1565, %v857, %v1693
      %v1726 = vsel %vm1566, %v903, %v1694
      %v1727 = vsel %vm1567, %v949, %v1695
      %v1728 = vsel %vm1568, %v995, %v1696
      %v1729 = vsel %vm1569, %v1041, %v1697
      %v1730 = vsel %vm1570, %v1087, %v1698
      %v1731 = vsel %vm1571, %v1133, %v1699
      %v1732 = vsel %vm1572, %v1179, %v1700
      %v1733 = vsel %vm1573, %v1225, %v1701
      %v1734 = vsel %vm1574, %v1271, %v1702
      %v1735 = vsel %vm1575, %v1317, %v1703
      %v1736 = vsel %vm1576, %v1363, %v1704
      %v1737 = vsel %vm1577, %v1409, %v1705
      %v1738 = vsel %vm1578, %v1455, %v1706
      %v1739 = vsel %vm1579, %v1501, %v1707
      %v1740 = vsel %vm1580, %v1547, %v1708
      %v1741 = vld [vmem:[%s3] sm:$0xff]
      %v1742 = vld [vmem:[%s3 + $0x8] sm:$0xff]
      %v1743 = vld [vmem:[%s3 + $0x10] sm:$0xff]
      %v1744 = vld [vmem:[%s3 + $0x18] sm:$0xff]
      %v1745 = vld [vmem:[%s3 + $0x20] sm:$0xff]
      %v1746 = vld [vmem:[%s3 + $0x28] sm:$0xff]
      %v1747 = vld [vmem:[%s3 + $0x30] sm:$0xff]
      %v1748 = vld [vmem:[%s3 + $0x38] sm:$0xff]
      %v1749 = vld [vmem:[%s3 + $0x40] sm:$0xff]
      %v1750 = vld [vmem:[%s3 + $0x48] sm:$0xff]
      %v1751 = vld [vmem:[%s3 + $0x50] sm:$0xff]
      %v1752 = vld [vmem:[%s3 + $0x58] sm:$0xff]
      %v1753 = vld [vmem:[%s3 + $0x60] sm:$0xff]
      %v1754 = vld [vmem:[%s3 + $0x68] sm:$0xff]
      %v1755 = vld [vmem:[%s3 + $0x70] sm:$0xff]
      %v1756 = vld [vmem:[%s3 + $0x78] sm:$0xff]
      %v1757 = vld [vmem:[%s3 + $0x80] sm:$0xff]
      %v1758 = vld [vmem:[%s3 + $0x88] sm:$0xff]
      %v1759 = vld [vmem:[%s3 + $0x90] sm:$0xff]
      %v1760 = vld [vmem:[%s3 + $0x98] sm:$0xff]
      %v1761 = vld [vmem:[%s3 + $0xa0] sm:$0xff]
      %v1762 = vld [vmem:[%s3 + $0xa8] sm:$0xff]
      %v1763 = vld [vmem:[%s3 + $0xb0] sm:$0xff]
      %v1764 = vld [vmem:[%s3 + $0xb8] sm:$0xff]
      %v1765 = vld [vmem:[%s3 + $0xc0] sm:$0xff]
      %v1766 = vld [vmem:[%s3 + $0xc8] sm:$0xff]
      %v1767 = vld [vmem:[%s3 + $0xd0] sm:$0xff]
      %v1768 = vld [vmem:[%s3 + $0xd8] sm:$0xff]
      %v1769 = vld [vmem:[%s3 + $0xe0] sm:$0xff]
      %v1770 = vld [vmem:[%s3 + $0xe8] sm:$0xff]
      %v1771 = vld [vmem:[%s3 + $0xf0] sm:$0xff]
      %v1772 = vld [vmem:[%s3 + $0xf8] sm:$0xff]
      %v1773 = vld [vmem:[%s3 + $0x100] sm:$0xff]
      %v1774 = vld [vmem:[%s3 + $0x108] sm:$0xff]
      %v1775 = vld [vmem:[%s3 + $0x110] sm:$0xff]
      %v1776 = vld [vmem:[%s3 + $0x118] sm:$0xff]
      %v1777 = vld [vmem:[%s3 + $0x120] sm:$0xff]
      %v1778 = vld [vmem:[%s3 + $0x128] sm:$0xff]
      %v1779 = vld [vmem:[%s3 + $0x130] sm:$0xff]
      %v1780 = vld [vmem:[%s3 + $0x138] sm:$0xff]
      %v1781 = vld [vmem:[%s3 + $0x140] sm:$0xff]
      %v1782 = vld [vmem:[%s3 + $0x148] sm:$0xff]
      %v1783 = vld [vmem:[%s3 + $0x150] sm:$0xff]
      %v1784 = vld [vmem:[%s3 + $0x158] sm:$0xff]
      %v1785 = vld [vmem:[%s3 + $0x160] sm:$0xff]
      %v1786 = vld [vmem:[%s3 + $0x168] sm:$0xff]
      %v1787 = vld [vmem:[%s3 + $0x170] sm:$0xff]
      %v1788 = vld [vmem:[%s3 + $0x178] sm:$0xff]
      %v1789 = vld [vmem:[%s3 + $0x180] sm:$0xff]
      %v1790 = vld [vmem:[%s3 + $0x188] sm:$0xff]
      %v1791 = vld [vmem:[%s3 + $0x190] sm:$0xff]
      %v1792 = vld [vmem:[%s3 + $0x198] sm:$0xff]
      %v1793 = vld [vmem:[%s3 + $0x1a0] sm:$0xff]
      %v1794 = vld [vmem:[%s3 + $0x1a8] sm:$0xff]
      %v1795 = vld [vmem:[%s3 + $0x1b0] sm:$0xff]
      %v1796 = vld [vmem:[%s3 + $0x1b8] sm:$0xff]
      %v1797 = vld [vmem:[%s3 + $0x1c0] sm:$0xff]
      %v1798 = vld [vmem:[%s3 + $0x1c8] sm:$0xff]
      %v1799 = vld [vmem:[%s3 + $0x1d0] sm:$0xff]
      %v1800 = vld [vmem:[%s3 + $0x1d8] sm:$0xff]
      %v1801 = vld [vmem:[%s3 + $0x1e0] sm:$0xff]
      %v1802 = vld [vmem:[%s3 + $0x1e8] sm:$0xff]
      %v1803 = vld [vmem:[%s3 + $0x1f0] sm:$0xff]
      %v1804 = vld [vmem:[%s3 + $0x1f8] sm:$0xff]
      %v1805 = vld [vmem:[%s3 + $0x200] sm:$0xff]
      %v1806 = vld [vmem:[%s3 + $0x208] sm:$0xff]
      %v1807 = vld [vmem:[%s3 + $0x210] sm:$0xff]
      %v1808 = vld [vmem:[%s3 + $0x218] sm:$0xff]
      %v1809 = vld [vmem:[%s3 + $0x220] sm:$0xff]
      %v1810 = vld [vmem:[%s3 + $0x228] sm:$0xff]
      %v1811 = vld [vmem:[%s3 + $0x230] sm:$0xff]
      %v1812 = vld [vmem:[%s3 + $0x238] sm:$0xff]
      %v1813 = vld [vmem:[%s3 + $0x240] sm:$0xff]
      %v1814 = vld [vmem:[%s3 + $0x248] sm:$0xff]
      %v1815 = vld [vmem:[%s3 + $0x250] sm:$0xff]
      %v1816 = vld [vmem:[%s3 + $0x258] sm:$0xff]
      %v1817 = vld [vmem:[%s3 + $0x260] sm:$0xff]
      %v1818 = vld [vmem:[%s3 + $0x268] sm:$0xff]
      %v1819 = vld [vmem:[%s3 + $0x270] sm:$0xff]
      %v1820 = vld [vmem:[%s3 + $0x278] sm:$0xff]
      %v1821 = vld [vmem:[%s3 + $0x280] sm:$0xff]
      %v1822 = vld [vmem:[%s3 + $0x288] sm:$0xff]
      %v1823 = vld [vmem:[%s3 + $0x290] sm:$0xff]
      %v1824 = vld [vmem:[%s3 + $0x298] sm:$0xff]
      %v1825 = vld [vmem:[%s3 + $0x2a0] sm:$0xff]
      %v1826 = vld [vmem:[%s3 + $0x2a8] sm:$0xff]
      %v1827 = vld [vmem:[%s3 + $0x2b0] sm:$0xff]
      %v1828 = vld [vmem:[%s3 + $0x2b8] sm:$0xff]
      %v1829 = vld [vmem:[%s3 + $0x2c0] sm:$0xff]
      %v1830 = vld [vmem:[%s3 + $0x2c8] sm:$0xff]
      %v1831 = vld [vmem:[%s3 + $0x2d0] sm:$0xff]
      %v1832 = vld [vmem:[%s3 + $0x2d8] sm:$0xff]
      %v1833 = vld [vmem:[%s3 + $0x2e0] sm:$0xff]
      %v1834 = vld [vmem:[%s3 + $0x2e8] sm:$0xff]
      %v1835 = vld [vmem:[%s3 + $0x2f0] sm:$0xff]
      %v1836 = vld [vmem:[%s3 + $0x2f8] sm:$0xff]
      %v1837 = vld [vmem:[%s3 + $0x300] sm:$0xff]
      %v1838 = vld [vmem:[%s3 + $0x308] sm:$0xff]
      %v1839 = vld [vmem:[%s3 + $0x310] sm:$0xff]
      %v1840 = vld [vmem:[%s3 + $0x318] sm:$0xff]
      %v1841 = vld [vmem:[%s3 + $0x320] sm:$0xff]
      %v1842 = vld [vmem:[%s3 + $0x328] sm:$0xff]
      %v1843 = vld [vmem:[%s3 + $0x330] sm:$0xff]
      %v1844 = vld [vmem:[%s3 + $0x338] sm:$0xff]
      %v1845 = vld [vmem:[%s3 + $0x340] sm:$0xff]
      %v1846 = vld [vmem:[%s3 + $0x348] sm:$0xff]
      %v1847 = vld [vmem:[%s3 + $0x350] sm:$0xff]
      %v1848 = vld [vmem:[%s3 + $0x358] sm:$0xff]
      %v1849 = vld [vmem:[%s3 + $0x360] sm:$0xff]
      %v1850 = vld [vmem:[%s3 + $0x368] sm:$0xff]
      %v1851 = vld [vmem:[%s3 + $0x370] sm:$0xff]
      %v1852 = vld [vmem:[%s3 + $0x378] sm:$0xff]
      %v1853 = vld [vmem:[%s3 + $0x380] sm:$0xff]
      %v1854 = vld [vmem:[%s3 + $0x388] sm:$0xff]
      %v1855 = vld [vmem:[%s3 + $0x390] sm:$0xff]
      %v1856 = vld [vmem:[%s3 + $0x398] sm:$0xff]
      %v1857 = vld [vmem:[%s3 + $0x3a0] sm:$0xff]
      %v1858 = vld [vmem:[%s3 + $0x3a8] sm:$0xff]
      %v1859 = vld [vmem:[%s3 + $0x3b0] sm:$0xff]
      %v1860 = vld [vmem:[%s3 + $0x3b8] sm:$0xff]
      %v1861 = vld [vmem:[%s3 + $0x3c0] sm:$0xff]
      %v1862 = vld [vmem:[%s3 + $0x3c8] sm:$0xff]
      %v1863 = vld [vmem:[%s3 + $0x3d0] sm:$0xff]
      %v1864 = vld [vmem:[%s3 + $0x3d8] sm:$0xff]
      %v1865 = vld [vmem:[%s3 + $0x3e0] sm:$0xff]
      %v1866 = vld [vmem:[%s3 + $0x3e8] sm:$0xff]
      %v1867 = vld [vmem:[%s3 + $0x3f0] sm:$0xff]
      %v1868 = vld [vmem:[%s3 + $0x3f8] sm:$0xff]
      %v1869 = vld [vmem:[%s4] sm:$0xff]
      %v1870 = vld [vmem:[%s4 + $0x8] sm:$0xff]
      %v1871 = vld [vmem:[%s4 + $0x10] sm:$0xff]
      %v1872 = vld [vmem:[%s4 + $0x18] sm:$0xff]
      %v1873 = vld [vmem:[%s4 + $0x20] sm:$0xff]
      %v1874 = vld [vmem:[%s4 + $0x28] sm:$0xff]
      %v1875 = vld [vmem:[%s4 + $0x30] sm:$0xff]
      %v1876 = vld [vmem:[%s4 + $0x38] sm:$0xff]
      %v1877 = vld [vmem:[%s4 + $0x40] sm:$0xff]
      %v1878 = vld [vmem:[%s4 + $0x48] sm:$0xff]
      %v1879 = vld [vmem:[%s4 + $0x50] sm:$0xff]
      %v1880 = vld [vmem:[%s4 + $0x58] sm:$0xff]
      %v1881 = vld [vmem:[%s4 + $0x60] sm:$0xff]
      %v1882 = vld [vmem:[%s4 + $0x68] sm:$0xff]
      %v1883 = vld [vmem:[%s4 + $0x70] sm:$0xff]
      %v1884 = vld [vmem:[%s4 + $0x78] sm:$0xff]
      %v1885 = vld [vmem:[%s4 + $0x80] sm:$0xff]
      %v1886 = vld [vmem:[%s4 + $0x88] sm:$0xff]
      %v1887 = vld [vmem:[%s4 + $0x90] sm:$0xff]
      %v1888 = vld [vmem:[%s4 + $0x98] sm:$0xff]
      %v1889 = vld [vmem:[%s4 + $0xa0] sm:$0xff]
      %v1890 = vld [vmem:[%s4 + $0xa8] sm:$0xff]
      %v1891 = vld [vmem:[%s4 + $0xb0] sm:$0xff]
      %v1892 = vld [vmem:[%s4 + $0xb8] sm:$0xff]
      %v1893 = vld [vmem:[%s4 + $0xc0] sm:$0xff]
      %v1894 = vld [vmem:[%s4 + $0xc8] sm:$0xff]
      %v1895 = vld [vmem:[%s4 + $0xd0] sm:$0xff]
      %v1896 = vld [vmem:[%s4 + $0xd8] sm:$0xff]
      %v1897 = vld [vmem:[%s4 + $0xe0] sm:$0xff]
      %v1898 = vld [vmem:[%s4 + $0xe8] sm:$0xff]
      %v1899 = vld [vmem:[%s4 + $0xf0] sm:$0xff]
      %v1900 = vld [vmem:[%s4 + $0xf8] sm:$0xff]
      %v1901 = vld [vmem:[%s4 + $0x100] sm:$0xff]
      %v1902 = vld [vmem:[%s4 + $0x108] sm:$0xff]
      %v1903 = vld [vmem:[%s4 + $0x110] sm:$0xff]
      %v1904 = vld [vmem:[%s4 + $0x118] sm:$0xff]
      %v1905 = vld [vmem:[%s4 + $0x120] sm:$0xff]
      %v1906 = vld [vmem:[%s4 + $0x128] sm:$0xff]
      %v1907 = vld [vmem:[%s4 + $0x130] sm:$0xff]
      %v1908 = vld [vmem:[%s4 + $0x138] sm:$0xff]
      %v1909 = vld [vmem:[%s4 + $0x140] sm:$0xff]
      %v1910 = vld [vmem:[%s4 + $0x148] sm:$0xff]
      %v1911 = vld [vmem:[%s4 + $0x150] sm:$0xff]
      %v1912 = vld [vmem:[%s4 + $0x158] sm:$0xff]
      %v1913 = vld [vmem:[%s4 + $0x160] sm:$0xff]
      %v1914 = vld [vmem:[%s4 + $0x168] sm:$0xff]
      %v1915 = vld [vmem:[%s4 + $0x170] sm:$0xff]
      %v1916 = vld [vmem:[%s4 + $0x178] sm:$0xff]
      %v1917 = vld [vmem:[%s4 + $0x180] sm:$0xff]
      %v1918 = vld [vmem:[%s4 + $0x188] sm:$0xff]
      %v1919 = vld [vmem:[%s4 + $0x190] sm:$0xff]
      %v1920 = vld [vmem:[%s4 + $0x198] sm:$0xff]
      %v1921 = vld [vmem:[%s4 + $0x1a0] sm:$0xff]
      %v1922 = vld [vmem:[%s4 + $0x1a8] sm:$0xff]
      %v1923 = vld [vmem:[%s4 + $0x1b0] sm:$0xff]
      %v1924 = vld [vmem:[%s4 + $0x1b8] sm:$0xff]
      %v1925 = vld [vmem:[%s4 + $0x1c0] sm:$0xff]
      %v1926 = vld [vmem:[%s4 + $0x1c8] sm:$0xff]
      %v1927 = vld [vmem:[%s4 + $0x1d0] sm:$0xff]
      %v1928 = vld [vmem:[%s4 + $0x1d8] sm:$0xff]
      %v1929 = vld [vmem:[%s4 + $0x1e0] sm:$0xff]
      %v1930 = vld [vmem:[%s4 + $0x1e8] sm:$0xff]
      %v1931 = vld [vmem:[%s4 + $0x1f0] sm:$0xff]
      %v1932 = vld [vmem:[%s4 + $0x1f8] sm:$0xff]
      %1934 = vset.pattern.permute.xlu0 0
      %1935 = vperm.xlu0 %1934, %v1869
      %v1936 = vpop.permute.xlu0 %1935
      %1939 = vset.pattern.permute.xlu0 0
      %1940 = vperm.xlu0 %1939, %v1870
      %v1941 = vpop.permute.xlu0 %1940
      %1944 = vset.pattern.permute.xlu0 0
      %1945 = vperm.xlu0 %1944, %v1871
      %v1946 = vpop.permute.xlu0 %1945
      %1949 = vset.pattern.permute.xlu0 0
      %1950 = vperm.xlu0 %1949, %v1872
      %v1951 = vpop.permute.xlu0 %1950
      %1954 = vset.pattern.permute.xlu0 0
      %1955 = vperm.xlu0 %1954, %v1873
      %v1956 = vpop.permute.xlu0 %1955
      %1959 = vset.pattern.permute.xlu0 0
      %1960 = vperm.xlu0 %1959, %v1874
      %v1961 = vpop.permute.xlu0 %1960
      %1964 = vset.pattern.permute.xlu0 0
      %1965 = vperm.xlu0 %1964, %v1875
      %v1966 = vpop.permute.xlu0 %1965
      %1969 = vset.pattern.permute.xlu0 0
      %1970 = vperm.xlu0 %1969, %v1876
      %v1971 = vpop.permute.xlu0 %1970
      %1974 = vset.pattern.permute.xlu0 0
      %1975 = vperm.xlu0 %1974, %v1877
      %v1976 = vpop.permute.xlu0 %1975
      %1979 = vset.pattern.permute.xlu0 0
      %1980 = vperm.xlu0 %1979, %v1878
      %v1981 = vpop.permute.xlu0 %1980
      %1984 = vset.pattern.permute.xlu0 0
      %1985 = vperm.xlu0 %1984, %v1879
      %v1986 = vpop.permute.xlu0 %1985
      %1989 = vset.pattern.permute.xlu0 0
      %1990 = vperm.xlu0 %1989, %v1880
      %v1991 = vpop.permute.xlu0 %1990
      %1994 = vset.pattern.permute.xlu0 0
      %1995 = vperm.xlu0 %1994, %v1881
      %v1996 = vpop.permute.xlu0 %1995
      %1999 = vset.pattern.permute.xlu0 0
      %2000 = vperm.xlu0 %1999, %v1882
      %v2001 = vpop.permute.xlu0 %2000
      %2004 = vset.pattern.permute.xlu0 0
      %2005 = vperm.xlu0 %2004, %v1883
      %v2006 = vpop.permute.xlu0 %2005
      %2009 = vset.pattern.permute.xlu0 0
      %2010 = vperm.xlu0 %2009, %v1884
      %v2011 = vpop.permute.xlu0 %2010
      %2014 = vset.pattern.permute.xlu0 0
      %2015 = vperm.xlu0 %2014, %v1885
      %v2016 = vpop.permute.xlu0 %2015
      %2019 = vset.pattern.permute.xlu0 0
      %2020 = vperm.xlu0 %2019, %v1886
      %v2021 = vpop.permute.xlu0 %2020
      %2024 = vset.pattern.permute.xlu0 0
      %2025 = vperm.xlu0 %2024, %v1887
      %v2026 = vpop.permute.xlu0 %2025
      %2029 = vset.pattern.permute.xlu0 0
      %2030 = vperm.xlu0 %2029, %v1888
      %v2031 = vpop.permute.xlu0 %2030
      %2034 = vset.pattern.permute.xlu0 0
      %2035 = vperm.xlu0 %2034, %v1889
      %v2036 = vpop.permute.xlu0 %2035
      %2039 = vset.pattern.permute.xlu0 0
      %2040 = vperm.xlu0 %2039, %v1890
      %v2041 = vpop.permute.xlu0 %2040
      %2044 = vset.pattern.permute.xlu0 0
      %2045 = vperm.xlu0 %2044, %v1891
      %v2046 = vpop.permute.xlu0 %2045
      %2049 = vset.pattern.permute.xlu0 0
      %2050 = vperm.xlu0 %2049, %v1892
      %v2051 = vpop.permute.xlu0 %2050
      %2054 = vset.pattern.permute.xlu0 0
      %2055 = vperm.xlu0 %2054, %v1893
      %v2056 = vpop.permute.xlu0 %2055
      %2059 = vset.pattern.permute.xlu0 0
      %2060 = vperm.xlu0 %2059, %v1894
      %v2061 = vpop.permute.xlu0 %2060
      %2064 = vset.pattern.permute.xlu0 0
      %2065 = vperm.xlu0 %2064, %v1895
      %v2066 = vpop.permute.xlu0 %2065
      %2069 = vset.pattern.permute.xlu0 0
      %2070 = vperm.xlu0 %2069, %v1896
      %v2071 = vpop.permute.xlu0 %2070
      %2074 = vset.pattern.permute.xlu0 0
      %2075 = vperm.xlu0 %2074, %v1897
      %v2076 = vpop.permute.xlu0 %2075
      %2079 = vset.pattern.permute.xlu0 0
      %2080 = vperm.xlu0 %2079, %v1898
      %v2081 = vpop.permute.xlu0 %2080
      %2084 = vset.pattern.permute.xlu0 0
      %2085 = vperm.xlu0 %2084, %v1899
      %v2086 = vpop.permute.xlu0 %2085
      %2089 = vset.pattern.permute.xlu0 0
      %2090 = vperm.xlu0 %2089, %v1900
      %v2091 = vpop.permute.xlu0 %2090
      %2094 = vset.pattern.permute.xlu0 0
      %2095 = vperm.xlu0 %2094, %v1901
      %v2096 = vpop.permute.xlu0 %2095
      %2099 = vset.pattern.permute.xlu0 0
      %2100 = vperm.xlu0 %2099, %v1902
      %v2101 = vpop.permute.xlu0 %2100
      %2104 = vset.pattern.permute.xlu0 0
      %2105 = vperm.xlu0 %2104, %v1903
      %v2106 = vpop.permute.xlu0 %2105
      %2109 = vset.pattern.permute.xlu0 0
      %2110 = vperm.xlu0 %2109, %v1904
      %v2111 = vpop.permute.xlu0 %2110
      %2114 = vset.pattern.permute.xlu0 0
      %2115 = vperm.xlu0 %2114, %v1905
      %v2116 = vpop.permute.xlu0 %2115
      %2119 = vset.pattern.permute.xlu0 0
      %2120 = vperm.xlu0 %2119, %v1906
      %v2121 = vpop.permute.xlu0 %2120
      %2124 = vset.pattern.permute.xlu0 0
      %2125 = vperm.xlu0 %2124, %v1907
      %v2126 = vpop.permute.xlu0 %2125
      %2129 = vset.pattern.permute.xlu0 0
      %2130 = vperm.xlu0 %2129, %v1908
      %v2131 = vpop.permute.xlu0 %2130
      %2134 = vset.pattern.permute.xlu0 0
      %2135 = vperm.xlu0 %2134, %v1909
      %v2136 = vpop.permute.xlu0 %2135
      %2139 = vset.pattern.permute.xlu0 0
      %2140 = vperm.xlu0 %2139, %v1910
      %v2141 = vpop.permute.xlu0 %2140
      %2144 = vset.pattern.permute.xlu0 0
      %2145 = vperm.xlu0 %2144, %v1911
      %v2146 = vpop.permute.xlu0 %2145
      %2149 = vset.pattern.permute.xlu0 0
      %2150 = vperm.xlu0 %2149, %v1912
      %v2151 = vpop.permute.xlu0 %2150
      %2154 = vset.pattern.permute.xlu0 0
      %2155 = vperm.xlu0 %2154, %v1913
      %v2156 = vpop.permute.xlu0 %2155
      %2159 = vset.pattern.permute.xlu0 0
      %2160 = vperm.xlu0 %2159, %v1914
      %v2161 = vpop.permute.xlu0 %2160
      %2164 = vset.pattern.permute.xlu0 0
      %2165 = vperm.xlu0 %2164, %v1915
      %v2166 = vpop.permute.xlu0 %2165
      %2169 = vset.pattern.permute.xlu0 0
      %2170 = vperm.xlu0 %2169, %v1916
      %v2171 = vpop.permute.xlu0 %2170
      %2174 = vset.pattern.permute.xlu0 0
      %2175 = vperm.xlu0 %2174, %v1917
      %v2176 = vpop.permute.xlu0 %2175
      %2179 = vset.pattern.permute.xlu0 0
      %2180 = vperm.xlu0 %2179, %v1918
      %v2181 = vpop.permute.xlu0 %2180
      %2184 = vset.pattern.permute.xlu0 0
      %2185 = vperm.xlu0 %2184, %v1919
      %v2186 = vpop.permute.xlu0 %2185
      %2189 = vset.pattern.permute.xlu0 0
      %2190 = vperm.xlu0 %2189, %v1920
      %v2191 = vpop.permute.xlu0 %2190
      %2194 = vset.pattern.permute.xlu0 0
      %2195 = vperm.xlu0 %2194, %v1921
      %v2196 = vpop.permute.xlu0 %2195
      %2199 = vset.pattern.permute.xlu0 0
      %2200 = vperm.xlu0 %2199, %v1922
      %v2201 = vpop.permute.xlu0 %2200
      %2204 = vset.pattern.permute.xlu0 0
      %2205 = vperm.xlu0 %2204, %v1923
      %v2206 = vpop.permute.xlu0 %2205
      %2209 = vset.pattern.permute.xlu0 0
      %2210 = vperm.xlu0 %2209, %v1924
      %v2211 = vpop.permute.xlu0 %2210
      %2214 = vset.pattern.permute.xlu0 0
      %2215 = vperm.xlu0 %2214, %v1925
      %v2216 = vpop.permute.xlu0 %2215
      %2219 = vset.pattern.permute.xlu0 0
      %2220 = vperm.xlu0 %2219, %v1926
      %v2221 = vpop.permute.xlu0 %2220
      %2224 = vset.pattern.permute.xlu0 0
      %2225 = vperm.xlu0 %2224, %v1927
      %v2226 = vpop.permute.xlu0 %2225
      %2229 = vset.pattern.permute.xlu0 0
      %2230 = vperm.xlu0 %2229, %v1928
      %v2231 = vpop.permute.xlu0 %2230
      %2234 = vset.pattern.permute.xlu0 0
      %2235 = vperm.xlu0 %2234, %v1929
      %v2236 = vpop.permute.xlu0 %2235
      %2239 = vset.pattern.permute.xlu0 0
      %2240 = vperm.xlu0 %2239, %v1930
      %v2241 = vpop.permute.xlu0 %2240
      %2244 = vset.pattern.permute.xlu0 0
      %2245 = vperm.xlu0 %2244, %v1931
      %v2246 = vpop.permute.xlu0 %2245
      %2249 = vset.pattern.permute.xlu0 0
      %2250 = vperm.xlu0 %2249, %v1932
      %v2251 = vpop.permute.xlu0 %2250
      %2253 = vmatpush.msra.mxu0 %v1732
      %2254 = vmatpush.msra.mxu0 %v1716
      %2255 = vmatpush.msra.mxu0 %v1731
      %2256 = vmatpush.msra.mxu0 %v1715
      %2257 = vmatpush.msra.mxu0 %v1730
      %2258 = vmatpush.msra.mxu0 %v1714
      %2259 = vmatpush.msra.mxu0 %v1729
      %2260 = vmatpush.msra.mxu0 %v1713
      %2261 = vmatpush.msra.mxu0 %v1728
      %2262 = vmatpush.msra.mxu0 %v1712
      %2263 = vmatpush.msra.mxu0 %v1727
      %2264 = vmatpush.msra.mxu0 %v1711
      %2265 = vmatpush.msra.mxu0 %v1726
      %2266 = vmatpush.msra.mxu0 %v1710
      %2267 = vmatpush.msra.mxu0 %v1725
      %2268 = vmatpush.msra.mxu0 %v1709
      %2269 = vmatmul.f32.gmra.mxu0 %v1741
      %v2270 = vpop.f32.mrf.mxu0
      %v2271 = vadd.f32 %v1936, %v2270
      %2272 = vmatmul.f32.gmra.mxu0 %v1743
      %v2273 = vpop.f32.mrf.mxu0
      %v2274 = vadd.f32 %v1941, %v2273
      %2275 = vmatmul.f32.gmra.mxu0 %v1745
      %v2276 = vpop.f32.mrf.mxu0
      %v2277 = vadd.f32 %v1946, %v2276
      %2278 = vmatmul.f32.gmra.mxu0 %v1747
      %v2279 = vpop.f32.mrf.mxu0
      %v2280 = vadd.f32 %v1951, %v2279
      %2281 = vmatmul.f32.gmra.mxu0 %v1749
      %v2282 = vpop.f32.mrf.mxu0
      %v2283 = vadd.f32 %v1956, %v2282
      %2284 = vmatmul.f32.gmra.mxu0 %v1751
      %v2285 = vpop.f32.mrf.mxu0
      %v2286 = vadd.f32 %v1961, %v2285
      %2287 = vmatmul.f32.gmra.mxu0 %v1753
      %v2288 = vpop.f32.mrf.mxu0
      %v2289 = vadd.f32 %v1966, %v2288
      %2290 = vmatmul.f32.gmra.mxu0 %v1755
      %v2291 = vpop.f32.mrf.mxu0
      %v2292 = vadd.f32 %v1971, %v2291
      %2293 = vmatmul.f32.gmra.mxu0 %v1757
      %v2294 = vpop.f32.mrf.mxu0
      %v2295 = vadd.f32 %v1976, %v2294
      %2296 = vmatmul.f32.gmra.mxu0 %v1759
      %v2297 = vpop.f32.mrf.mxu0
      %v2298 = vadd.f32 %v1981, %v2297
      %2299 = vmatmul.f32.gmra.mxu0 %v1761
      %v2300 = vpop.f32.mrf.mxu0
      %v2301 = vadd.f32 %v1986, %v2300
      %2302 = vmatmul.f32.gmra.mxu0 %v1763
      %v2303 = vpop.f32.mrf.mxu0
      %v2304 = vadd.f32 %v1991, %v2303
      %2305 = vmatmul.f32.gmra.mxu0 %v1765
      %v2306 = vpop.f32.mrf.mxu0
      %v2307 = vadd.f32 %v1996, %v2306
      %2308 = vmatmul.f32.gmra.mxu0 %v1767
      %v2309 = vpop.f32.mrf.mxu0
      %v2310 = vadd.f32 %v2001, %v2309
      %2311 = vmatmul.f32.gmra.mxu0 %v1769
      %v2312 = vpop.f32.mrf.mxu0
      %v2313 = vadd.f32 %v2006, %v2312
      %2314 = vmatmul.f32.gmra.mxu0 %v1771
      %v2315 = vpop.f32.mrf.mxu0
      %v2316 = vadd.f32 %v2011, %v2315
      %2317 = vmatmul.f32.gmra.mxu0 %v1773
      %v2318 = vpop.f32.mrf.mxu0
      %v2319 = vadd.f32 %v2016, %v2318
      %2320 = vmatmul.f32.gmra.mxu0 %v1775
      %v2321 = vpop.f32.mrf.mxu0
      %v2322 = vadd.f32 %v2021, %v2321
      %2323 = vmatmul.f32.gmra.mxu0 %v1777
      %v2324 = vpop.f32.mrf.mxu0
      %v2325 = vadd.f32 %v2026, %v2324
      %2326 = vmatmul.f32.gmra.mxu0 %v1779
      %v2327 = vpop.f32.mrf.mxu0
      %v2328 = vadd.f32 %v2031, %v2327
      %2329 = vmatmul.f32.gmra.mxu0 %v1781
      %v2330 = vpop.f32.mrf.mxu0
      %v2331 = vadd.f32 %v2036, %v2330
      %2332 = vmatmul.f32.gmra.mxu0 %v1783
      %v2333 = vpop.f32.mrf.mxu0
      %v2334 = vadd.f32 %v2041, %v2333
      %2335 = vmatmul.f32.gmra.mxu0 %v1785
      %v2336 = vpop.f32.mrf.mxu0
      %v2337 = vadd.f32 %v2046, %v2336
      %2338 = vmatmul.f32.gmra.mxu0 %v1787
      %v2339 = vpop.f32.mrf.mxu0
      %v2340 = vadd.f32 %v2051, %v2339
      %2341 = vmatmul.f32.gmra.mxu0 %v1789
      %v2342 = vpop.f32.mrf.mxu0
      %v2343 = vadd.f32 %v2056, %v2342
      %2344 = vmatmul.f32.gmra.mxu0 %v1791
      %v2345 = vpop.f32.mrf.mxu0
      %v2346 = vadd.f32 %v2061, %v2345
      %2347 = vmatmul.f32.gmra.mxu0 %v1793
      %v2348 = vpop.f32.mrf.mxu0
      %v2349 = vadd.f32 %v2066, %v2348
      %2350 = vmatmul.f32.gmra.mxu0 %v1795
      %v2351 = vpop.f32.mrf.mxu0
      %v2352 = vadd.f32 %v2071, %v2351
      %2353 = vmatmul.f32.gmra.mxu0 %v1797
      %v2354 = vpop.f32.mrf.mxu0
      %v2355 = vadd.f32 %v2076, %v2354
      %2356 = vmatmul.f32.gmra.mxu0 %v1799
      %v2357 = vpop.f32.mrf.mxu0
      %v2358 = vadd.f32 %v2081, %v2357
      %2359 = vmatmul.f32.gmra.mxu0 %v1801
      %v2360 = vpop.f32.mrf.mxu0
      %v2361 = vadd.f32 %v2086, %v2360
      %2362 = vmatmul.f32.gmra.mxu0 %v1803
      %v2363 = vpop.f32.mrf.mxu0
      %v2364 = vadd.f32 %v2091, %v2363
      %2365 = vmatmul.f32.gmra.mxu0 %v1805
      %v2366 = vpop.f32.mrf.mxu0
      %v2367 = vadd.f32 %v2096, %v2366
      %2368 = vmatmul.f32.gmra.mxu0 %v1807
      %v2369 = vpop.f32.mrf.mxu0
      %v2370 = vadd.f32 %v2101, %v2369
      %2371 = vmatmul.f32.gmra.mxu0 %v1809
      %v2372 = vpop.f32.mrf.mxu0
      %v2373 = vadd.f32 %v2106, %v2372
      %2374 = vmatmul.f32.gmra.mxu0 %v1811
      %v2375 = vpop.f32.mrf.mxu0
      %v2376 = vadd.f32 %v2111, %v2375
      %2377 = vmatmul.f32.gmra.mxu0 %v1813
      %v2378 = vpop.f32.mrf.mxu0
      %v2379 = vadd.f32 %v2116, %v2378
      %2380 = vmatmul.f32.gmra.mxu0 %v1815
      %v2381 = vpop.f32.mrf.mxu0
      %v2382 = vadd.f32 %v2121, %v2381
      %2383 = vmatmul.f32.gmra.mxu0 %v1817
      %v2384 = vpop.f32.mrf.mxu0
      %v2385 = vadd.f32 %v2126, %v2384
      %2386 = vmatmul.f32.gmra.mxu0 %v1819
      %v2387 = vpop.f32.mrf.mxu0
      %v2388 = vadd.f32 %v2131, %v2387
      %2389 = vmatmul.f32.gmra.mxu0 %v1821
      %v2390 = vpop.f32.mrf.mxu0
      %v2391 = vadd.f32 %v2136, %v2390
      %2392 = vmatmul.f32.gmra.mxu0 %v1823
      %v2393 = vpop.f32.mrf.mxu0
      %v2394 = vadd.f32 %v2141, %v2393
      %2395 = vmatmul.f32.gmra.mxu0 %v1825
      %v2396 = vpop.f32.mrf.mxu0
      %v2397 = vadd.f32 %v2146, %v2396
      %2398 = vmatmul.f32.gmra.mxu0 %v1827
      %v2399 = vpop.f32.mrf.mxu0
      %v2400 = vadd.f32 %v2151, %v2399
      %2401 = vmatmul.f32.gmra.mxu0 %v1829
      %v2402 = vpop.f32.mrf.mxu0
      %v2403 = vadd.f32 %v2156, %v2402
      %2404 = vmatmul.f32.gmra.mxu0 %v1831
      %v2405 = vpop.f32.mrf.mxu0
      %v2406 = vadd.f32 %v2161, %v2405
      %2407 = vmatmul.f32.gmra.mxu0 %v1833
      %v2408 = vpop.f32.mrf.mxu0
      %v2409 = vadd.f32 %v2166, %v2408
      %2410 = vmatmul.f32.gmra.mxu0 %v1835
      %v2411 = vpop.f32.mrf.mxu0
      %v2412 = vadd.f32 %v2171, %v2411
      %2413 = vmatmul.f32.gmra.mxu0 %v1837
      %v2414 = vpop.f32.mrf.mxu0
      %v2415 = vadd.f32 %v2176, %v2414
      %2416 = vmatmul.f32.gmra.mxu0 %v1839
      %v2417 = vpop.f32.mrf.mxu0
      %v2418 = vadd.f32 %v2181, %v2417
      %2419 = vmatmul.f32.gmra.mxu0 %v1841
      %v2420 = vpop.f32.mrf.mxu0
      %v2421 = vadd.f32 %v2186, %v2420
      %2422 = vmatmul.f32.gmra.mxu0 %v1843
      %v2423 = vpop.f32.mrf.mxu0
      %v2424 = vadd.f32 %v2191, %v2423
      %2425 = vmatmul.f32.gmra.mxu0 %v1845
      %v2426 = vpop.f32.mrf.mxu0
      %v2427 = vadd.f32 %v2196, %v2426
      %2428 = vmatmul.f32.gmra.mxu0 %v1847
      %v2429 = vpop.f32.mrf.mxu0
      %v2430 = vadd.f32 %v2201, %v2429
      %2431 = vmatmul.f32.gmra.mxu0 %v1849
      %v2432 = vpop.f32.mrf.mxu0
      %v2433 = vadd.f32 %v2206, %v2432
      %2434 = vmatmul.f32.gmra.mxu0 %v1851
      %v2435 = vpop.f32.mrf.mxu0
      %v2436 = vadd.f32 %v2211, %v2435
      %2437 = vmatmul.f32.gmra.mxu0 %v1853
      %v2438 = vpop.f32.mrf.mxu0
      %v2439 = vadd.f32 %v2216, %v2438
      %2440 = vmatmul.f32.gmra.mxu0 %v1855
      %v2441 = vpop.f32.mrf.mxu0
      %v2442 = vadd.f32 %v2221, %v2441
      %2443 = vmatmul.f32.gmra.mxu0 %v1857
      %v2444 = vpop.f32.mrf.mxu0
      %v2445 = vadd.f32 %v2226, %v2444
      %2446 = vmatmul.f32.gmra.mxu0 %v1859
      %v2447 = vpop.f32.mrf.mxu0
      %v2448 = vadd.f32 %v2231, %v2447
      %2449 = vmatmul.f32.gmra.mxu0 %v1861
      %v2450 = vpop.f32.mrf.mxu0
      %v2451 = vadd.f32 %v2236, %v2450
      %2452 = vmatmul.f32.gmra.mxu0 %v1863
      %v2453 = vpop.f32.mrf.mxu0
      %v2454 = vadd.f32 %v2241, %v2453
      %2455 = vmatmul.f32.gmra.mxu0 %v1865
      %v2456 = vpop.f32.mrf.mxu0
      %v2457 = vadd.f32 %v2246, %v2456
      %2458 = vmatmul.f32.gmra.mxu0 %v1867
      %v2459 = vpop.f32.mrf.mxu0
      %v2460 = vadd.f32 %v2251, %v2459
      %2461 = vdwg.mxu0
      %2462 = vmatpush.msra.mxu0 %v1740
      %2463 = vmatpush.msra.mxu0 %v1724
      %2464 = vmatpush.msra.mxu0 %v1739
      %2465 = vmatpush.msra.mxu0 %v1723
      %2466 = vmatpush.msra.mxu0 %v1738
      %2467 = vmatpush.msra.mxu0 %v1722
      %2468 = vmatpush.msra.mxu0 %v1737
      %2469 = vmatpush.msra.mxu0 %v1721
      %2470 = vmatpush.msra.mxu0 %v1736
      %2471 = vmatpush.msra.mxu0 %v1720
      %2472 = vmatpush.msra.mxu0 %v1735
      %2473 = vmatpush.msra.mxu0 %v1719
      %2474 = vmatpush.msra.mxu0 %v1734
      %2475 = vmatpush.msra.mxu0 %v1718
      %2476 = vmatpush.msra.mxu0 %v1733
      %2477 = vmatpush.msra.mxu0 %v1717
      %2478 = vmatmul.f32.gmra.mxu0 %v1742
      %v2479 = vpop.f32.mrf.mxu0
      %v2480 = vadd.f32 %v2271, %v2479
      %2481 = vmatmul.f32.gmra.mxu0 %v1744
      %v2482 = vpop.f32.mrf.mxu0
      %v2483 = vadd.f32 %v2274, %v2482
      %2484 = vmatmul.f32.gmra.mxu0 %v1746
      %v2485 = vpop.f32.mrf.mxu0
      %v2486 = vadd.f32 %v2277, %v2485
      %2487 = vmatmul.f32.gmra.mxu0 %v1748
      %v2488 = vpop.f32.mrf.mxu0
      %v2489 = vadd.f32 %v2280, %v2488
      %2490 = vmatmul.f32.gmra.mxu0 %v1750
      %v2491 = vpop.f32.mrf.mxu0
      %v2492 = vadd.f32 %v2283, %v2491
      %2493 = vmatmul.f32.gmra.mxu0 %v1752
      %v2494 = vpop.f32.mrf.mxu0
      %v2495 = vadd.f32 %v2286, %v2494
      %2496 = vmatmul.f32.gmra.mxu0 %v1754
      %v2497 = vpop.f32.mrf.mxu0
      %v2498 = vadd.f32 %v2289, %v2497
      %2499 = vmatmul.f32.gmra.mxu0 %v1756
      %v2500 = vpop.f32.mrf.mxu0
      %v2501 = vadd.f32 %v2292, %v2500
      %2502 = vmatmul.f32.gmra.mxu0 %v1758
      %v2503 = vpop.f32.mrf.mxu0
      %v2504 = vadd.f32 %v2295, %v2503
      %2505 = vmatmul.f32.gmra.mxu0 %v1760
      %v2506 = vpop.f32.mrf.mxu0
      %v2507 = vadd.f32 %v2298, %v2506
      %2508 = vmatmul.f32.gmra.mxu0 %v1762
      %v2509 = vpop.f32.mrf.mxu0
      %v2510 = vadd.f32 %v2301, %v2509
      %2511 = vmatmul.f32.gmra.mxu0 %v1764
      %v2512 = vpop.f32.mrf.mxu0
      %v2513 = vadd.f32 %v2304, %v2512
      %2514 = vmatmul.f32.gmra.mxu0 %v1766
      %v2515 = vpop.f32.mrf.mxu0
      %v2516 = vadd.f32 %v2307, %v2515
      %2517 = vmatmul.f32.gmra.mxu0 %v1768
      %v2518 = vpop.f32.mrf.mxu0
      %v2519 = vadd.f32 %v2310, %v2518
      %2520 = vmatmul.f32.gmra.mxu0 %v1770
      %v2521 = vpop.f32.mrf.mxu0
      %v2522 = vadd.f32 %v2313, %v2521
      %2523 = vmatmul.f32.gmra.mxu0 %v1772
      %v2524 = vpop.f32.mrf.mxu0
      %v2525 = vadd.f32 %v2316, %v2524
      %2526 = vmatmul.f32.gmra.mxu0 %v1774
      %v2527 = vpop.f32.mrf.mxu0
      %v2528 = vadd.f32 %v2319, %v2527
      %2529 = vmatmul.f32.gmra.mxu0 %v1776
      %v2530 = vpop.f32.mrf.mxu0
      %v2531 = vadd.f32 %v2322, %v2530
      %2532 = vmatmul.f32.gmra.mxu0 %v1778
      %v2533 = vpop.f32.mrf.mxu0
      %v2534 = vadd.f32 %v2325, %v2533
      %2535 = vmatmul.f32.gmra.mxu0 %v1780
      %v2536 = vpop.f32.mrf.mxu0
      %v2537 = vadd.f32 %v2328, %v2536
      %2538 = vmatmul.f32.gmra.mxu0 %v1782
      %v2539 = vpop.f32.mrf.mxu0
      %v2540 = vadd.f32 %v2331, %v2539
      %2541 = vmatmul.f32.gmra.mxu0 %v1784
      %v2542 = vpop.f32.mrf.mxu0
      %v2543 = vadd.f32 %v2334, %v2542
      %2544 = vmatmul.f32.gmra.mxu0 %v1786
      %v2545 = vpop.f32.mrf.mxu0
      %v2546 = vadd.f32 %v2337, %v2545
      %2547 = vmatmul.f32.gmra.mxu0 %v1788
      %v2548 = vpop.f32.mrf.mxu0
      %v2549 = vadd.f32 %v2340, %v2548
      %2550 = vmatmul.f32.gmra.mxu0 %v1790
      %v2551 = vpop.f32.mrf.mxu0
      %v2552 = vadd.f32 %v2343, %v2551
      %2553 = vmatmul.f32.gmra.mxu0 %v1792
      %v2554 = vpop.f32.mrf.mxu0
      %v2555 = vadd.f32 %v2346, %v2554
      %2556 = vmatmul.f32.gmra.mxu0 %v1794
      %v2557 = vpop.f32.mrf.mxu0
      %v2558 = vadd.f32 %v2349, %v2557
      %2559 = vmatmul.f32.gmra.mxu0 %v1796
      %v2560 = vpop.f32.mrf.mxu0
      %v2561 = vadd.f32 %v2352, %v2560
      %2562 = vmatmul.f32.gmra.mxu0 %v1798
      %v2563 = vpop.f32.mrf.mxu0
      %v2564 = vadd.f32 %v2355, %v2563
      %2565 = vmatmul.f32.gmra.mxu0 %v1800
      %v2566 = vpop.f32.mrf.mxu0
      %v2567 = vadd.f32 %v2358, %v2566
      %2568 = vmatmul.f32.gmra.mxu0 %v1802
      %v2569 = vpop.f32.mrf.mxu0
      %v2570 = vadd.f32 %v2361, %v2569
      %2571 = vmatmul.f32.gmra.mxu0 %v1804
      %v2572 = vpop.f32.mrf.mxu0
      %v2573 = vadd.f32 %v2364, %v2572
      %2574 = vmatmul.f32.gmra.mxu0 %v1806
      %v2575 = vpop.f32.mrf.mxu0
      %v2576 = vadd.f32 %v2367, %v2575
      %2577 = vmatmul.f32.gmra.mxu0 %v1808
      %v2578 = vpop.f32.mrf.mxu0
      %v2579 = vadd.f32 %v2370, %v2578
      %2580 = vmatmul.f32.gmra.mxu0 %v1810
      %v2581 = vpop.f32.mrf.mxu0
      %v2582 = vadd.f32 %v2373, %v2581
      %2583 = vmatmul.f32.gmra.mxu0 %v1812
      %v2584 = vpop.f32.mrf.mxu0
      %v2585 = vadd.f32 %v2376, %v2584
      %2586 = vmatmul.f32.gmra.mxu0 %v1814
      %v2587 = vpop.f32.mrf.mxu0
      %v2588 = vadd.f32 %v2379, %v2587
      %2589 = vmatmul.f32.gmra.mxu0 %v1816
      %v2590 = vpop.f32.mrf.mxu0
      %v2591 = vadd.f32 %v2382, %v2590
      %2592 = vmatmul.f32.gmra.mxu0 %v1818
      %v2593 = vpop.f32.mrf.mxu0
      %v2594 = vadd.f32 %v2385, %v2593
      %2595 = vmatmul.f32.gmra.mxu0 %v1820
      %v2596 = vpop.f32.mrf.mxu0
      %v2597 = vadd.f32 %v2388, %v2596
      %2598 = vmatmul.f32.gmra.mxu0 %v1822
      %v2599 = vpop.f32.mrf.mxu0
      %v2600 = vadd.f32 %v2391, %v2599
      %2601 = vmatmul.f32.gmra.mxu0 %v1824
      %v2602 = vpop.f32.mrf.mxu0
      %v2603 = vadd.f32 %v2394, %v2602
      %2604 = vmatmul.f32.gmra.mxu0 %v1826
      %v2605 = vpop.f32.mrf.mxu0
      %v2606 = vadd.f32 %v2397, %v2605
      %2607 = vmatmul.f32.gmra.mxu0 %v1828
      %v2608 = vpop.f32.mrf.mxu0
      %v2609 = vadd.f32 %v2400, %v2608
      %2610 = vmatmul.f32.gmra.mxu0 %v1830
      %v2611 = vpop.f32.mrf.mxu0
      %v2612 = vadd.f32 %v2403, %v2611
      %2613 = vmatmul.f32.gmra.mxu0 %v1832
      %v2614 = vpop.f32.mrf.mxu0
      %v2615 = vadd.f32 %v2406, %v2614
      %2616 = vmatmul.f32.gmra.mxu0 %v1834
      %v2617 = vpop.f32.mrf.mxu0
      %v2618 = vadd.f32 %v2409, %v2617
      %2619 = vmatmul.f32.gmra.mxu0 %v1836
      %v2620 = vpop.f32.mrf.mxu0
      %v2621 = vadd.f32 %v2412, %v2620
      %2622 = vmatmul.f32.gmra.mxu0 %v1838
      %v2623 = vpop.f32.mrf.mxu0
      %v2624 = vadd.f32 %v2415, %v2623
      %2625 = vmatmul.f32.gmra.mxu0 %v1840
      %v2626 = vpop.f32.mrf.mxu0
      %v2627 = vadd.f32 %v2418, %v2626
      %2628 = vmatmul.f32.gmra.mxu0 %v1842
      %v2629 = vpop.f32.mrf.mxu0
      %v2630 = vadd.f32 %v2421, %v2629
      %2631 = vmatmul.f32.gmra.mxu0 %v1844
      %v2632 = vpop.f32.mrf.mxu0
      %v2633 = vadd.f32 %v2424, %v2632
      %2634 = vmatmul.f32.gmra.mxu0 %v1846
      %v2635 = vpop.f32.mrf.mxu0
      %v2636 = vadd.f32 %v2427, %v2635
      %2637 = vmatmul.f32.gmra.mxu0 %v1848
      %v2638 = vpop.f32.mrf.mxu0
      %v2639 = vadd.f32 %v2430, %v2638
      %2640 = vmatmul.f32.gmra.mxu0 %v1850
      %v2641 = vpop.f32.mrf.mxu0
      %v2642 = vadd.f32 %v2433, %v2641
      %2643 = vmatmul.f32.gmra.mxu0 %v1852
      %v2644 = vpop.f32.mrf.mxu0
      %v2645 = vadd.f32 %v2436, %v2644
      %2646 = vmatmul.f32.gmra.mxu0 %v1854
      %v2647 = vpop.f32.mrf.mxu0
      %v2648 = vadd.f32 %v2439, %v2647
      %2649 = vmatmul.f32.gmra.mxu0 %v1856
      %v2650 = vpop.f32.mrf.mxu0
      %v2651 = vadd.f32 %v2442, %v2650
      %2652 = vmatmul.f32.gmra.mxu0 %v1858
      %v2653 = vpop.f32.mrf.mxu0
      %v2654 = vadd.f32 %v2445, %v2653
      %2655 = vmatmul.f32.gmra.mxu0 %v1860
      %v2656 = vpop.f32.mrf.mxu0
      %v2657 = vadd.f32 %v2448, %v2656
      %2658 = vmatmul.f32.gmra.mxu0 %v1862
      %v2659 = vpop.f32.mrf.mxu0
      %v2660 = vadd.f32 %v2451, %v2659
      %2661 = vmatmul.f32.gmra.mxu0 %v1864
      %v2662 = vpop.f32.mrf.mxu0
      %v2663 = vadd.f32 %v2454, %v2662
      %2664 = vmatmul.f32.gmra.mxu0 %v1866
      %v2665 = vpop.f32.mrf.mxu0
      %v2666 = vadd.f32 %v2457, %v2665
      %2667 = vmatmul.f32.gmra.mxu0 %v1868
      %v2668 = vpop.f32.mrf.mxu0
      %v2669 = vadd.f32 %v2460, %v2668
      %2670 = vdwg.mxu0
      %vm2671 = vcmp.gt.f32.partialorder %v2480, 0.0
      %vm2672 = vcmp.gt.f32.partialorder %v2483, 0.0
      %vm2673 = vcmp.gt.f32.partialorder %v2486, 0.0
      %vm2674 = vcmp.gt.f32.partialorder %v2489, 0.0
      %vm2675 = vcmp.gt.f32.partialorder %v2492, 0.0
      %vm2676 = vcmp.gt.f32.partialorder %v2495, 0.0
      %vm2677 = vcmp.gt.f32.partialorder %v2498, 0.0
      %vm2678 = vcmp.gt.f32.partialorder %v2501, 0.0
      %vm2679 = vcmp.gt.f32.partialorder %v2504, 0.0
      %vm2680 = vcmp.gt.f32.partialorder %v2507, 0.0
      %vm2681 = vcmp.gt.f32.partialorder %v2510, 0.0
      %vm2682 = vcmp.gt.f32.partialorder %v2513, 0.0
      %vm2683 = vcmp.gt.f32.partialorder %v2516, 0.0
      %vm2684 = vcmp.gt.f32.partialorder %v2519, 0.0
      %vm2685 = vcmp.gt.f32.partialorder %v2522, 0.0
      %vm2686 = vcmp.gt.f32.partialorder %v2525, 0.0
      %vm2687 = vcmp.gt.f32.partialorder %v2528, 0.0
      %vm2688 = vcmp.gt.f32.partialorder %v2531, 0.0
      %vm2689 = vcmp.gt.f32.partialorder %v2534, 0.0
      %vm2690 = vcmp.gt.f32.partialorder %v2537, 0.0
      %vm2691 = vcmp.gt.f32.partialorder %v2540, 0.0
      %vm2692 = vcmp.gt.f32.partialorder %v2543, 0.0
      %vm2693 = vcmp.gt.f32.partialorder %v2546, 0.0
      %vm2694 = vcmp.gt.f32.partialorder %v2549, 0.0
      %vm2695 = vcmp.gt.f32.partialorder %v2552, 0.0
      %vm2696 = vcmp.gt.f32.partialorder %v2555, 0.0
      %vm2697 = vcmp.gt.f32.partialorder %v2558, 0.0
      %vm2698 = vcmp.gt.f32.partialorder %v2561, 0.0
      %vm2699 = vcmp.gt.f32.partialorder %v2564, 0.0
      %vm2700 = vcmp.gt.f32.partialorder %v2567, 0.0
      %vm2701 = vcmp.gt.f32.partialorder %v2570, 0.0
      %vm2702 = vcmp.gt.f32.partialorder %v2573, 0.0
      %vm2703 = vcmp.gt.f32.partialorder %v2576, 0.0
      %vm2704 = vcmp.gt.f32.partialorder %v2579, 0.0
      %vm2705 = vcmp.gt.f32.partialorder %v2582, 0.0
      %vm2706 = vcmp.gt.f32.partialorder %v2585, 0.0
      %vm2707 = vcmp.gt.f32.partialorder %v2588, 0.0
      %vm2708 = vcmp.gt.f32.partialorder %v2591, 0.0
      %vm2709 = vcmp.gt.f32.partialorder %v2594, 0.0
      %vm2710 = vcmp.gt.f32.partialorder %v2597, 0.0
      %vm2711 = vcmp.gt.f32.partialorder %v2600, 0.0
      %vm2712 = vcmp.gt.f32.partialorder %v2603, 0.0
      %vm2713 = vcmp.gt.f32.partialorder %v2606, 0.0
      %vm2714 = vcmp.gt.f32.partialorder %v2609, 0.0
      %vm2715 = vcmp.gt.f32.partialorder %v2612, 0.0
      %vm2716 = vcmp.gt.f32.partialorder %v2615, 0.0
      %vm2717 = vcmp.gt.f32.partialorder %v2618, 0.0
      %vm2718 = vcmp.gt.f32.partialorder %v2621, 0.0
      %vm2719 = vcmp.gt.f32.partialorder %v2624, 0.0
      %vm2720 = vcmp.gt.f32.partialorder %v2627, 0.0
      %vm2721 = vcmp.gt.f32.partialorder %v2630, 0.0
      %vm2722 = vcmp.gt.f32.partialorder %v2633, 0.0
      %vm2723 = vcmp.gt.f32.partialorder %v2636, 0.0
      %vm2724 = vcmp.gt.f32.partialorder %v2639, 0.0
      %vm2725 = vcmp.gt.f32.partialorder %v2642, 0.0
      %vm2726 = vcmp.gt.f32.partialorder %v2645, 0.0
      %vm2727 = vcmp.gt.f32.partialorder %v2648, 0.0
      %vm2728 = vcmp.gt.f32.partialorder %v2651, 0.0
      %vm2729 = vcmp.gt.f32.partialorder %v2654, 0.0
      %vm2730 = vcmp.gt.f32.partialorder %v2657, 0.0
      %vm2731 = vcmp.gt.f32.partialorder %v2660, 0.0
      %vm2732 = vcmp.gt.f32.partialorder %v2663, 0.0
      %vm2733 = vcmp.gt.f32.partialorder %v2666, 0.0
      %vm2734 = vcmp.gt.f32.partialorder %v2669, 0.0
      %v2735 = vmin.f32 %v2480, 0.0
      %v2736 = vmin.f32 %v2483, 0.0
      %v2737 = vmin.f32 %v2486, 0.0
      %v2738 = vmin.f32 %v2489, 0.0
      %v2739 = vmin.f32 %v2492, 0.0
      %v2740 = vmin.f32 %v2495, 0.0
      %v2741 = vmin.f32 %v2498, 0.0
      %v2742 = vmin.f32 %v2501, 0.0
      %v2743 = vmin.f32 %v2504, 0.0
      %v2744 = vmin.f32 %v2507, 0.0
      %v2745 = vmin.f32 %v2510, 0.0
      %v2746 = vmin.f32 %v2513, 0.0
      %v2747 = vmin.f32 %v2516, 0.0
      %v2748 = vmin.f32 %v2519, 0.0
      %v2749 = vmin.f32 %v2522, 0.0
      %v2750 = vmin.f32 %v2525, 0.0
      %v2751 = vmin.f32 %v2528, 0.0
      %v2752 = vmin.f32 %v2531, 0.0
      %v2753 = vmin.f32 %v2534, 0.0
      %v2754 = vmin.f32 %v2537, 0.0
      %v2755 = vmin.f32 %v2540, 0.0
      %v2756 = vmin.f32 %v2543, 0.0
      %v2757 = vmin.f32 %v2546, 0.0
      %v2758 = vmin.f32 %v2549, 0.0
      %v2759 = vmin.f32 %v2552, 0.0
      %v2760 = vmin.f32 %v2555, 0.0
      %v2761 = vmin.f32 %v2558, 0.0
      %v2762 = vmin.f32 %v2561, 0.0
      %v2763 = vmin.f32 %v2564, 0.0
      %v2764 = vmin.f32 %v2567, 0.0
      %v2765 = vmin.f32 %v2570, 0.0
      %v2766 = vmin.f32 %v2573, 0.0
      %v2767 = vmin.f32 %v2576, 0.0
      %v2768 = vmin.f32 %v2579, 0.0
      %v2769 = vmin.f32 %v2582, 0.0
      %v2770 = vmin.f32 %v2585, 0.0
      %v2771 = vmin.f32 %v2588, 0.0
      %v2772 = vmin.f32 %v2591, 0.0
      %v2773 = vmin.f32 %v2594, 0.0
      %v2774 = vmin.f32 %v2597, 0.0
      %v2775 = vmin.f32 %v2600, 0.0
      %v2776 = vmin.f32 %v2603, 0.0
      %v2777 = vmin.f32 %v2606, 0.0
      %v2778 = vmin.f32 %v2609, 0.0
      %v2779 = vmin.f32 %v2612, 0.0
      %v2780 = vmin.f32 %v2615, 0.0
      %v2781 = vmin.f32 %v2618, 0.0
      %v2782 = vmin.f32 %v2621, 0.0
      %v2783 = vmin.f32 %v2624, 0.0
      %v2784 = vmin.f32 %v2627, 0.0
      %v2785 = vmin.f32 %v2630, 0.0
      %v2786 = vmin.f32 %v2633, 0.0
      %v2787 = vmin.f32 %v2636, 0.0
      %v2788 = vmin.f32 %v2639, 0.0
      %v2789 = vmin.f32 %v2642, 0.0
      %v2790 = vmin.f32 %v2645, 0.0
      %v2791 = vmin.f32 %v2648, 0.0
      %v2792 = vmin.f32 %v2651, 0.0
      %v2793 = vmin.f32 %v2654, 0.0
      %v2794 = vmin.f32 %v2657, 0.0
      %v2795 = vmin.f32 %v2660, 0.0
      %v2796 = vmin.f32 %v2663, 0.0
      %v2797 = vmin.f32 %v2666, 0.0
      %v2798 = vmin.f32 %v2669, 0.0
      %v2799 = vmul.f32 %v2735, 1.442695
      %v2800 = vpow.pop %v2799
      %v2801 = vmul.f32 %v2736, 1.442695
      %v2802 = vpow.pop %v2801
      %v2803 = vmul.f32 %v2737, 1.442695
      %v2804 = vpow.pop %v2803
      %v2805 = vmul.f32 %v2738, 1.442695
      %v2806 = vpow.pop %v2805
      %v2807 = vmul.f32 %v2739, 1.442695
      %v2808 = vpow.pop %v2807
      %v2809 = vmul.f32 %v2740, 1.442695
      %v2810 = vpow.pop %v2809
      %v2811 = vmul.f32 %v2741, 1.442695
      %v2812 = vpow.pop %v2811
      %v2813 = vmul.f32 %v2742, 1.442695
      %v2814 = vpow.pop %v2813
      %v2815 = vmul.f32 %v2743, 1.442695
      %v2816 = vpow.pop %v2815
      %v2817 = vmul.f32 %v2744, 1.442695
      %v2818 = vpow.pop %v2817
      %v2819 = vmul.f32 %v2745, 1.442695
      %v2820 = vpow.pop %v2819
      %v2821 = vmul.f32 %v2746, 1.442695
      %v2822 = vpow.pop %v2821
      %v2823 = vmul.f32 %v2747, 1.442695
      %v2824 = vpow.pop %v2823
      %v2825 = vmul.f32 %v2748, 1.442695
      %v2826 = vpow.pop %v2825
      %v2827 = vmul.f32 %v2749, 1.442695
      %v2828 = vpow.pop %v2827
      %v2829 = vmul.f32 %v2750, 1.442695
      %v2830 = vpow.pop %v2829
      %v2831 = vmul.f32 %v2751, 1.442695
      %v2832 = vpow.pop %v2831
      %v2833 = vmul.f32 %v2752, 1.442695
      %v2834 = vpow.pop %v2833
      %v2835 = vmul.f32 %v2753, 1.442695
      %v2836 = vpow.pop %v2835
      %v2837 = vmul.f32 %v2754, 1.442695
      %v2838 = vpow.pop %v2837
      %v2839 = vmul.f32 %v2755, 1.442695
      %v2840 = vpow.pop %v2839
      %v2841 = vmul.f32 %v2756, 1.442695
      %v2842 = vpow.pop %v2841
      %v2843 = vmul.f32 %v2757, 1.442695
      %v2844 = vpow.pop %v2843
      %v2845 = vmul.f32 %v2758, 1.442695
      %v2846 = vpow.pop %v2845
      %v2847 = vmul.f32 %v2759, 1.442695
      %v2848 = vpow.pop %v2847
      %v2849 = vmul.f32 %v2760, 1.442695
      %v2850 = vpow.pop %v2849
      %v2851 = vmul.f32 %v2761, 1.442695
      %v2852 = vpow.pop %v2851
      %v2853 = vmul.f32 %v2762, 1.442695
      %v2854 = vpow.pop %v2853
      %v2855 = vmul.f32 %v2763, 1.442695
      %v2856 = vpow.pop %v2855
      %v2857 = vmul.f32 %v2764, 1.442695
      %v2858 = vpow.pop %v2857
      %v2859 = vmul.f32 %v2765, 1.442695
      %v2860 = vpow.pop %v2859
      %v2861 = vmul.f32 %v2766, 1.442695
      %v2862 = vpow.pop %v2861
      %v2863 = vmul.f32 %v2767, 1.442695
      %v2864 = vpow.pop %v2863
      %v2865 = vmul.f32 %v2768, 1.442695
      %v2866 = vpow.pop %v2865
      %v2867 = vmul.f32 %v2769, 1.442695
      %v2868 = vpow.pop %v2867
      %v2869 = vmul.f32 %v2770, 1.442695
      %v2870 = vpow.pop %v2869
      %v2871 = vmul.f32 %v2771, 1.442695
      %v2872 = vpow.pop %v2871
      %v2873 = vmul.f32 %v2772, 1.442695
      %v2874 = vpow.pop %v2873
      %v2875 = vmul.f32 %v2773, 1.442695
      %v2876 = vpow.pop %v2875
      %v2877 = vmul.f32 %v2774, 1.442695
      %v2878 = vpow.pop %v2877
      %v2879 = vmul.f32 %v2775, 1.442695
      %v2880 = vpow.pop %v2879
      %v2881 = vmul.f32 %v2776, 1.442695
      %v2882 = vpow.pop %v2881
      %v2883 = vmul.f32 %v2777, 1.442695
      %v2884 = vpow.pop %v2883
      %v2885 = vmul.f32 %v2778, 1.442695
      %v2886 = vpow.pop %v2885
      %v2887 = vmul.f32 %v2779, 1.442695
      %v2888 = vpow.pop %v2887
      %v2889 = vmul.f32 %v2780, 1.442695
      %v2890 = vpow.pop %v2889
      %v2891 = vmul.f32 %v2781, 1.442695
      %v2892 = vpow.pop %v2891
      %v2893 = vmul.f32 %v2782, 1.442695
      %v2894 = vpow.pop %v2893
      %v2895 = vmul.f32 %v2783, 1.442695
      %v2896 = vpow.pop %v2895
      %v2897 = vmul.f32 %v2784, 1.442695
      %v2898 = vpow.pop %v2897
      %v2899 = vmul.f32 %v2785, 1.442695
      %v2900 = vpow.pop %v2899
      %v2901 = vmul.f32 %v2786, 1.442695
      %v2902 = vpow.pop %v2901
      %v2903 = vmul.f32 %v2787, 1.442695
      %v2904 = vpow.pop %v2903
      %v2905 = vmul.f32 %v2788, 1.442695
      %v2906 = vpow.pop %v2905
      %v2907 = vmul.f32 %v2789, 1.442695
      %v2908 = vpow.pop %v2907
      %v2909 = vmul.f32 %v2790, 1.442695
      %v2910 = vpow.pop %v2909
      %v2911 = vmul.f32 %v2791, 1.442695
      %v2912 = vpow.pop %v2911
      %v2913 = vmul.f32 %v2792, 1.442695
      %v2914 = vpow.pop %v2913
      %v2915 = vmul.f32 %v2793, 1.442695
      %v2916 = vpow.pop %v2915
      %v2917 = vmul.f32 %v2794, 1.442695
      %v2918 = vpow.pop %v2917
      %v2919 = vmul.f32 %v2795, 1.442695
      %v2920 = vpow.pop %v2919
      %v2921 = vmul.f32 %v2796, 1.442695
      %v2922 = vpow.pop %v2921
      %v2923 = vmul.f32 %v2797, 1.442695
      %v2924 = vpow.pop %v2923
      %v2925 = vmul.f32 %v2798, 1.442695
      %v2926 = vpow.pop %v2925
      %v2927 = vsub.f32 %v2800, 1.0
      %v2928 = vsub.f32 %v2802, 1.0
      %v2929 = vsub.f32 %v2804, 1.0
      %v2930 = vsub.f32 %v2806, 1.0
      %v2931 = vsub.f32 %v2808, 1.0
      %v2932 = vsub.f32 %v2810, 1.0
      %v2933 = vsub.f32 %v2812, 1.0
      %v2934 = vsub.f32 %v2814, 1.0
      %v2935 = vsub.f32 %v2816, 1.0
      %v2936 = vsub.f32 %v2818, 1.0
      %v2937 = vsub.f32 %v2820, 1.0
      %v2938 = vsub.f32 %v2822, 1.0
      %v2939 = vsub.f32 %v2824, 1.0
      %v2940 = vsub.f32 %v2826, 1.0
      %v2941 = vsub.f32 %v2828, 1.0
      %v2942 = vsub.f32 %v2830, 1.0
      %v2943 = vsub.f32 %v2832, 1.0
      %v2944 = vsub.f32 %v2834, 1.0
      %v2945 = vsub.f32 %v2836, 1.0
      %v2946 = vsub.f32 %v2838, 1.0
      %v2947 = vsub.f32 %v2840, 1.0
      %v2948 = vsub.f32 %v2842, 1.0
      %v2949 = vsub.f32 %v2844, 1.0
      %v2950 = vsub.f32 %v2846, 1.0
      %v2951 = vsub.f32 %v2848, 1.0
      %v2952 = vsub.f32 %v2850, 1.0
      %v2953 = vsub.f32 %v2852, 1.0
      %v2954 = vsub.f32 %v2854, 1.0
      %v2955 = vsub.f32 %v2856, 1.0
      %v2956 = vsub.f32 %v2858, 1.0
      %v2957 = vsub.f32 %v2860, 1.0
      %v2958 = vsub.f32 %v2862, 1.0
      %v2959 = vsub.f32 %v2864, 1.0
      %v2960 = vsub.f32 %v2866, 1.0
      %v2961 = vsub.f32 %v2868, 1.0
      %v2962 = vsub.f32 %v2870, 1.0
      %v2963 = vsub.f32 %v2872, 1.0
      %v2964 = vsub.f32 %v2874, 1.0
      %v2965 = vsub.f32 %v2876, 1.0
      %v2966 = vsub.f32 %v2878, 1.0
      %v2967 = vsub.f32 %v2880, 1.0
      %v2968 = vsub.f32 %v2882, 1.0
      %v2969 = vsub.f32 %v2884, 1.0
      %v2970 = vsub.f32 %v2886, 1.0
      %v2971 = vsub.f32 %v2888, 1.0
      %v2972 = vsub.f32 %v2890, 1.0
      %v2973 = vsub.f32 %v2892, 1.0
      %v2974 = vsub.f32 %v2894, 1.0
      %v2975 = vsub.f32 %v2896, 1.0
      %v2976 = vsub.f32 %v2898, 1.0
      %v2977 = vsub.f32 %v2900, 1.0
      %v2978 = vsub.f32 %v2902, 1.0
      %v2979 = vsub.f32 %v2904, 1.0
      %v2980 = vsub.f32 %v2906, 1.0
      %v2981 = vsub.f32 %v2908, 1.0
      %v2982 = vsub.f32 %v2910, 1.0
      %v2983 = vsub.f32 %v2912, 1.0
      %v2984 = vsub.f32 %v2914, 1.0
      %v2985 = vsub.f32 %v2916, 1.0
      %v2986 = vsub.f32 %v2918, 1.0
      %v2987 = vsub.f32 %v2920, 1.0
      %v2988 = vsub.f32 %v2922, 1.0
      %v2989 = vsub.f32 %v2924, 1.0
      %v2990 = vsub.f32 %v2926, 1.0
      %v2991 = vsel %vm2671, %v2480, %v2927
      %v2992 = vsel %vm2672, %v2483, %v2928
      %v2993 = vsel %vm2673, %v2486, %v2929
      %v2994 = vsel %vm2674, %v2489, %v2930
      %v2995 = vsel %vm2675, %v2492, %v2931
      %v2996 = vsel %vm2676, %v2495, %v2932
      %v2997 = vsel %vm2677, %v2498, %v2933
      %v2998 = vsel %vm2678, %v2501, %v2934
      %v2999 = vsel %vm2679, %v2504, %v2935
      %v3000 = vsel %vm2680, %v2507, %v2936
      %v3001 = vsel %vm2681, %v2510, %v2937
      %v3002 = vsel %vm2682, %v2513, %v2938
      %v3003 = vsel %vm2683, %v2516, %v2939
      %v3004 = vsel %vm2684, %v2519, %v2940
      %v3005 = vsel %vm2685, %v2522, %v2941
      %v3006 = vsel %vm2686, %v2525, %v2942
      %v3007 = vsel %vm2687, %v2528, %v2943
      %v3008 = vsel %vm2688, %v2531, %v2944
      %v3009 = vsel %vm2689, %v2534, %v2945
      %v3010 = vsel %vm2690, %v2537, %v2946
      %v3011 = vsel %vm2691, %v2540, %v2947
      %v3012 = vsel %vm2692, %v2543, %v2948
      %v3013 = vsel %vm2693, %v2546, %v2949
      %v3014 = vsel %vm2694, %v2549, %v2950
      %v3015 = vsel %vm2695, %v2552, %v2951
      %v3016 = vsel %vm2696, %v2555, %v2952
      %v3017 = vsel %vm2697, %v2558, %v2953
      %v3018 = vsel %vm2698, %v2561, %v2954
      %v3019 = vsel %vm2699, %v2564, %v2955
      %v3020 = vsel %vm2700, %v2567, %v2956
      %v3021 = vsel %vm2701, %v2570, %v2957
      %v3022 = vsel %vm2702, %v2573, %v2958
      %v3023 = vsel %vm2703, %v2576, %v2959
      %v3024 = vsel %vm2704, %v2579, %v2960
      %v3025 = vsel %vm2705, %v2582, %v2961
      %v3026 = vsel %vm2706, %v2585, %v2962
      %v3027 = vsel %vm2707, %v2588, %v2963
      %v3028 = vsel %vm2708, %v2591, %v2964
      %v3029 = vsel %vm2709, %v2594, %v2965
      %v3030 = vsel %vm2710, %v2597, %v2966
      %v3031 = vsel %vm2711, %v2600, %v2967
      %v3032 = vsel %vm2712, %v2603, %v2968
      %v3033 = vsel %vm2713, %v2606, %v2969
      %v3034 = vsel %vm2714, %v2609, %v2970
      %v3035 = vsel %vm2715, %v2612, %v2971
      %v3036 = vsel %vm2716, %v2615, %v2972
      %v3037 = vsel %vm2717, %v2618, %v2973
      %v3038 = vsel %vm2718, %v2621, %v2974
      %v3039 = vsel %vm2719, %v2624, %v2975
      %v3040 = vsel %vm2720, %v2627, %v2976
      %v3041 = vsel %vm2721, %v2630, %v2977
      %v3042 = vsel %vm2722, %v2633, %v2978
      %v3043 = vsel %vm2723, %v2636, %v2979
      %v3044 = vsel %vm2724, %v2639, %v2980
      %v3045 = vsel %vm2725, %v2642, %v2981
      %v3046 = vsel %vm2726, %v2645, %v2982
      %v3047 = vsel %vm2727, %v2648, %v2983
      %v3048 = vsel %vm2728, %v2651, %v2984
      %v3049 = vsel %vm2729, %v2654, %v2985
      %v3050 = vsel %vm2730, %v2657, %v2986
      %v3051 = vsel %vm2731, %v2660, %v2987
      %v3052 = vsel %vm2732, %v2663, %v2988
      %v3053 = vsel %vm2733, %v2666, %v2989
      %v3054 = vsel %vm2734, %v2669, %v2990
      %v3055 = vld [vmem:[%s5] sm:$0xff]
      %v3056 = vld [vmem:[%s5 + $0x8] sm:$0xff]
      %v3057 = vld [vmem:[%s5 + $0x10] sm:$0xff]
      %v3058 = vld [vmem:[%s5 + $0x18] sm:$0xff]
      %v3059 = vld [vmem:[%s5 + $0x20] sm:$0xff]
      %v3060 = vld [vmem:[%s5 + $0x28] sm:$0xff]
      %v3061 = vld [vmem:[%s5 + $0x30] sm:$0xff]
      %v3062 = vld [vmem:[%s5 + $0x38] sm:$0xff]
      %v3063 = vld [vmem:[#allocation2] sm:$0x1]
      %v3065 = vperm.slane %v3063, 0
      %3066 = vset.pattern.permute.xlu0 0
      %3067 = vperm.xlu0 %3066, %v3065
      %v3068 = vpop.permute.xlu0 %3067
      %3070 = vmatpush.msra.mxu0 %v3006
      %3071 = vmatpush.msra.mxu0 %v3005
      %3072 = vmatpush.msra.mxu0 %v3004
      %3073 = vmatpush.msra.mxu0 %v3003
      %3074 = vmatpush.msra.mxu0 %v3002
      %3075 = vmatpush.msra.mxu0 %v3001
      %3076 = vmatpush.msra.mxu0 %v3000
      %3077 = vmatpush.msra.mxu0 %v2999
      %3078 = vmatpush.msra.mxu0 %v2998
      %3079 = vmatpush.msra.mxu0 %v2997
      %3080 = vmatpush.msra.mxu0 %v2996
      %3081 = vmatpush.msra.mxu0 %v2995
      %3082 = vmatpush.msra.mxu0 %v2994
      %3083 = vmatpush.msra.mxu0 %v2993
      %3084 = vmatpush.msra.mxu0 %v2992
      %3085 = vmatpush.msra.mxu0 %v2991
      %3086 = vmatmul.f32.gmra.mxu0 %v3055
      %v3087 = vpop.f32.mrf.mxu0
      %v3088 = vadd.f32 %v3068, %v3087
      %3089 = vmatmul.f32.gmra.mxu0 %v3059
      %v3090 = vpop.f32.mrf.mxu0
      %v3091 = vadd.f32 %v3068, %v3090
      %3092 = vdwg.mxu0
      %3093 = vmatpush.msra.mxu0 %v3022
      %3094 = vmatpush.msra.mxu0 %v3021
      %3095 = vmatpush.msra.mxu0 %v3020
      %3096 = vmatpush.msra.mxu0 %v3019
      %3097 = vmatpush.msra.mxu0 %v3018
      %3098 = vmatpush.msra.mxu0 %v3017
      %3099 = vmatpush.msra.mxu0 %v3016
      %3100 = vmatpush.msra.mxu0 %v3015
      %3101 = vmatpush.msra.mxu0 %v3014
      %3102 = vmatpush.msra.mxu0 %v3013
      %3103 = vmatpush.msra.mxu0 %v3012
      %3104 = vmatpush.msra.mxu0 %v3011
      %3105 = vmatpush.msra.mxu0 %v3010
      %3106 = vmatpush.msra.mxu0 %v3009
      %3107 = vmatpush.msra.mxu0 %v3008
      %3108 = vmatpush.msra.mxu0 %v3007
      %3109 = vmatmul.f32.gmra.mxu0 %v3056
      %v3110 = vpop.f32.mrf.mxu0
      %v3111 = vadd.f32 %v3088, %v3110
      %3112 = vmatmul.f32.gmra.mxu0 %v3060
      %v3113 = vpop.f32.mrf.mxu0
      %v3114 = vadd.f32 %v3091, %v3113
      %3115 = vdwg.mxu0
      %3116 = vmatpush.msra.mxu0 %v3038
      %3117 = vmatpush.msra.mxu0 %v3037
      %3118 = vmatpush.msra.mxu0 %v3036
      %3119 = vmatpush.msra.mxu0 %v3035
      %3120 = vmatpush.msra.mxu0 %v3034
      %3121 = vmatpush.msra.mxu0 %v3033
      %3122 = vmatpush.msra.mxu0 %v3032
      %3123 = vmatpush.msra.mxu0 %v3031
      %3124 = vmatpush.msra.mxu0 %v3030
      %3125 = vmatpush.msra.mxu0 %v3029
      %3126 = vmatpush.msra.mxu0 %v3028
      %3127 = vmatpush.msra.mxu0 %v3027
      %3128 = vmatpush.msra.mxu0 %v3026
      %3129 = vmatpush.msra.mxu0 %v3025
      %3130 = vmatpush.msra.mxu0 %v3024
      %3131 = vmatpush.msra.mxu0 %v3023
      %3132 = vmatmul.f32.gmra.mxu0 %v3057
      %v3133 = vpop.f32.mrf.mxu0
      %v3134 = vadd.f32 %v3111, %v3133
      %3135 = vmatmul.f32.gmra.mxu0 %v3061
      %v3136 = vpop.f32.mrf.mxu0
      %v3137 = vadd.f32 %v3114, %v3136
      %3138 = vdwg.mxu0
      %3139 = vmatpush.msra.mxu0 %v3054
      %3140 = vmatpush.msra.mxu0 %v3053
      %3141 = vmatpush.msra.mxu0 %v3052
      %3142 = vmatpush.msra.mxu0 %v3051
      %3143 = vmatpush.msra.mxu0 %v3050
      %3144 = vmatpush.msra.mxu0 %v3049
      %3145 = vmatpush.msra.mxu0 %v3048
      %3146 = vmatpush.msra.mxu0 %v3047
      %3147 = vmatpush.msra.mxu0 %v3046
      %3148 = vmatpush.msra.mxu0 %v3045
      %3149 = vmatpush.msra.mxu0 %v3044
      %3150 = vmatpush.msra.mxu0 %v3043
      %3151 = vmatpush.msra.mxu0 %v3042
      %3152 = vmatpush.msra.mxu0 %v3041
      %3153 = vmatpush.msra.mxu0 %v3040
      %3154 = vmatpush.msra.mxu0 %v3039
      %3155 = vmatmul.f32.gmra.mxu0 %v3058
      %v3156 = vpop.f32.mrf.mxu0
      %v3157 = vadd.f32 %v3134, %v3156
      %3158 = vmatmul.f32.gmra.mxu0 %v3062
      %v3159 = vpop.f32.mrf.mxu0
      %v3160 = vadd.f32 %v3137, %v3159
      %3161 = vdwg.mxu0
      %v3162 = vsub.f32 0.0, %v3157
      %v3163 = vsub.f32 0.0, %v3160
      %v3164 = vmul.f32 %v3162, 1.442695
      %v3165 = vpow.pop %v3164
      %v3166 = vmul.f32 %v3163, 1.442695
      %v3167 = vpow.pop %v3166
      %v3168 = vadd.f32 %v3165, 1.0
      %v3169 = vadd.f32 %v3167, 1.0
      %v3170 = vrcp.pop %v3168
      %v3171 = vmul.f32 %v3168, %v3170
      %v3172 = vsub.f32 1.0, %v3171
      %v3173 = vmul.f32 %v3170, %v3172
      %v3174 = vadd.f32 %v3170, %v3173
      %vm3175 = vweird.f32 %v3168
      %vm3176 = vweird.f32 %v3170
      %vm3177 = vmor %vm3175, %vm3176
      %v3178 = vsel %vm3177, %v3170, %v3174
      %v3179 = vand.u32 2147483647, %v3168
      %vm3180 = vcmp.eq.f32.partialorder %v3179, 8.507059e+37
      %v3181 = vand.u32 %v3168, 2147483648
      %v3182 = vor.u32 1.1754944e-38, %v3181
      %v3183 = vsel %vm3180, %v3182, %v3178
      %v3184 = vmul.f32 1.0, %v3183
      %v3185 = vrcp.pop %v3169
      %v3186 = vmul.f32 %v3169, %v3185
      %v3187 = vsub.f32 1.0, %v3186
      %v3188 = vmul.f32 %v3185, %v3187
      %v3189 = vadd.f32 %v3185, %v3188
      %vm3190 = vweird.f32 %v3169
      %vm3191 = vweird.f32 %v3185
      %vm3192 = vmor %vm3190, %vm3191
      %v3193 = vsel %vm3192, %v3185, %v3189
      %v3194 = vand.u32 2147483647, %v3169
      %vm3195 = vcmp.eq.f32.partialorder %v3194, 8.507059e+37
      %v3196 = vand.u32 %v3169, 2147483648
      %v3197 = vor.u32 1.1754944e-38, %v3196
      %v3198 = vsel %vm3195, %v3197, %v3193
      %v3199 = vmul.f32 1.0, %v3198
      %v3200 = vmul.f32 %v2991, %v3184
      %v3201 = vmul.f32 %v2992, %v3199
      %v3202 = vmul.f32 %v2993, %v3184
      %v3203 = vmul.f32 %v2994, %v3199
      %v3204 = vmul.f32 %v2995, %v3184
      %v3205 = vmul.f32 %v2996, %v3199
      %v3206 = vmul.f32 %v2997, %v3184
      %v3207 = vmul.f32 %v2998, %v3199
      %v3208 = vmul.f32 %v2999, %v3184
      %v3209 = vmul.f32 %v3000, %v3199
      %v3210 = vmul.f32 %v3001, %v3184
      %v3211 = vmul.f32 %v3002, %v3199
      %v3212 = vmul.f32 %v3003, %v3184
      %v3213 = vmul.f32 %v3004, %v3199
      %v3214 = vmul.f32 %v3005, %v3184
      %v3215 = vmul.f32 %v3006, %v3199
      %v3216 = vmul.f32 %v3007, %v3184
      %v3217 = vmul.f32 %v3008, %v3199
      %v3218 = vmul.f32 %v3009, %v3184
      %v3219 = vmul.f32 %v3010, %v3199
      %v3220 = vmul.f32 %v3011, %v3184
      %v3221 = vmul.f32 %v3012, %v3199
      %v3222 = vmul.f32 %v3013, %v3184
      %v3223 = vmul.f32 %v3014, %v3199
      %v3224 = vmul.f32 %v3015, %v3184
      %v3225 = vmul.f32 %v3016, %v3199
      %v3226 = vmul.f32 %v3017, %v3184
      %v3227 = vmul.f32 %v3018, %v3199
      %v3228 = vmul.f32 %v3019, %v3184
      %v3229 = vmul.f32 %v3020, %v3199
      %v3230 = vmul.f32 %v3021, %v3184
      %v3231 = vmul.f32 %v3022, %v3199
      %v3232 = vmul.f32 %v3023, %v3184
      %v3233 = vmul.f32 %v3024, %v3199
      %v3234 = vmul.f32 %v3025, %v3184
      %v3235 = vmul.f32 %v3026, %v3199
      %v3236 = vmul.f32 %v3027, %v3184
      %v3237 = vmul.f32 %v3028, %v3199
      %v3238 = vmul.f32 %v3029, %v3184
      %v3239 = vmul.f32 %v3030, %v3199
      %v3240 = vmul.f32 %v3031, %v3184
      %v3241 = vmul.f32 %v3032, %v3199
      %v3242 = vmul.f32 %v3033, %v3184
      %v3243 = vmul.f32 %v3034, %v3199
      %v3244 = vmul.f32 %v3035, %v3184
      %v3245 = vmul.f32 %v3036, %v3199
      %v3246 = vmul.f32 %v3037, %v3184
      %v3247 = vmul.f32 %v3038, %v3199
      %v3248 = vmul.f32 %v3039, %v3184
      %v3249 = vmul.f32 %v3040, %v3199
      %v3250 = vmul.f32 %v3041, %v3184
      %v3251 = vmul.f32 %v3042, %v3199
      %v3252 = vmul.f32 %v3043, %v3184
      %v3253 = vmul.f32 %v3044, %v3199
      %v3254 = vmul.f32 %v3045, %v3184
      %v3255 = vmul.f32 %v3046, %v3199
      %v3256 = vmul.f32 %v3047, %v3184
      %v3257 = vmul.f32 %v3048, %v3199
      %v3258 = vmul.f32 %v3049, %v3184
      %v3259 = vmul.f32 %v3050, %v3199
      %v3260 = vmul.f32 %v3051, %v3184
      %v3261 = vmul.f32 %v3052, %v3199
      %v3262 = vmul.f32 %v3053, %v3184
      %v3263 = vmul.f32 %v3054, %v3199
      %v3264 = vld [vmem:[%s7] sm:$0x3f]
      %v3265 = vld [vmem:[%s7 + $0x8] sm:$0x3f]
      %v3266 = vld [vmem:[%s7 + $0x10] sm:$0x3f]
      %v3267 = vld [vmem:[%s7 + $0x18] sm:$0x3f]
      %3268 = vmatpush.msra.mxu0 %v3215
      %3269 = vmatpush.msra.mxu0 %v3214
      %3270 = vmatpush.msra.mxu0 %v3213
      %3271 = vmatpush.msra.mxu0 %v3212
      %3272 = vmatpush.msra.mxu0 %v3211
      %3273 = vmatpush.msra.mxu0 %v3210
      %3274 = vmatpush.msra.mxu0 %v3209
      %3275 = vmatpush.msra.mxu0 %v3208
      %3276 = vmatpush.msra.mxu0 %v3207
      %3277 = vmatpush.msra.mxu0 %v3206
      %3278 = vmatpush.msra.mxu0 %v3205
      %3279 = vmatpush.msra.mxu0 %v3204
      %3280 = vmatpush.msra.mxu0 %v3203
      %3281 = vmatpush.msra.mxu0 %v3202
      %3282 = vmatpush.msra.mxu0 %v3201
      %3283 = vmatpush.msra.mxu0 %v3200
      %3284 = vmatmul.f32.gmra.mxu0 %v3264
      %v3285 = vpop.f32.mrf.mxu0
      %v3286 = vadd.f32 0.0, %v3285
      %3287 = vdwg.mxu0
      %3288 = vmatpush.msra.mxu0 %v3231
      %3289 = vmatpush.msra.mxu0 %v3230
      %3290 = vmatpush.msra.mxu0 %v3229
      %3291 = vmatpush.msra.mxu0 %v3228
      %3292 = vmatpush.msra.mxu0 %v3227
      %3293 = vmatpush.msra.mxu0 %v3226
      %3294 = vmatpush.msra.mxu0 %v3225
      %3295 = vmatpush.msra.mxu0 %v3224
      %3296 = vmatpush.msra.mxu0 %v3223
      %3297 = vmatpush.msra.mxu0 %v3222
      %3298 = vmatpush.msra.mxu0 %v3221
      %3299 = vmatpush.msra.mxu0 %v3220
      %3300 = vmatpush.msra.mxu0 %v3219
      %3301 = vmatpush.msra.mxu0 %v3218
      %3302 = vmatpush.msra.mxu0 %v3217
      %3303 = vmatpush.msra.mxu0 %v3216
      %3304 = vmatmul.f32.gmra.mxu0 %v3265
      %v3305 = vpop.f32.mrf.mxu0
      %v3306 = vadd.f32 %v3286, %v3305
      %3307 = vdwg.mxu0
      %3308 = vmatpush.msra.mxu0 %v3247
      %3309 = vmatpush.msra.mxu0 %v3246
      %3310 = vmatpush.msra.mxu0 %v3245
      %3311 = vmatpush.msra.mxu0 %v3244
      %3312 = vmatpush.msra.mxu0 %v3243
      %3313 = vmatpush.msra.mxu0 %v3242
      %3314 = vmatpush.msra.mxu0 %v3241
      %3315 = vmatpush.msra.mxu0 %v3240
      %3316 = vmatpush.msra.mxu0 %v3239
      %3317 = vmatpush.msra.mxu0 %v3238
      %3318 = vmatpush.msra.mxu0 %v3237
      %3319 = vmatpush.msra.mxu0 %v3236
      %3320 = vmatpush.msra.mxu0 %v3235
      %3321 = vmatpush.msra.mxu0 %v3234
      %3322 = vmatpush.msra.mxu0 %v3233
      %3323 = vmatpush.msra.mxu0 %v3232
      %3324 = vmatmul.f32.gmra.mxu0 %v3266
      %v3325 = vpop.f32.mrf.mxu0
      %v3326 = vadd.f32 %v3306, %v3325
      %3327 = vdwg.mxu0
      %3328 = vmatpush.msra.mxu0 %v3263
      %3329 = vmatpush.msra.mxu0 %v3262
      %3330 = vmatpush.msra.mxu0 %v3261
      %3331 = vmatpush.msra.mxu0 %v3260
      %3332 = vmatpush.msra.mxu0 %v3259
      %3333 = vmatpush.msra.mxu0 %v3258
      %3334 = vmatpush.msra.mxu0 %v3257
      %3335 = vmatpush.msra.mxu0 %v3256
      %3336 = vmatpush.msra.mxu0 %v3255
      %3337 = vmatpush.msra.mxu0 %v3254
      %3338 = vmatpush.msra.mxu0 %v3253
      %3339 = vmatpush.msra.mxu0 %v3252
      %3340 = vmatpush.msra.mxu0 %v3251
      %3341 = vmatpush.msra.mxu0 %v3250
      %3342 = vmatpush.msra.mxu0 %v3249
      %3343 = vmatpush.msra.mxu0 %v3248
      %3344 = vmatmul.f32.gmra.mxu0 %v3267
      %v3345 = vpop.f32.mrf.mxu0
      %v3346 = vadd.f32 %v3326, %v3345
      %3347 = vdwg.mxu0
      %vm3348 = vcmask 1045504
      %v3349 = vsel %vm3348, %v3346, 0.0
      %3350 = vadd.xlane.f32.xlu0 %v3349
      %v3351 = vpop.xlane.xlu0 %3350
      %v3352 = vmul.f32 %v3351, 0.00048828125
      %v3353 = vld [vmem:[%s8] sm:$0x3f]
      %v3354 = vadd.f32 %v3352, %v3353
      %vm3355 = vcmask 5120
      %3356 = vst.msk [vmem:[%s332] sm:$0x3f] %vm3355, %v3354
      %p3357 = scmp.lt.s32.totalorder %s22, 1
      %s3358 = scalar_select %p3357, %s22, 1
      %s3359 = smul.addr %s3358, 8
      %s3360 = scalar_lea.vmem %s9, %s3359
      // Predicated region
      $region57: #{eegnet_forward.1} parent=55 // pred_check
        %p3361 = pneg %p234
      $region58: #{eegnet_forward.1} parent=55 // pred_check_branch
        %3363 = sbr.rel (%p3361) target = $region60
      $region59: #{eegnet_forward.1} parent=55 // pred_region
        _
      $region60: #{eegnet_forward.1} parent=55 // pred_fallthru
        _
    $region56: #{eegnet_forward.1} parent=5 // pred_fallthru
      _
    %p3364 = scmp.le.s32.totalorder 2, %s17
    // Predicated region
    $region61: #{eegnet_forward.1} parent=5 // pred_check
      %p3365 = pneg %p3364
    $region62: #{eegnet_forward.1} parent=5 // pred_check_branch
      %3367 = sbr.rel (%p3365) target = $region64
    $region63: #{eegnet_forward.1} parent=5 // pred_region
      %s3368 = ssub.s32 %s17, 2
      // Predicated region
      $region65: #{eegnet_forward.1} parent=63 // pred_check
        %p3369 = pneg %p240
      $region66: #{eegnet_forward.1} parent=63 // pred_check_branch
        %3371 = sbr.rel (%p3369) target = $region68
      $region67: #{eegnet_forward.1} parent=63 // pred_region
        %p3372 = scmp.lt.s32.totalorder %s23, 1
        %s3373 = scalar_select %p3372, %s23, 1
        %s3374 = smul.addr %s3373, 8
        %s3375 = scalar_lea.vmem %s9, %s3374
      $region68: #{eegnet_forward.1} parent=63 // pred_fallthru
        _
    $region64: #{eegnet_forward.1} parent=5 // pred_fallthru
      _
  $region6: #{eegnet_forward.1} parent=0 // loop_footer
    %s21 = sadd.s32 1, %s17
  $region7: #{eegnet_forward.1} parent=0 // loop_footer_branch
    %16 = sbr.rel target = $region3
  $region8: #{eegnet_forward.1} parent=0 // loop_exit
    _

</llo_original>
